<compile_context>
chip_gen: v6e
topology: v6e:2x2x1
jax: 0.10.0
libtpu: 0.0.40
codegen_flags: <defaults>
</compile_context>

<pallas_src>
import functools

import jax
import jax.numpy as jnp
from jax.experimental import pallas as pl
from jax.experimental.pallas import tpu as pltpu


# ----------------------------------------------------------------------------
# Fused whole-model kernel
# ----------------------------------------------------------------------------

def _layernorm(x, g, b, eps=1e-5):
    mean = jnp.mean(x, axis=-1, keepdims=True)
    var = jnp.mean(jnp.square(x - mean), axis=-1, keepdims=True)
    return (x - mean) * jax.lax.rsqrt(var + eps) * g + b


def _fused_forward_kernel(
    feat_ref,      # (Bb, S, Dtot)     concatenated modality features
    enc_w_ref,     # (Dtot, H)         row-stacked encoder projection weights
    misc_ref,      # (S + 5, H)        rows: pos[0:S], enc_bias, enc_g, enc_b, fin_g, fin_b
    wqkv_ref,      # (L, 3*nH, H, hd)  per-head q/k/v projection weights
    bqkv_ref,      # (L, 3*nH, 1, hd)  per-head q/k/v biases
    wo_ref,        # (L, H, H)         attention output projection
    wff1_ref,      # (L, H, 4H)
    wff2_ref,      # (L, 4H, H)
    lvec_ref,      # (L, 7, 4H)        rows: b_o, ln1_g, ln1_b, b_ff1, b_ff2, ln2_g, ln2_b
    head_ref,      # (2H + 2, H)       rows: w1 | w2_blockdiag_pad | b1 | b2_pad
    out_ref,       # (Bb, S, 2H)       [hidden(0:H) | vir(H) | seg(H+1:H+3) | pad]
    attnw_ref,     # (L, Bb, S, nH*S)  attention probabilities, lane-dense
    *, num_layers, num_heads, head_dim, hidden, seq_len, batch_block):
    H, hd, S, Bb, nH = hidden, head_dim, seq_len, batch_block, num_heads
    M = Bb * S
    f32 = jnp.float32
    scale = 1.0 / float(hd) ** 0.5

    # ---- multi-modal encoder (all Bb elements flattened to (M, Dtot)) ----
    feat = feat_ref[...].reshape(M, feat_ref.shape[-1])
    pos = misc_ref[0:S]
    enc_bias = misc_ref[S:S + 1]
    enc_g, enc_b = misc_ref[S + 1:S + 2], misc_ref[S + 2:S + 3]
    fin_g, fin_b = misc_ref[S + 3:S + 4], misc_ref[S + 4:S + 5]

    x = jnp.dot(feat, enc_w_ref[...], preferred_element_type=f32) + enc_bias
    pos_all = pos if Bb == 1 else jnp.concatenate([pos] * Bb, axis=0)
    x = _layernorm(x + pos_all, enc_g, enc_b)                           # (M, H)

    # ---- transformer layers (static unroll; weights stay in VMEM) --------
    for l in range(num_layers):
        lv = lvec_ref[l]                                                # (7, 4H)
        b_o = lv[0:1, :H]
        ln1_g, ln1_b = lv[1:2, :H], lv[2:3, :H]
        b_ff1 = lv[3:4, :]
        b_ff2 = lv[4:5, :H]
        ln2_g, ln2_b = lv[5:6, :H], lv[6:7, :H]

        # Per-head Q/K/V projections over the flattened (M, H) activations.
        # Head-major weight packing => results at lanes [0, hd), no lane
        # slicing of activations anywhere in the attention.
        qkv_heads = []
        for i in range(3 * nH):
            qkv_heads.append(
                jnp.dot(x, wqkv_ref[l, i], preferred_element_type=f32)
                + bqkv_ref[l, i])                                       # (M, hd)

        ctx_rows = []
        for bl in range(Bb):                                            # per batch element
            r0 = bl * S
            head_ctx, head_probs = [], []
            for h in range(nH):
                qh = qkv_heads[3 * h + 0][r0:r0 + S]
                kh = qkv_heads[3 * h + 1][r0:r0 + S]
                vh = qkv_heads[3 * h + 2][r0:r0 + S]
                # q @ k^T without an explicit transpose
                s = jax.lax.dot_general(qh, kh, (((1,), (1,)), ((), ())),
                                        preferred_element_type=f32) * scale
                s = s - jnp.max(s, axis=-1, keepdims=True)
                p = jnp.exp(s)
                p = p * pl.reciprocal(jnp.sum(p, axis=-1, keepdims=True),
                                      approx=True)
                head_probs.append(p)
                head_ctx.append(jnp.dot(p, vh, preferred_element_type=f32))
            # lane-dense (S, nH*S) store of all heads' probabilities at once
            attnw_ref[l, bl] = jnp.concatenate(head_probs, axis=-1)
            ctx_rows.append(jnp.concatenate(head_ctx, axis=-1))          # (S, H)
        ctx = ctx_rows[0] if Bb == 1 else jnp.concatenate(ctx_rows, axis=0)

        # single output-projection matmul for all heads / all batch elements
        attn_out = jnp.dot(ctx, wo_ref[l], preferred_element_type=f32) + b_o
        x = _layernorm(x + attn_out, ln1_g, ln1_b)

        ff = jnp.dot(x, wff1_ref[l], preferred_element_type=f32) + b_ff1
        ff = jnp.maximum(ff, 0.0)
        ff = jnp.dot(ff, wff2_ref[l], preferred_element_type=f32) + b_ff2
        x = _layernorm(x + ff, ln2_g, ln2_b)

    # ---- final LayerNorm + fused prediction heads -------------------------
    x = _layernorm(x, fin_g, fin_b)                                      # (M, H)

    w1 = head_ref[0:H]                 # (H, H)  [vir_w1 | seg_w1]
    w2 = head_ref[H:2 * H]             # (H, H)  block-diagonal, lane-padded
    b1 = head_ref[2 * H:2 * H + 1]     # (1, H)
    b2 = head_ref[2 * H + 1:2 * H + 2]  # (1, H)  [vir_b2, seg_b2, 0...]
    h1 = jnp.maximum(jnp.dot(x, w1, preferred_element_type=f32) + b1, 0.0)
    raw = jnp.dot(h1, w2, preferred_element_type=f32) + b2               # (M, H)
    lane = jax.lax.broadcasted_iota(jnp.int32, raw.shape, 1)
    heads_out = jnp.where(lane == 0, jax.nn.sigmoid(raw), raw)           # sigmoid on lane 0 only

    slab = jnp.concatenate([x, heads_out], axis=-1)                      # (M, 2H)
    out_ref[...] = slab.reshape(Bb, S, 2 * H)                            # one store


# ----------------------------------------------------------------------------
# Config / params
# ----------------------------------------------------------------------------

class Config:
    hidden_size = 32
    num_layers = 2
    num_attention_heads = 4
    max_sequence_length = 16
    visual_feature_dim = 64
    audio_feature_dim = 32
    text_feature_dim = 48
    engagement_feature_dim = 16


def _lin_params(key, din, dout):
    kw, kb = jax.random.split(key)
    w = jax.random.normal(kw, (din, dout), jnp.float32) * 0.02
    b = jax.random.normal(kb, (dout,), jnp.float32) * 0.02
    return w, b


def init_params(cfg, seed=0):
    key = jax.random.PRNGKey(seed)
    keys = iter(jax.random.split(key, 256))
    H = cfg.hidden_size
    p = {"enc": {}}
    p["enc"]["wv"], p["enc"]["bv"] = _lin_params(next(keys), cfg.visual_feature_dim, H)
    p["enc"]["wa"], p["enc"]["ba"] = _lin_params(next(keys), cfg.audio_feature_dim, H)
    p["enc"]["wt"], p["enc"]["bt"] = _lin_params(next(keys), cfg.text_feature_dim, H)
    p["enc"]["we"], p["enc"]["be"] = _lin_params(next(keys), cfg.engagement_feature_dim, H)
    p["enc"]["pos"] = jax.random.normal(next(keys), (cfg.max_sequence_length, H), jnp.float32)
    p["enc"]["ln_g"] = jnp.ones((H,), jnp.float32)
    p["enc"]["ln_b"] = jnp.zeros((H,), jnp.float32)
    p["layers"] = []
    for _ in range(cfg.num_layers):
        lp = {}
        for name in ("q", "k", "v", "o"):
            lp[f"w{name}"], lp[f"b{name}"] = _lin_params(next(keys), H, H)
        lp["w_ff1"], lp["b_ff1"] = _lin_params(next(keys), H, 4 * H)
        lp["w_ff2"], lp["b_ff2"] = _lin_params(next(keys), 4 * H, H)
        lp["ln1_g"] = jnp.ones((H,), jnp.float32); lp["ln1_b"] = jnp.zeros((H,), jnp.float32)
        lp["ln2_g"] = jnp.ones((H,), jnp.float32); lp["ln2_b"] = jnp.zeros((H,), jnp.float32)
        p["layers"].append(lp)
    p["ln_g"] = jnp.ones((H,), jnp.float32)
    p["ln_b"] = jnp.zeros((H,), jnp.float32)
    p["vir_w1"], p["vir_b1"] = _lin_params(next(keys), H, H // 2)
    p["vir_w2"], p["vir_b2"] = _lin_params(next(keys), H // 2, 1)
    p["seg_w1"], p["seg_b1"] = _lin_params(next(keys), H, H // 2)
    p["seg_w2"], p["seg_b2"] = _lin_params(next(keys), H // 2, 2)
    return p


def pack_params(params, cfg, seq_len):
    """One-time repack of raw params into a handful of kernel-ready blobs."""
    H = cfg.hidden_size
    nH = cfg.num_attention_heads
    hd = H // nH
    enc = params["enc"]
    layers = params["layers"]

    # encoder: row-stacked projection weights (matmul with lane-concatenated features)
    enc_w = jnp.concatenate([enc["wv"], enc["wa"], enc["wt"], enc["we"]], axis=0)
    enc_bias = (enc["bv"] + enc["ba"] + enc["bt"] + enc["be"]).reshape(1, H)
    misc = jnp.concatenate([
        enc["pos"][:seq_len],                                       # rows 0..S-1 (aligned)
        enc_bias,
        enc["ln_g"].reshape(1, H), enc["ln_b"].reshape(1, H),
        params["ln_g"].reshape(1, H), params["ln_b"].reshape(1, H),
    ], axis=0)                                                      # (S+5, H)

    # per-layer, per-head QKV weights/biases (head-major, sublane-clean)
    wqkv_l, bqkv_l = [], []
    for lp in layers:
        ws, bs = [], []
        for h in range(nH):
            for name in ("q", "k", "v"):
                ws.append(lp[f"w{name}"][:, h * hd:(h + 1) * hd])   # (H, hd)
                bs.append(lp[f"b{name}"][h * hd:(h + 1) * hd].reshape(1, hd))
        wqkv_l.append(jnp.stack(ws, axis=0))                        # (3nH, H, hd)
        bqkv_l.append(jnp.stack(bs, axis=0))                        # (3nH, 1, hd)
    wqkv = jnp.stack(wqkv_l, axis=0)                                # (L, 3nH, H, hd)
    bqkv = jnp.stack(bqkv_l, axis=0)                                # (L, 3nH, 1, hd)

    w_o = jnp.stack([lp["wo"] for lp in layers], axis=0)            # (L, H, H)
    w_ff1 = jnp.stack([lp["w_ff1"] for lp in layers], axis=0)       # (L, H, 4H)
    w_ff2 = jnp.stack([lp["w_ff2"] for lp in layers], axis=0)       # (L, 4H, H)

    def pad4h(v):
        return jnp.pad(v.reshape(1, H), ((0, 0), (0, 3 * H)))
    lvecs = jnp.stack([
        jnp.concatenate([
            pad4h(lp["bo"]), pad4h(lp["ln1_g"]), pad4h(lp["ln1_b"]),
            lp["b_ff1"].reshape(1, 4 * H),
            pad4h(lp["b_ff2"]), pad4h(lp["ln2_g"]), pad4h(lp["ln2_b"]),
        ], axis=0) for lp in layers], axis=0)                       # (L, 7, 4H)

    # prediction heads: fused first layer, block-diagonal lane-padded second layer
    head_w1 = jnp.concatenate([params["vir_w1"], params["seg_w1"]], axis=1)   # (H, H)
    head_b1 = jnp.concatenate([params["vir_b1"], params["seg_b1"]], axis=0).reshape(1, H)
    w2_pad = jnp.zeros((H, H), jnp.float32)
    w2_pad = w2_pad.at[:H // 2, 0:1].set(params["vir_w2"])
    w2_pad = w2_pad.at[H // 2:, 1:3].set(params["seg_w2"])
    b2_pad = jnp.zeros((1, H), jnp.float32)
    b2_pad = b2_pad.at[0, 0].set(params["vir_b2"][0])
    b2_pad = b2_pad.at[0, 1:3].set(params["seg_b2"])
    head_blob = jnp.concatenate([head_w1, w2_pad, head_b1, b2_pad], axis=0)   # (2H+2, H)

    return (enc_w, misc, wqkv, bqkv, w_o, w_ff1, w_ff2, lvecs, head_blob)


# ----------------------------------------------------------------------------
# Wrapper
# ----------------------------------------------------------------------------

def viral_clipper_forward(packed_params, cfg, visual, audio, text, engagement,
                          batch_block=None):
    """All feature inputs are (B, S, D_modality) float32.  mask is None."""
    B, S, _ = visual.shape
    H = cfg.hidden_size
    nH = cfg.num_attention_heads
    hd = H // nH
    L = cfg.num_layers

    if batch_block is None:
        # Fold batch into the block, but keep 2 grid steps when possible so
        # both v7x TensorCores get work (on v5e/v6e the extra step is ~0.35us).
        batch_block = B // 2 if (B >= 2 and B % 2 == 0) else 1
    Bb = batch_block
    assert B % Bb == 0
    n_steps = B // Bb

    # one lane-concatenated feature tensor => one input DMA, one encoder matmul
    feats = jnp.concatenate([visual, audio, text, engagement], axis=-1)
    Dtot = feats.shape[-1]

    def rep_spec(arr):
        nd = arr.ndim
        return pl.BlockSpec(tuple(arr.shape), lambda b, _nd=nd: (0,) * _nd)

    in_specs = ([pl.BlockSpec((Bb, S, Dtot), lambda b: (b, 0, 0))]
                + [rep_spec(a) for a in packed_params])

    out_shape = (
        jax.ShapeDtypeStruct((B, S, 2 * H), jnp.float32),          # hidden | vir | seg slab
        jax.ShapeDtypeStruct((L, B, S, nH * S), jnp.float32),      # attention weights
    )
    out_specs = (
        pl.BlockSpec((Bb, S, 2 * H), lambda b: (b, 0, 0)),
        pl.BlockSpec((L, Bb, S, nH * S), lambda b: (0, b, 0, 0)),
    )

    out_slab, attnw = pl.pallas_call(
        functools.partial(_fused_forward_kernel,
                          num_layers=L, num_heads=nH, head_dim=hd,
                          hidden=H, seq_len=S, batch_block=Bb),
        out_shape=out_shape,
        grid=(n_steps,),
        in_specs=in_specs,
        out_specs=out_specs,
        compiler_params=pltpu.CompilerParams(dimension_semantics=("parallel",)),
    )(feats, *packed_params)

    hidden_states = out_slab[:, :, :H]
    virality = out_slab[:, :, H:H + 1]
    segment = out_slab[:, :, H + 1:H + 3]
    attention_weights = [
        attnw[l].reshape(B, S, nH, S).transpose(0, 2, 1, 3) for l in range(L)
    ]
    return {
        "virality_scores": virality,
        "segment_logits": segment,
        "attention_weights": attention_weights,
        "hidden_states": hidden_states,
    }


# ----------------------------------------------------------------------------
# Pure-JAX reference (correctness check only)
# ----------------------------------------------------------------------------

def reference_forward(params, cfg, visual, audio, text, engagement):
    H = cfg.hidden_size
    nH = cfg.num_attention_heads
    hd = H // nH
    B, S, _ = visual.shape
    hp = jax.lax.Precision.HIGHEST
    mm = functools.partial(jnp.dot, precision=hp)

    def ln(x, g, b):
        m = jnp.mean(x, axis=-1, keepdims=True)
        v = jnp.mean(jnp.square(x - m), axis=-1, keepdims=True)
        return (x - m) * jax.lax.rsqrt(v + 1e-5) * g + b

    enc = params["enc"]
    x = (mm(visual, enc["wv"]) + enc["bv"] + mm(audio, enc["wa"]) + enc["ba"]
         + mm(text, enc["wt"]) + enc["bt"] + mm(engagement, enc["we"]) + enc["be"])
    x = x + enc["pos"][:S][None]
    x = ln(x, enc["ln_g"], enc["ln_b"])

    attn_ws = []
    for lp in params["layers"]:
        q = (mm(x, lp["wq"]) + lp["bq"]).reshape(B, S, nH, hd).transpose(0, 2, 1, 3)
        k = (mm(x, lp["wk"]) + lp["bk"]).reshape(B, S, nH, hd).transpose(0, 2, 1, 3)
        v = (mm(x, lp["wv"]) + lp["bv"]).reshape(B, S, nH, hd).transpose(0, 2, 1, 3)
        s = jnp.einsum("bhqd,bhkd->bhqk", q, k, precision=hp) / float(hd) ** 0.5
        p = jax.nn.softmax(s, axis=-1)
        attn_ws.append(p)
        a = jnp.einsum("bhqk,bhkd->bhqd", p, v, precision=hp)
        a = a.transpose(0, 2, 1, 3).reshape(B, S, H)
        a = mm(a, lp["wo"]) + lp["bo"]
        x = ln(x + a, lp["ln1_g"], lp["ln1_b"])
        f = jnp.maximum(mm(x, lp["w_ff1"]) + lp["b_ff1"], 0.0)
        f = mm(f, lp["w_ff2"]) + lp["b_ff2"]
        x = ln(x + f, lp["ln2_g"], lp["ln2_b"])

    x = ln(x, params["ln_g"], params["ln_b"])
    vir = jax.nn.sigmoid(
        mm(jnp.maximum(mm(x, params["vir_w1"]) + params["vir_b1"], 0.0), params["vir_w2"])
        + params["vir_b2"])
    seg = (mm(jnp.maximum(mm(x, params["seg_w1"]) + params["seg_b1"], 0.0), params["seg_w2"])
           + params["seg_b2"])
    return {"virality_scores": vir, "segment_logits": seg,
            "attention_weights": attn_ws, "hidden_states": x}


# ----------------------------------------------------------------------------
# Main
# ----------------------------------------------------------------------------

if __name__ == "__main__":
    cfg = Config()
    B, S = 2, 8

    params = init_params(cfg, seed=0)
    packed = pack_params(params, cfg, S)

    key = jax.random.PRNGKey(0)
    kv, ka, kt, ke = jax.random.split(key, 4)
    visual = jax.random.normal(kv, (B, S, cfg.visual_feature_dim), jnp.float32)
    audio = jax.random.normal(ka, (B, S, cfg.audio_feature_dim), jnp.float32)
    text = jax.random.normal(kt, (B, S, cfg.text_feature_dim), jnp.float32)
    engagement = jax.random.normal(ke, (B, S, cfg.engagement_feature_dim), jnp.float32)

    fwd = jax.jit(lambda p, v, a, t, e: viral_clipper_forward(p, cfg, v, a, t, e))
    out = fwd(packed, visual, audio, text, engagement)
    jax.block_until_ready(out)

    # shape checks
    assert out["virality_scores"].shape == (B, S, 1)
    assert out["segment_logits"].shape == (B, S, 2)
    assert out["hidden_states"].shape == (B, S, cfg.hidden_size)
    assert len(out["attention_weights"]) == cfg.num_layers
    assert out["attention_weights"][0].shape == (B, cfg.num_attention_heads, S, S)
    assert bool(jnp.all(jnp.isfinite(out["virality_scores"])))

    # numeric check against a pure-JAX reference
    ref = reference_forward(params, cfg, visual, audio, text, engagement)
    tol = dict(rtol=1e-2, atol=1e-2)
    assert bool(jnp.allclose(out["hidden_states"], ref["hidden_states"], **tol))
    assert bool(jnp.allclose(out["virality_scores"], ref["virality_scores"], **tol))
    assert bool(jnp.allclose(out["segment_logits"], ref["segment_logits"], **tol))
    for l in range(cfg.num_layers):
        assert bool(jnp.allclose(out["attention_weights"][l],
                                 ref["attention_weights"][l], **tol))

    print("KERNEL_OK")
</pallas_src>

<mosaic_0001>
module attributes {stable_mosaic.version = 11 : i64} {
  func.func @_fused_forward_kernel(%arg0: i32, %arg1: memref<1x8x160xf32, #tpu.memory_space<vmem>>, %arg2: memref<160x32xf32, #tpu.memory_space<vmem>>, %arg3: memref<13x32xf32, #tpu.memory_space<vmem>>, %arg4: memref<2x12x32x8xf32, #tpu.memory_space<vmem>>, %arg5: memref<2x12x1x8xf32, #tpu.memory_space<vmem>>, %arg6: memref<2x32x32xf32, #tpu.memory_space<vmem>>, %arg7: memref<2x32x128xf32, #tpu.memory_space<vmem>>, %arg8: memref<2x128x32xf32, #tpu.memory_space<vmem>>, %arg9: memref<2x7x128xf32, #tpu.memory_space<vmem>>, %arg10: memref<66x32xf32, #tpu.memory_space<vmem>>, %arg11: memref<1x8x64xf32, #tpu.memory_space<vmem>>, %arg12: memref<2x1x8x32xf32, #tpu.memory_space<vmem>>) attributes {dimension_semantics = [#tpu.dimension_semantics<parallel>], iteration_bounds = array<i64: 2>, scalar_prefetch = 0 : i64, scratch_operands = 0 : i64, tpu.core_type = #tpu.core_type<tc>, window_params = [{transform_indices = @transform_0, window_bounds = array<i64: 1, 8, 160>}, {pipeline_mode = #tpu.pipeline_mode<synchronous>, transform_indices = @transform_1, window_bounds = array<i64: 160, 32>}, {pipeline_mode = #tpu.pipeline_mode<synchronous>, transform_indices = @transform_2, window_bounds = array<i64: 13, 32>}, {pipeline_mode = #tpu.pipeline_mode<synchronous>, transform_indices = @transform_3, window_bounds = array<i64: 2, 12, 32, 8>}, {pipeline_mode = #tpu.pipeline_mode<synchronous>, transform_indices = @transform_4, window_bounds = array<i64: 2, 12, 1, 8>}, {pipeline_mode = #tpu.pipeline_mode<synchronous>, transform_indices = @transform_5, window_bounds = array<i64: 2, 32, 32>}, {pipeline_mode = #tpu.pipeline_mode<synchronous>, transform_indices = @transform_6, window_bounds = array<i64: 2, 32, 128>}, {pipeline_mode = #tpu.pipeline_mode<synchronous>, transform_indices = @transform_7, window_bounds = array<i64: 2, 128, 32>}, {pipeline_mode = #tpu.pipeline_mode<synchronous>, transform_indices = @transform_8, window_bounds = array<i64: 2, 7, 128>}, {pipeline_mode = #tpu.pipeline_mode<synchronous>, transform_indices = @transform_9, window_bounds = array<i64: 66, 32>}, {transform_indices = @transform_10, window_bounds = array<i64: 1, 8, 64>}, {transform_indices = @transform_11, window_bounds = array<i64: 2, 1, 8, 32>}]} {
    %c0 = arith.constant 0 : index
    %c0_0 = arith.constant 0 : index
    %c0_1 = arith.constant 0 : index
    %0 = vector.load %arg1[%c0, %c0_0, %c0_1] : memref<1x8x160xf32, #tpu.memory_space<vmem>>, vector<1x8x160xf32>
    %1 = vector.shape_cast %0 : vector<1x8x160xf32> to vector<8x160xf32>
    %c0_2 = arith.constant 0 : index
    %c0_3 = arith.constant 0 : index
    %2 = vector.load %arg3[%c0_2, %c0_3] : memref<13x32xf32, #tpu.memory_space<vmem>>, vector<8x32xf32>
    %c8 = arith.constant 8 : index
    %c0_4 = arith.constant 0 : index
    %3 = vector.load %arg3[%c8, %c0_4] : memref<13x32xf32, #tpu.memory_space<vmem>>, vector<1x32xf32>
    %c9 = arith.constant 9 : index
    %c0_5 = arith.constant 0 : index
    %4 = vector.load %arg3[%c9, %c0_5] : memref<13x32xf32, #tpu.memory_space<vmem>>, vector<1x32xf32>
    %c10 = arith.constant 10 : index
    %c0_6 = arith.constant 0 : index
    %5 = vector.load %arg3[%c10, %c0_6] : memref<13x32xf32, #tpu.memory_space<vmem>>, vector<1x32xf32>
    %c11 = arith.constant 11 : index
    %c0_7 = arith.constant 0 : index
    %6 = vector.load %arg3[%c11, %c0_7] : memref<13x32xf32, #tpu.memory_space<vmem>>, vector<1x32xf32>
    %c12 = arith.constant 12 : index
    %c0_8 = arith.constant 0 : index
    %7 = vector.load %arg3[%c12, %c0_8] : memref<13x32xf32, #tpu.memory_space<vmem>>, vector<1x32xf32>
    %c0_9 = arith.constant 0 : index
    %c0_10 = arith.constant 0 : index
    %8 = vector.load %arg2[%c0_9, %c0_10] : memref<160x32xf32, #tpu.memory_space<vmem>>, vector<160x32xf32>
    %cst = arith.constant dense<0.000000e+00> : vector<8x32xf32>
    %9 = tpu.matmul %1, %8, %cst {dimension_numbers = #tpu.dot_dimension_numbers<[1], [0], [0], [1], [0, 0, 1, 1], [], []>} : vector<8x160xf32>, vector<160x32xf32>, vector<8x32xf32> -> vector<8x32xf32>
    %10 = vector.broadcast %3 : vector<1x32xf32> to vector<8x32xf32>
    %11 = arith.addf %9, %10 : vector<8x32xf32>
    %12 = arith.addf %11, %2 : vector<8x32xf32>
    %cst_11 = arith.constant dense<0.000000e+00> : vector<8xf32>
    %13 = vector.multi_reduction <add>, %12, %cst_11 [1] : vector<8x32xf32> to vector<8xf32>
    %14 = vector.shape_cast %13 : vector<8xf32> to vector<8x1xf32>
    %cst_12 = arith.constant 3.200000e+01 : f32
    %15 = vector.broadcast %cst_12 : f32 to vector<8x1xf32>
    %16 = arith.divf %14, %15 : vector<8x1xf32>
    %17 = vector.broadcast %16 : vector<8x1xf32> to vector<8x32xf32>
    %18 = arith.subf %12, %17 : vector<8x32xf32>
    %19 = arith.mulf %18, %18 : vector<8x32xf32>
    %cst_13 = arith.constant dense<0.000000e+00> : vector<8xf32>
    %20 = vector.multi_reduction <add>, %19, %cst_13 [1] : vector<8x32xf32> to vector<8xf32>
    %21 = vector.shape_cast %20 : vector<8xf32> to vector<8x1xf32>
    %cst_14 = arith.constant 3.200000e+01 : f32
    %22 = vector.broadcast %cst_14 : f32 to vector<8x1xf32>
    %23 = arith.divf %21, %22 : vector<8x1xf32>
    %24 = vector.broadcast %16 : vector<8x1xf32> to vector<8x32xf32>
    %25 = arith.subf %12, %24 : vector<8x32xf32>
    %cst_15 = arith.constant 9.99999974E-6 : f32
    %26 = vector.broadcast %cst_15 : f32 to vector<8x1xf32>
    %27 = arith.addf %23, %26 : vector<8x1xf32>
    %28 = math.rsqrt %27 : vector<8x1xf32>
    %29 = vector.broadcast %28 : vector<8x1xf32> to vector<8x32xf32>
    %30 = arith.mulf %25, %29 : vector<8x32xf32>
    %31 = vector.broadcast %4 : vector<1x32xf32> to vector<8x32xf32>
    %32 = arith.mulf %30, %31 : vector<8x32xf32>
    %33 = vector.broadcast %5 : vector<1x32xf32> to vector<8x32xf32>
    %34 = arith.addf %32, %33 : vector<8x32xf32>
    %c0_16 = arith.constant 0 : index
    %c0_17 = arith.constant 0 : index
    %c0_18 = arith.constant 0 : index
    %35 = vector.load %arg9[%c0_16, %c0_17, %c0_18] : memref<2x7x128xf32, #tpu.memory_space<vmem>>, vector<1x7x128xf32>
    %36 = vector.shape_cast %35 : vector<1x7x128xf32> to vector<7x128xf32>
    %37 = vector.extract_strided_slice %36 {offsets = [0, 0], sizes = [1, 32], strides = [1, 1]} : vector<7x128xf32> to vector<1x32xf32>
    %38 = vector.extract_strided_slice %36 {offsets = [1, 0], sizes = [1, 32], strides = [1, 1]} : vector<7x128xf32> to vector<1x32xf32>
    %39 = vector.extract_strided_slice %36 {offsets = [2, 0], sizes = [1, 32], strides = [1, 1]} : vector<7x128xf32> to vector<1x32xf32>
    %40 = vector.extract_strided_slice %36 {offsets = [3, 0], sizes = [1, 128], strides = [1, 1]} : vector<7x128xf32> to vector<1x128xf32>
    %41 = vector.extract_strided_slice %36 {offsets = [4, 0], sizes = [1, 32], strides = [1, 1]} : vector<7x128xf32> to vector<1x32xf32>
    %42 = vector.extract_strided_slice %36 {offsets = [5, 0], sizes = [1, 32], strides = [1, 1]} : vector<7x128xf32> to vector<1x32xf32>
    %43 = vector.extract_strided_slice %36 {offsets = [6, 0], sizes = [1, 32], strides = [1, 1]} : vector<7x128xf32> to vector<1x32xf32>
    %c0_19 = arith.constant 0 : index
    %c0_20 = arith.constant 0 : index
    %c0_21 = arith.constant 0 : index
    %c0_22 = arith.constant 0 : index
    %44 = vector.load %arg4[%c0_19, %c0_20, %c0_21, %c0_22] : memref<2x12x32x8xf32, #tpu.memory_space<vmem>>, vector<1x1x32x8xf32>
    %45 = vector.shape_cast %44 : vector<1x1x32x8xf32> to vector<32x8xf32>
    %cst_23 = arith.constant dense<0.000000e+00> : vector<8x8xf32>
    %46 = tpu.matmul %34, %45, %cst_23 {dimension_numbers = #tpu.dot_dimension_numbers<[1], [0], [0], [1], [0, 0, 1, 1], [], []>} : vector<8x32xf32>, vector<32x8xf32>, vector<8x8xf32> -> vector<8x8xf32>
    %c0_24 = arith.constant 0 : index
    %c0_25 = arith.constant 0 : index
    %c0_26 = arith.constant 0 : index
    %c0_27 = arith.constant 0 : index
    %47 = vector.load %arg5[%c0_24, %c0_25, %c0_26, %c0_27] : memref<2x12x1x8xf32, #tpu.memory_space<vmem>>, vector<1x1x1x8xf32>
    %48 = vector.shape_cast %47 : vector<1x1x1x8xf32> to vector<1x8xf32>
    %49 = vector.broadcast %48 : vector<1x8xf32> to vector<8x8xf32>
    %50 = arith.addf %46, %49 : vector<8x8xf32>
    %c0_28 = arith.constant 0 : index
    %c1 = arith.constant 1 : index
    %c0_29 = arith.constant 0 : index
    %c0_30 = arith.constant 0 : index
    %51 = vector.load %arg4[%c0_28, %c1, %c0_29, %c0_30] : memref<2x12x32x8xf32, #tpu.memory_space<vmem>>, vector<1x1x32x8xf32>
    %52 = vector.shape_cast %51 : vector<1x1x32x8xf32> to vector<32x8xf32>
    %cst_31 = arith.constant dense<0.000000e+00> : vector<8x8xf32>
    %53 = tpu.matmul %34, %52, %cst_31 {dimension_numbers = #tpu.dot_dimension_numbers<[1], [0], [0], [1], [0, 0, 1, 1], [], []>} : vector<8x32xf32>, vector<32x8xf32>, vector<8x8xf32> -> vector<8x8xf32>
    %c0_32 = arith.constant 0 : index
    %c1_33 = arith.constant 1 : index
    %c0_34 = arith.constant 0 : index
    %c0_35 = arith.constant 0 : index
    %54 = vector.load %arg5[%c0_32, %c1_33, %c0_34, %c0_35] : memref<2x12x1x8xf32, #tpu.memory_space<vmem>>, vector<1x1x1x8xf32>
    %55 = vector.shape_cast %54 : vector<1x1x1x8xf32> to vector<1x8xf32>
    %56 = vector.broadcast %55 : vector<1x8xf32> to vector<8x8xf32>
    %57 = arith.addf %53, %56 : vector<8x8xf32>
    %c0_36 = arith.constant 0 : index
    %c2 = arith.constant 2 : index
    %c0_37 = arith.constant 0 : index
    %c0_38 = arith.constant 0 : index
    %58 = vector.load %arg4[%c0_36, %c2, %c0_37, %c0_38] : memref<2x12x32x8xf32, #tpu.memory_space<vmem>>, vector<1x1x32x8xf32>
    %59 = vector.shape_cast %58 : vector<1x1x32x8xf32> to vector<32x8xf32>
    %cst_39 = arith.constant dense<0.000000e+00> : vector<8x8xf32>
    %60 = tpu.matmul %34, %59, %cst_39 {dimension_numbers = #tpu.dot_dimension_numbers<[1], [0], [0], [1], [0, 0, 1, 1], [], []>} : vector<8x32xf32>, vector<32x8xf32>, vector<8x8xf32> -> vector<8x8xf32>
    %c0_40 = arith.constant 0 : index
    %c2_41 = arith.constant 2 : index
    %c0_42 = arith.constant 0 : index
    %c0_43 = arith.constant 0 : index
    %61 = vector.load %arg5[%c0_40, %c2_41, %c0_42, %c0_43] : memref<2x12x1x8xf32, #tpu.memory_space<vmem>>, vector<1x1x1x8xf32>
    %62 = vector.shape_cast %61 : vector<1x1x1x8xf32> to vector<1x8xf32>
    %63 = vector.broadcast %62 : vector<1x8xf32> to vector<8x8xf32>
    %64 = arith.addf %60, %63 : vector<8x8xf32>
    %c0_44 = arith.constant 0 : index
    %c3 = arith.constant 3 : index
    %c0_45 = arith.constant 0 : index
    %c0_46 = arith.constant 0 : index
    %65 = vector.load %arg4[%c0_44, %c3, %c0_45, %c0_46] : memref<2x12x32x8xf32, #tpu.memory_space<vmem>>, vector<1x1x32x8xf32>
    %66 = vector.shape_cast %65 : vector<1x1x32x8xf32> to vector<32x8xf32>
    %cst_47 = arith.constant dense<0.000000e+00> : vector<8x8xf32>
    %67 = tpu.matmul %34, %66, %cst_47 {dimension_numbers = #tpu.dot_dimension_numbers<[1], [0], [0], [1], [0, 0, 1, 1], [], []>} : vector<8x32xf32>, vector<32x8xf32>, vector<8x8xf32> -> vector<8x8xf32>
    %c0_48 = arith.constant 0 : index
    %c3_49 = arith.constant 3 : index
    %c0_50 = arith.constant 0 : index
    %c0_51 = arith.constant 0 : index
    %68 = vector.load %arg5[%c0_48, %c3_49, %c0_50, %c0_51] : memref<2x12x1x8xf32, #tpu.memory_space<vmem>>, vector<1x1x1x8xf32>
    %69 = vector.shape_cast %68 : vector<1x1x1x8xf32> to vector<1x8xf32>
    %70 = vector.broadcast %69 : vector<1x8xf32> to vector<8x8xf32>
    %71 = arith.addf %67, %70 : vector<8x8xf32>
    %c0_52 = arith.constant 0 : index
    %c4 = arith.constant 4 : index
    %c0_53 = arith.constant 0 : index
    %c0_54 = arith.constant 0 : index
    %72 = vector.load %arg4[%c0_52, %c4, %c0_53, %c0_54] : memref<2x12x32x8xf32, #tpu.memory_space<vmem>>, vector<1x1x32x8xf32>
    %73 = vector.shape_cast %72 : vector<1x1x32x8xf32> to vector<32x8xf32>
    %cst_55 = arith.constant dense<0.000000e+00> : vector<8x8xf32>
    %74 = tpu.matmul %34, %73, %cst_55 {dimension_numbers = #tpu.dot_dimension_numbers<[1], [0], [0], [1], [0, 0, 1, 1], [], []>} : vector<8x32xf32>, vector<32x8xf32>, vector<8x8xf32> -> vector<8x8xf32>
    %c0_56 = arith.constant 0 : index
    %c4_57 = arith.constant 4 : index
    %c0_58 = arith.constant 0 : index
    %c0_59 = arith.constant 0 : index
    %75 = vector.load %arg5[%c0_56, %c4_57, %c0_58, %c0_59] : memref<2x12x1x8xf32, #tpu.memory_space<vmem>>, vector<1x1x1x8xf32>
    %76 = vector.shape_cast %75 : vector<1x1x1x8xf32> to vector<1x8xf32>
    %77 = vector.broadcast %76 : vector<1x8xf32> to vector<8x8xf32>
    %78 = arith.addf %74, %77 : vector<8x8xf32>
    %c0_60 = arith.constant 0 : index
    %c5 = arith.constant 5 : index
    %c0_61 = arith.constant 0 : index
    %c0_62 = arith.constant 0 : index
    %79 = vector.load %arg4[%c0_60, %c5, %c0_61, %c0_62] : memref<2x12x32x8xf32, #tpu.memory_space<vmem>>, vector<1x1x32x8xf32>
    %80 = vector.shape_cast %79 : vector<1x1x32x8xf32> to vector<32x8xf32>
    %cst_63 = arith.constant dense<0.000000e+00> : vector<8x8xf32>
    %81 = tpu.matmul %34, %80, %cst_63 {dimension_numbers = #tpu.dot_dimension_numbers<[1], [0], [0], [1], [0, 0, 1, 1], [], []>} : vector<8x32xf32>, vector<32x8xf32>, vector<8x8xf32> -> vector<8x8xf32>
    %c0_64 = arith.constant 0 : index
    %c5_65 = arith.constant 5 : index
    %c0_66 = arith.constant 0 : index
    %c0_67 = arith.constant 0 : index
    %82 = vector.load %arg5[%c0_64, %c5_65, %c0_66, %c0_67] : memref<2x12x1x8xf32, #tpu.memory_space<vmem>>, vector<1x1x1x8xf32>
    %83 = vector.shape_cast %82 : vector<1x1x1x8xf32> to vector<1x8xf32>
    %84 = vector.broadcast %83 : vector<1x8xf32> to vector<8x8xf32>
    %85 = arith.addf %81, %84 : vector<8x8xf32>
    %c0_68 = arith.constant 0 : index
    %c6 = arith.constant 6 : index
    %c0_69 = arith.constant 0 : index
    %c0_70 = arith.constant 0 : index
    %86 = vector.load %arg4[%c0_68, %c6, %c0_69, %c0_70] : memref<2x12x32x8xf32, #tpu.memory_space<vmem>>, vector<1x1x32x8xf32>
    %87 = vector.shape_cast %86 : vector<1x1x32x8xf32> to vector<32x8xf32>
    %cst_71 = arith.constant dense<0.000000e+00> : vector<8x8xf32>
    %88 = tpu.matmul %34, %87, %cst_71 {dimension_numbers = #tpu.dot_dimension_numbers<[1], [0], [0], [1], [0, 0, 1, 1], [], []>} : vector<8x32xf32>, vector<32x8xf32>, vector<8x8xf32> -> vector<8x8xf32>
    %c0_72 = arith.constant 0 : index
    %c6_73 = arith.constant 6 : index
    %c0_74 = arith.constant 0 : index
    %c0_75 = arith.constant 0 : index
    %89 = vector.load %arg5[%c0_72, %c6_73, %c0_74, %c0_75] : memref<2x12x1x8xf32, #tpu.memory_space<vmem>>, vector<1x1x1x8xf32>
    %90 = vector.shape_cast %89 : vector<1x1x1x8xf32> to vector<1x8xf32>
    %91 = vector.broadcast %90 : vector<1x8xf32> to vector<8x8xf32>
    %92 = arith.addf %88, %91 : vector<8x8xf32>
    %c0_76 = arith.constant 0 : index
    %c7 = arith.constant 7 : index
    %c0_77 = arith.constant 0 : index
    %c0_78 = arith.constant 0 : index
    %93 = vector.load %arg4[%c0_76, %c7, %c0_77, %c0_78] : memref<2x12x32x8xf32, #tpu.memory_space<vmem>>, vector<1x1x32x8xf32>
    %94 = vector.shape_cast %93 : vector<1x1x32x8xf32> to vector<32x8xf32>
    %cst_79 = arith.constant dense<0.000000e+00> : vector<8x8xf32>
    %95 = tpu.matmul %34, %94, %cst_79 {dimension_numbers = #tpu.dot_dimension_numbers<[1], [0], [0], [1], [0, 0, 1, 1], [], []>} : vector<8x32xf32>, vector<32x8xf32>, vector<8x8xf32> -> vector<8x8xf32>
    %c0_80 = arith.constant 0 : index
    %c7_81 = arith.constant 7 : index
    %c0_82 = arith.constant 0 : index
    %c0_83 = arith.constant 0 : index
    %96 = vector.load %arg5[%c0_80, %c7_81, %c0_82, %c0_83] : memref<2x12x1x8xf32, #tpu.memory_space<vmem>>, vector<1x1x1x8xf32>
    %97 = vector.shape_cast %96 : vector<1x1x1x8xf32> to vector<1x8xf32>
    %98 = vector.broadcast %97 : vector<1x8xf32> to vector<8x8xf32>
    %99 = arith.addf %95, %98 : vector<8x8xf32>
    %c0_84 = arith.constant 0 : index
    %c8_85 = arith.constant 8 : index
    %c0_86 = arith.constant 0 : index
    %c0_87 = arith.constant 0 : index
    %100 = vector.load %arg4[%c0_84, %c8_85, %c0_86, %c0_87] : memref<2x12x32x8xf32, #tpu.memory_space<vmem>>, vector<1x1x32x8xf32>
    %101 = vector.shape_cast %100 : vector<1x1x32x8xf32> to vector<32x8xf32>
    %cst_88 = arith.constant dense<0.000000e+00> : vector<8x8xf32>
    %102 = tpu.matmul %34, %101, %cst_88 {dimension_numbers = #tpu.dot_dimension_numbers<[1], [0], [0], [1], [0, 0, 1, 1], [], []>} : vector<8x32xf32>, vector<32x8xf32>, vector<8x8xf32> -> vector<8x8xf32>
    %c0_89 = arith.constant 0 : index
    %c8_90 = arith.constant 8 : index
    %c0_91 = arith.constant 0 : index
    %c0_92 = arith.constant 0 : index
    %103 = vector.load %arg5[%c0_89, %c8_90, %c0_91, %c0_92] : memref<2x12x1x8xf32, #tpu.memory_space<vmem>>, vector<1x1x1x8xf32>
    %104 = vector.shape_cast %103 : vector<1x1x1x8xf32> to vector<1x8xf32>
    %105 = vector.broadcast %104 : vector<1x8xf32> to vector<8x8xf32>
    %106 = arith.addf %102, %105 : vector<8x8xf32>
    %c0_93 = arith.constant 0 : index
    %c9_94 = arith.constant 9 : index
    %c0_95 = arith.constant 0 : index
    %c0_96 = arith.constant 0 : index
    %107 = vector.load %arg4[%c0_93, %c9_94, %c0_95, %c0_96] : memref<2x12x32x8xf32, #tpu.memory_space<vmem>>, vector<1x1x32x8xf32>
    %108 = vector.shape_cast %107 : vector<1x1x32x8xf32> to vector<32x8xf32>
    %cst_97 = arith.constant dense<0.000000e+00> : vector<8x8xf32>
    %109 = tpu.matmul %34, %108, %cst_97 {dimension_numbers = #tpu.dot_dimension_numbers<[1], [0], [0], [1], [0, 0, 1, 1], [], []>} : vector<8x32xf32>, vector<32x8xf32>, vector<8x8xf32> -> vector<8x8xf32>
    %c0_98 = arith.constant 0 : index
    %c9_99 = arith.constant 9 : index
    %c0_100 = arith.constant 0 : index
    %c0_101 = arith.constant 0 : index
    %110 = vector.load %arg5[%c0_98, %c9_99, %c0_100, %c0_101] : memref<2x12x1x8xf32, #tpu.memory_space<vmem>>, vector<1x1x1x8xf32>
    %111 = vector.shape_cast %110 : vector<1x1x1x8xf32> to vector<1x8xf32>
    %112 = vector.broadcast %111 : vector<1x8xf32> to vector<8x8xf32>
    %113 = arith.addf %109, %112 : vector<8x8xf32>
    %c0_102 = arith.constant 0 : index
    %c10_103 = arith.constant 10 : index
    %c0_104 = arith.constant 0 : index
    %c0_105 = arith.constant 0 : index
    %114 = vector.load %arg4[%c0_102, %c10_103, %c0_104, %c0_105] : memref<2x12x32x8xf32, #tpu.memory_space<vmem>>, vector<1x1x32x8xf32>
    %115 = vector.shape_cast %114 : vector<1x1x32x8xf32> to vector<32x8xf32>
    %cst_106 = arith.constant dense<0.000000e+00> : vector<8x8xf32>
    %116 = tpu.matmul %34, %115, %cst_106 {dimension_numbers = #tpu.dot_dimension_numbers<[1], [0], [0], [1], [0, 0, 1, 1], [], []>} : vector<8x32xf32>, vector<32x8xf32>, vector<8x8xf32> -> vector<8x8xf32>
    %c0_107 = arith.constant 0 : index
    %c10_108 = arith.constant 10 : index
    %c0_109 = arith.constant 0 : index
    %c0_110 = arith.constant 0 : index
    %117 = vector.load %arg5[%c0_107, %c10_108, %c0_109, %c0_110] : memref<2x12x1x8xf32, #tpu.memory_space<vmem>>, vector<1x1x1x8xf32>
    %118 = vector.shape_cast %117 : vector<1x1x1x8xf32> to vector<1x8xf32>
    %119 = vector.broadcast %118 : vector<1x8xf32> to vector<8x8xf32>
    %120 = arith.addf %116, %119 : vector<8x8xf32>
    %c0_111 = arith.constant 0 : index
    %c11_112 = arith.constant 11 : index
    %c0_113 = arith.constant 0 : index
    %c0_114 = arith.constant 0 : index
    %121 = vector.load %arg4[%c0_111, %c11_112, %c0_113, %c0_114] : memref<2x12x32x8xf32, #tpu.memory_space<vmem>>, vector<1x1x32x8xf32>
    %122 = vector.shape_cast %121 : vector<1x1x32x8xf32> to vector<32x8xf32>
    %cst_115 = arith.constant dense<0.000000e+00> : vector<8x8xf32>
    %123 = tpu.matmul %34, %122, %cst_115 {dimension_numbers = #tpu.dot_dimension_numbers<[1], [0], [0], [1], [0, 0, 1, 1], [], []>} : vector<8x32xf32>, vector<32x8xf32>, vector<8x8xf32> -> vector<8x8xf32>
    %c0_116 = arith.constant 0 : index
    %c11_117 = arith.constant 11 : index
    %c0_118 = arith.constant 0 : index
    %c0_119 = arith.constant 0 : index
    %124 = vector.load %arg5[%c0_116, %c11_117, %c0_118, %c0_119] : memref<2x12x1x8xf32, #tpu.memory_space<vmem>>, vector<1x1x1x8xf32>
    %125 = vector.shape_cast %124 : vector<1x1x1x8xf32> to vector<1x8xf32>
    %126 = vector.broadcast %125 : vector<1x8xf32> to vector<8x8xf32>
    %127 = arith.addf %123, %126 : vector<8x8xf32>
    %cst_120 = arith.constant dense<0.000000e+00> : vector<8x8xf32>
    %128 = tpu.matmul %50, %57, %cst_120 {dimension_numbers = #tpu.dot_dimension_numbers<[1], [1], [0], [0], [0, 0, 1, 0], [], []>} : vector<8x8xf32>, vector<8x8xf32>, vector<8x8xf32> -> vector<8x8xf32>
    %cst_121 = arith.constant 0.353553385 : f32
    %129 = vector.broadcast %cst_121 : f32 to vector<8x8xf32>
    %130 = arith.mulf %128, %129 : vector<8x8xf32>
    %cst_122 = arith.constant dense<0xFF800000> : vector<8xf32>
    %131 = vector.multi_reduction <maximumf>, %130, %cst_122 [1] : vector<8x8xf32> to vector<8xf32>
    %132 = vector.shape_cast %131 : vector<8xf32> to vector<8x1xf32>
    %133 = vector.broadcast %132 : vector<8x1xf32> to vector<8x8xf32>
    %134 = arith.subf %130, %133 : vector<8x8xf32>
    %135 = math.exp %134 : vector<8x8xf32>
    %cst_123 = arith.constant dense<0.000000e+00> : vector<8xf32>
    %136 = vector.multi_reduction <add>, %135, %cst_123 [1] : vector<8x8xf32> to vector<8xf32>
    %137 = vector.shape_cast %136 : vector<8xf32> to vector<8x1xf32>
    %138 = tpu.reciprocal %137 {approx = true} : vector<8x1xf32> -> vector<8x1xf32>
    %139 = vector.broadcast %138 : vector<8x1xf32> to vector<8x8xf32>
    %140 = arith.mulf %135, %139 : vector<8x8xf32>
    %cst_124 = arith.constant dense<0.000000e+00> : vector<8x8xf32>
    %141 = tpu.matmul %140, %64, %cst_124 {dimension_numbers = #tpu.dot_dimension_numbers<[1], [0], [0], [1], [0, 0, 1, 1], [], []>} : vector<8x8xf32>, vector<8x8xf32>, vector<8x8xf32> -> vector<8x8xf32>
    %cst_125 = arith.constant dense<0.000000e+00> : vector<8x8xf32>
    %142 = tpu.matmul %71, %78, %cst_125 {dimension_numbers = #tpu.dot_dimension_numbers<[1], [1], [0], [0], [0, 0, 1, 0], [], []>} : vector<8x8xf32>, vector<8x8xf32>, vector<8x8xf32> -> vector<8x8xf32>
    %cst_126 = arith.constant 0.353553385 : f32
    %143 = vector.broadcast %cst_126 : f32 to vector<8x8xf32>
    %144 = arith.mulf %142, %143 : vector<8x8xf32>
    %cst_127 = arith.constant dense<0xFF800000> : vector<8xf32>
    %145 = vector.multi_reduction <maximumf>, %144, %cst_127 [1] : vector<8x8xf32> to vector<8xf32>
    %146 = vector.shape_cast %145 : vector<8xf32> to vector<8x1xf32>
    %147 = vector.broadcast %146 : vector<8x1xf32> to vector<8x8xf32>
    %148 = arith.subf %144, %147 : vector<8x8xf32>
    %149 = math.exp %148 : vector<8x8xf32>
    %cst_128 = arith.constant dense<0.000000e+00> : vector<8xf32>
    %150 = vector.multi_reduction <add>, %149, %cst_128 [1] : vector<8x8xf32> to vector<8xf32>
    %151 = vector.shape_cast %150 : vector<8xf32> to vector<8x1xf32>
    %152 = tpu.reciprocal %151 {approx = true} : vector<8x1xf32> -> vector<8x1xf32>
    %153 = vector.broadcast %152 : vector<8x1xf32> to vector<8x8xf32>
    %154 = arith.mulf %149, %153 : vector<8x8xf32>
    %cst_129 = arith.constant dense<0.000000e+00> : vector<8x8xf32>
    %155 = tpu.matmul %154, %85, %cst_129 {dimension_numbers = #tpu.dot_dimension_numbers<[1], [0], [0], [1], [0, 0, 1, 1], [], []>} : vector<8x8xf32>, vector<8x8xf32>, vector<8x8xf32> -> vector<8x8xf32>
    %cst_130 = arith.constant dense<0.000000e+00> : vector<8x8xf32>
    %156 = tpu.matmul %92, %99, %cst_130 {dimension_numbers = #tpu.dot_dimension_numbers<[1], [1], [0], [0], [0, 0, 1, 0], [], []>} : vector<8x8xf32>, vector<8x8xf32>, vector<8x8xf32> -> vector<8x8xf32>
    %cst_131 = arith.constant 0.353553385 : f32
    %157 = vector.broadcast %cst_131 : f32 to vector<8x8xf32>
    %158 = arith.mulf %156, %157 : vector<8x8xf32>
    %cst_132 = arith.constant dense<0xFF800000> : vector<8xf32>
    %159 = vector.multi_reduction <maximumf>, %158, %cst_132 [1] : vector<8x8xf32> to vector<8xf32>
    %160 = vector.shape_cast %159 : vector<8xf32> to vector<8x1xf32>
    %161 = vector.broadcast %160 : vector<8x1xf32> to vector<8x8xf32>
    %162 = arith.subf %158, %161 : vector<8x8xf32>
    %163 = math.exp %162 : vector<8x8xf32>
    %cst_133 = arith.constant dense<0.000000e+00> : vector<8xf32>
    %164 = vector.multi_reduction <add>, %163, %cst_133 [1] : vector<8x8xf32> to vector<8xf32>
    %165 = vector.shape_cast %164 : vector<8xf32> to vector<8x1xf32>
    %166 = tpu.reciprocal %165 {approx = true} : vector<8x1xf32> -> vector<8x1xf32>
    %167 = vector.broadcast %166 : vector<8x1xf32> to vector<8x8xf32>
    %168 = arith.mulf %163, %167 : vector<8x8xf32>
    %cst_134 = arith.constant dense<0.000000e+00> : vector<8x8xf32>
    %169 = tpu.matmul %168, %106, %cst_134 {dimension_numbers = #tpu.dot_dimension_numbers<[1], [0], [0], [1], [0, 0, 1, 1], [], []>} : vector<8x8xf32>, vector<8x8xf32>, vector<8x8xf32> -> vector<8x8xf32>
    %cst_135 = arith.constant dense<0.000000e+00> : vector<8x8xf32>
    %170 = tpu.matmul %113, %120, %cst_135 {dimension_numbers = #tpu.dot_dimension_numbers<[1], [1], [0], [0], [0, 0, 1, 0], [], []>} : vector<8x8xf32>, vector<8x8xf32>, vector<8x8xf32> -> vector<8x8xf32>
    %cst_136 = arith.constant 0.353553385 : f32
    %171 = vector.broadcast %cst_136 : f32 to vector<8x8xf32>
    %172 = arith.mulf %170, %171 : vector<8x8xf32>
    %cst_137 = arith.constant dense<0xFF800000> : vector<8xf32>
    %173 = vector.multi_reduction <maximumf>, %172, %cst_137 [1] : vector<8x8xf32> to vector<8xf32>
    %174 = vector.shape_cast %173 : vector<8xf32> to vector<8x1xf32>
    %175 = vector.broadcast %174 : vector<8x1xf32> to vector<8x8xf32>
    %176 = arith.subf %172, %175 : vector<8x8xf32>
    %177 = math.exp %176 : vector<8x8xf32>
    %cst_138 = arith.constant dense<0.000000e+00> : vector<8xf32>
    %178 = vector.multi_reduction <add>, %177, %cst_138 [1] : vector<8x8xf32> to vector<8xf32>
    %179 = vector.shape_cast %178 : vector<8xf32> to vector<8x1xf32>
    %180 = tpu.reciprocal %179 {approx = true} : vector<8x1xf32> -> vector<8x1xf32>
    %181 = vector.broadcast %180 : vector<8x1xf32> to vector<8x8xf32>
    %182 = arith.mulf %177, %181 : vector<8x8xf32>
    %cst_139 = arith.constant dense<0.000000e+00> : vector<8x8xf32>
    %183 = tpu.matmul %182, %127, %cst_139 {dimension_numbers = #tpu.dot_dimension_numbers<[1], [0], [0], [1], [0, 0, 1, 1], [], []>} : vector<8x8xf32>, vector<8x8xf32>, vector<8x8xf32> -> vector<8x8xf32>
    %184 = tpu.concatenate %140, %154, %168, %182 in 1 : vector<8x8xf32>, vector<8x8xf32>, vector<8x8xf32>, vector<8x8xf32> -> vector<8x32xf32>
    %c0_140 = arith.constant 0 : index
    %c0_141 = arith.constant 0 : index
    %c0_142 = arith.constant 0 : index
    %c0_143 = arith.constant 0 : index
    %185 = vector.load %arg12[%c0_140, %c0_141, %c0_142, %c0_143] : memref<2x1x8x32xf32, #tpu.memory_space<vmem>>, vector<1x1x8x32xf32>
    %186 = vector.shape_cast %185 : vector<1x1x8x32xf32> to vector<8x32xf32>
    %187 = vector.shape_cast %184 : vector<8x32xf32> to vector<1x1x8x32xf32>
    tpu.vector_store %arg12[%c0_140, %c0_141, %c0_142, %c0_143], %187 {strides = array<i32>} : memref<2x1x8x32xf32, #tpu.memory_space<vmem>>, vector<1x1x8x32xf32>,
    %188 = tpu.concatenate %141, %155, %169, %183 in 1 : vector<8x8xf32>, vector<8x8xf32>, vector<8x8xf32>, vector<8x8xf32> -> vector<8x32xf32>
    %c0_144 = arith.constant 0 : index
    %c0_145 = arith.constant 0 : index
    %c0_146 = arith.constant 0 : index
    %189 = vector.load %arg6[%c0_144, %c0_145, %c0_146] : memref<2x32x32xf32, #tpu.memory_space<vmem>>, vector<1x32x32xf32>
    %190 = vector.shape_cast %189 : vector<1x32x32xf32> to vector<32x32xf32>
    %cst_147 = arith.constant dense<0.000000e+00> : vector<8x32xf32>
    %191 = tpu.matmul %188, %190, %cst_147 {dimension_numbers = #tpu.dot_dimension_numbers<[1], [0], [0], [1], [0, 0, 1, 1], [], []>} : vector<8x32xf32>, vector<32x32xf32>, vector<8x32xf32> -> vector<8x32xf32>
    %192 = vector.broadcast %37 : vector<1x32xf32> to vector<8x32xf32>
    %193 = arith.addf %191, %192 : vector<8x32xf32>
    %194 = arith.addf %34, %193 : vector<8x32xf32>
    %cst_148 = arith.constant dense<0.000000e+00> : vector<8xf32>
    %195 = vector.multi_reduction <add>, %194, %cst_148 [1] : vector<8x32xf32> to vector<8xf32>
    %196 = vector.shape_cast %195 : vector<8xf32> to vector<8x1xf32>
    %cst_149 = arith.constant 3.200000e+01 : f32
    %197 = vector.broadcast %cst_149 : f32 to vector<8x1xf32>
    %198 = arith.divf %196, %197 : vector<8x1xf32>
    %199 = vector.broadcast %198 : vector<8x1xf32> to vector<8x32xf32>
    %200 = arith.subf %194, %199 : vector<8x32xf32>
    %201 = arith.mulf %200, %200 : vector<8x32xf32>
    %cst_150 = arith.constant dense<0.000000e+00> : vector<8xf32>
    %202 = vector.multi_reduction <add>, %201, %cst_150 [1] : vector<8x32xf32> to vector<8xf32>
    %203 = vector.shape_cast %202 : vector<8xf32> to vector<8x1xf32>
    %cst_151 = arith.constant 3.200000e+01 : f32
    %204 = vector.broadcast %cst_151 : f32 to vector<8x1xf32>
    %205 = arith.divf %203, %204 : vector<8x1xf32>
    %206 = vector.broadcast %198 : vector<8x1xf32> to vector<8x32xf32>
    %207 = arith.subf %194, %206 : vector<8x32xf32>
    %cst_152 = arith.constant 9.99999974E-6 : f32
    %208 = vector.broadcast %cst_152 : f32 to vector<8x1xf32>
    %209 = arith.addf %205, %208 : vector<8x1xf32>
    %210 = math.rsqrt %209 : vector<8x1xf32>
    %211 = vector.broadcast %210 : vector<8x1xf32> to vector<8x32xf32>
    %212 = arith.mulf %207, %211 : vector<8x32xf32>
    %213 = vector.broadcast %38 : vector<1x32xf32> to vector<8x32xf32>
    %214 = arith.mulf %212, %213 : vector<8x32xf32>
    %215 = vector.broadcast %39 : vector<1x32xf32> to vector<8x32xf32>
    %216 = arith.addf %214, %215 : vector<8x32xf32>
    %c0_153 = arith.constant 0 : index
    %c0_154 = arith.constant 0 : index
    %c0_155 = arith.constant 0 : index
    %217 = vector.load %arg7[%c0_153, %c0_154, %c0_155] : memref<2x32x128xf32, #tpu.memory_space<vmem>>, vector<1x32x128xf32>
    %218 = vector.shape_cast %217 : vector<1x32x128xf32> to vector<32x128xf32>
    %cst_156 = arith.constant dense<0.000000e+00> : vector<8x128xf32>
    %219 = tpu.matmul %216, %218, %cst_156 {dimension_numbers = #tpu.dot_dimension_numbers<[1], [0], [0], [1], [0, 0, 1, 1], [], []>} : vector<8x32xf32>, vector<32x128xf32>, vector<8x128xf32> -> vector<8x128xf32>
    %220 = vector.broadcast %40 : vector<1x128xf32> to vector<8x128xf32>
    %221 = arith.addf %219, %220 : vector<8x128xf32>
    %cst_157 = arith.constant 0.000000e+00 : f32
    %222 = vector.broadcast %cst_157 : f32 to vector<8x128xf32>
    %223 = arith.maximumf %221, %222 : vector<8x128xf32>
    %c0_158 = arith.constant 0 : index
    %c0_159 = arith.constant 0 : index
    %c0_160 = arith.constant 0 : index
    %224 = vector.load %arg8[%c0_158, %c0_159, %c0_160] : memref<2x128x32xf32, #tpu.memory_space<vmem>>, vector<1x128x32xf32>
    %225 = vector.shape_cast %224 : vector<1x128x32xf32> to vector<128x32xf32>
    %cst_161 = arith.constant dense<0.000000e+00> : vector<8x32xf32>
    %226 = tpu.matmul %223, %225, %cst_161 {dimension_numbers = #tpu.dot_dimension_numbers<[1], [0], [0], [1], [0, 0, 1, 1], [], []>} : vector<8x128xf32>, vector<128x32xf32>, vector<8x32xf32> -> vector<8x32xf32>
    %227 = vector.broadcast %41 : vector<1x32xf32> to vector<8x32xf32>
    %228 = arith.addf %226, %227 : vector<8x32xf32>
    %229 = arith.addf %216, %228 : vector<8x32xf32>
    %cst_162 = arith.constant dense<0.000000e+00> : vector<8xf32>
    %230 = vector.multi_reduction <add>, %229, %cst_162 [1] : vector<8x32xf32> to vector<8xf32>
    %231 = vector.shape_cast %230 : vector<8xf32> to vector<8x1xf32>
    %cst_163 = arith.constant 3.200000e+01 : f32
    %232 = vector.broadcast %cst_163 : f32 to vector<8x1xf32>
    %233 = arith.divf %231, %232 : vector<8x1xf32>
    %234 = vector.broadcast %233 : vector<8x1xf32> to vector<8x32xf32>
    %235 = arith.subf %229, %234 : vector<8x32xf32>
    %236 = arith.mulf %235, %235 : vector<8x32xf32>
    %cst_164 = arith.constant dense<0.000000e+00> : vector<8xf32>
    %237 = vector.multi_reduction <add>, %236, %cst_164 [1] : vector<8x32xf32> to vector<8xf32>
    %238 = vector.shape_cast %237 : vector<8xf32> to vector<8x1xf32>
    %cst_165 = arith.constant 3.200000e+01 : f32
    %239 = vector.broadcast %cst_165 : f32 to vector<8x1xf32>
    %240 = arith.divf %238, %239 : vector<8x1xf32>
    %241 = vector.broadcast %233 : vector<8x1xf32> to vector<8x32xf32>
    %242 = arith.subf %229, %241 : vector<8x32xf32>
    %cst_166 = arith.constant 9.99999974E-6 : f32
    %243 = vector.broadcast %cst_166 : f32 to vector<8x1xf32>
    %244 = arith.addf %240, %243 : vector<8x1xf32>
    %245 = math.rsqrt %244 : vector<8x1xf32>
    %246 = vector.broadcast %245 : vector<8x1xf32> to vector<8x32xf32>
    %247 = arith.mulf %242, %246 : vector<8x32xf32>
    %248 = vector.broadcast %42 : vector<1x32xf32> to vector<8x32xf32>
    %249 = arith.mulf %247, %248 : vector<8x32xf32>
    %250 = vector.broadcast %43 : vector<1x32xf32> to vector<8x32xf32>
    %251 = arith.addf %249, %250 : vector<8x32xf32>
    %c1_167 = arith.constant 1 : index
    %c0_168 = arith.constant 0 : index
    %c0_169 = arith.constant 0 : index
    %252 = vector.load %arg9[%c1_167, %c0_168, %c0_169] : memref<2x7x128xf32, #tpu.memory_space<vmem>>, vector<1x7x128xf32>
    %253 = vector.shape_cast %252 : vector<1x7x128xf32> to vector<7x128xf32>
    %254 = vector.extract_strided_slice %253 {offsets = [0, 0], sizes = [1, 32], strides = [1, 1]} : vector<7x128xf32> to vector<1x32xf32>
    %255 = vector.extract_strided_slice %253 {offsets = [1, 0], sizes = [1, 32], strides = [1, 1]} : vector<7x128xf32> to vector<1x32xf32>
    %256 = vector.extract_strided_slice %253 {offsets = [2, 0], sizes = [1, 32], strides = [1, 1]} : vector<7x128xf32> to vector<1x32xf32>
    %257 = vector.extract_strided_slice %253 {offsets = [3, 0], sizes = [1, 128], strides = [1, 1]} : vector<7x128xf32> to vector<1x128xf32>
    %258 = vector.extract_strided_slice %253 {offsets = [4, 0], sizes = [1, 32], strides = [1, 1]} : vector<7x128xf32> to vector<1x32xf32>
    %259 = vector.extract_strided_slice %253 {offsets = [5, 0], sizes = [1, 32], strides = [1, 1]} : vector<7x128xf32> to vector<1x32xf32>
    %260 = vector.extract_strided_slice %253 {offsets = [6, 0], sizes = [1, 32], strides = [1, 1]} : vector<7x128xf32> to vector<1x32xf32>
    %c1_170 = arith.constant 1 : index
    %c0_171 = arith.constant 0 : index
    %c0_172 = arith.constant 0 : index
    %c0_173 = arith.constant 0 : index
    %261 = vector.load %arg4[%c1_170, %c0_171, %c0_172, %c0_173] : memref<2x12x32x8xf32, #tpu.memory_space<vmem>>, vector<1x1x32x8xf32>
    %262 = vector.shape_cast %261 : vector<1x1x32x8xf32> to vector<32x8xf32>
    %cst_174 = arith.constant dense<0.000000e+00> : vector<8x8xf32>
    %263 = tpu.matmul %251, %262, %cst_174 {dimension_numbers = #tpu.dot_dimension_numbers<[1], [0], [0], [1], [0, 0, 1, 1], [], []>} : vector<8x32xf32>, vector<32x8xf32>, vector<8x8xf32> -> vector<8x8xf32>
    %c1_175 = arith.constant 1 : index
    %c0_176 = arith.constant 0 : index
    %c0_177 = arith.constant 0 : index
    %c0_178 = arith.constant 0 : index
    %264 = vector.load %arg5[%c1_175, %c0_176, %c0_177, %c0_178] : memref<2x12x1x8xf32, #tpu.memory_space<vmem>>, vector<1x1x1x8xf32>
    %265 = vector.shape_cast %264 : vector<1x1x1x8xf32> to vector<1x8xf32>
    %266 = vector.broadcast %265 : vector<1x8xf32> to vector<8x8xf32>
    %267 = arith.addf %263, %266 : vector<8x8xf32>
    %c1_179 = arith.constant 1 : index
    %c1_180 = arith.constant 1 : index
    %c0_181 = arith.constant 0 : index
    %c0_182 = arith.constant 0 : index
    %268 = vector.load %arg4[%c1_179, %c1_180, %c0_181, %c0_182] : memref<2x12x32x8xf32, #tpu.memory_space<vmem>>, vector<1x1x32x8xf32>
    %269 = vector.shape_cast %268 : vector<1x1x32x8xf32> to vector<32x8xf32>
    %cst_183 = arith.constant dense<0.000000e+00> : vector<8x8xf32>
    %270 = tpu.matmul %251, %269, %cst_183 {dimension_numbers = #tpu.dot_dimension_numbers<[1], [0], [0], [1], [0, 0, 1, 1], [], []>} : vector<8x32xf32>, vector<32x8xf32>, vector<8x8xf32> -> vector<8x8xf32>
    %c1_184 = arith.constant 1 : index
    %c1_185 = arith.constant 1 : index
    %c0_186 = arith.constant 0 : index
    %c0_187 = arith.constant 0 : index
    %271 = vector.load %arg5[%c1_184, %c1_185, %c0_186, %c0_187] : memref<2x12x1x8xf32, #tpu.memory_space<vmem>>, vector<1x1x1x8xf32>
    %272 = vector.shape_cast %271 : vector<1x1x1x8xf32> to vector<1x8xf32>
    %273 = vector.broadcast %272 : vector<1x8xf32> to vector<8x8xf32>
    %274 = arith.addf %270, %273 : vector<8x8xf32>
    %c1_188 = arith.constant 1 : index
    %c2_189 = arith.constant 2 : index
    %c0_190 = arith.constant 0 : index
    %c0_191 = arith.constant 0 : index
    %275 = vector.load %arg4[%c1_188, %c2_189, %c0_190, %c0_191] : memref<2x12x32x8xf32, #tpu.memory_space<vmem>>, vector<1x1x32x8xf32>
    %276 = vector.shape_cast %275 : vector<1x1x32x8xf32> to vector<32x8xf32>
    %cst_192 = arith.constant dense<0.000000e+00> : vector<8x8xf32>
    %277 = tpu.matmul %251, %276, %cst_192 {dimension_numbers = #tpu.dot_dimension_numbers<[1], [0], [0], [1], [0, 0, 1, 1], [], []>} : vector<8x32xf32>, vector<32x8xf32>, vector<8x8xf32> -> vector<8x8xf32>
    %c1_193 = arith.constant 1 : index
    %c2_194 = arith.constant 2 : index
    %c0_195 = arith.constant 0 : index
    %c0_196 = arith.constant 0 : index
    %278 = vector.load %arg5[%c1_193, %c2_194, %c0_195, %c0_196] : memref<2x12x1x8xf32, #tpu.memory_space<vmem>>, vector<1x1x1x8xf32>
    %279 = vector.shape_cast %278 : vector<1x1x1x8xf32> to vector<1x8xf32>
    %280 = vector.broadcast %279 : vector<1x8xf32> to vector<8x8xf32>
    %281 = arith.addf %277, %280 : vector<8x8xf32>
    %c1_197 = arith.constant 1 : index
    %c3_198 = arith.constant 3 : index
    %c0_199 = arith.constant 0 : index
    %c0_200 = arith.constant 0 : index
    %282 = vector.load %arg4[%c1_197, %c3_198, %c0_199, %c0_200] : memref<2x12x32x8xf32, #tpu.memory_space<vmem>>, vector<1x1x32x8xf32>
    %283 = vector.shape_cast %282 : vector<1x1x32x8xf32> to vector<32x8xf32>
    %cst_201 = arith.constant dense<0.000000e+00> : vector<8x8xf32>
    %284 = tpu.matmul %251, %283, %cst_201 {dimension_numbers = #tpu.dot_dimension_numbers<[1], [0], [0], [1], [0, 0, 1, 1], [], []>} : vector<8x32xf32>, vector<32x8xf32>, vector<8x8xf32> -> vector<8x8xf32>
    %c1_202 = arith.constant 1 : index
    %c3_203 = arith.constant 3 : index
    %c0_204 = arith.constant 0 : index
    %c0_205 = arith.constant 0 : index
    %285 = vector.load %arg5[%c1_202, %c3_203, %c0_204, %c0_205] : memref<2x12x1x8xf32, #tpu.memory_space<vmem>>, vector<1x1x1x8xf32>
    %286 = vector.shape_cast %285 : vector<1x1x1x8xf32> to vector<1x8xf32>
    %287 = vector.broadcast %286 : vector<1x8xf32> to vector<8x8xf32>
    %288 = arith.addf %284, %287 : vector<8x8xf32>
    %c1_206 = arith.constant 1 : index
    %c4_207 = arith.constant 4 : index
    %c0_208 = arith.constant 0 : index
    %c0_209 = arith.constant 0 : index
    %289 = vector.load %arg4[%c1_206, %c4_207, %c0_208, %c0_209] : memref<2x12x32x8xf32, #tpu.memory_space<vmem>>, vector<1x1x32x8xf32>
    %290 = vector.shape_cast %289 : vector<1x1x32x8xf32> to vector<32x8xf32>
    %cst_210 = arith.constant dense<0.000000e+00> : vector<8x8xf32>
    %291 = tpu.matmul %251, %290, %cst_210 {dimension_numbers = #tpu.dot_dimension_numbers<[1], [0], [0], [1], [0, 0, 1, 1], [], []>} : vector<8x32xf32>, vector<32x8xf32>, vector<8x8xf32> -> vector<8x8xf32>
    %c1_211 = arith.constant 1 : index
    %c4_212 = arith.constant 4 : index
    %c0_213 = arith.constant 0 : index
    %c0_214 = arith.constant 0 : index
    %292 = vector.load %arg5[%c1_211, %c4_212, %c0_213, %c0_214] : memref<2x12x1x8xf32, #tpu.memory_space<vmem>>, vector<1x1x1x8xf32>
    %293 = vector.shape_cast %292 : vector<1x1x1x8xf32> to vector<1x8xf32>
    %294 = vector.broadcast %293 : vector<1x8xf32> to vector<8x8xf32>
    %295 = arith.addf %291, %294 : vector<8x8xf32>
    %c1_215 = arith.constant 1 : index
    %c5_216 = arith.constant 5 : index
    %c0_217 = arith.constant 0 : index
    %c0_218 = arith.constant 0 : index
    %296 = vector.load %arg4[%c1_215, %c5_216, %c0_217, %c0_218] : memref<2x12x32x8xf32, #tpu.memory_space<vmem>>, vector<1x1x32x8xf32>
    %297 = vector.shape_cast %296 : vector<1x1x32x8xf32> to vector<32x8xf32>
    %cst_219 = arith.constant dense<0.000000e+00> : vector<8x8xf32>
    %298 = tpu.matmul %251, %297, %cst_219 {dimension_numbers = #tpu.dot_dimension_numbers<[1], [0], [0], [1], [0, 0, 1, 1], [], []>} : vector<8x32xf32>, vector<32x8xf32>, vector<8x8xf32> -> vector<8x8xf32>
    %c1_220 = arith.constant 1 : index
    %c5_221 = arith.constant 5 : index
    %c0_222 = arith.constant 0 : index
    %c0_223 = arith.constant 0 : index
    %299 = vector.load %arg5[%c1_220, %c5_221, %c0_222, %c0_223] : memref<2x12x1x8xf32, #tpu.memory_space<vmem>>, vector<1x1x1x8xf32>
    %300 = vector.shape_cast %299 : vector<1x1x1x8xf32> to vector<1x8xf32>
    %301 = vector.broadcast %300 : vector<1x8xf32> to vector<8x8xf32>
    %302 = arith.addf %298, %301 : vector<8x8xf32>
    %c1_224 = arith.constant 1 : index
    %c6_225 = arith.constant 6 : index
    %c0_226 = arith.constant 0 : index
    %c0_227 = arith.constant 0 : index
    %303 = vector.load %arg4[%c1_224, %c6_225, %c0_226, %c0_227] : memref<2x12x32x8xf32, #tpu.memory_space<vmem>>, vector<1x1x32x8xf32>
    %304 = vector.shape_cast %303 : vector<1x1x32x8xf32> to vector<32x8xf32>
    %cst_228 = arith.constant dense<0.000000e+00> : vector<8x8xf32>
    %305 = tpu.matmul %251, %304, %cst_228 {dimension_numbers = #tpu.dot_dimension_numbers<[1], [0], [0], [1], [0, 0, 1, 1], [], []>} : vector<8x32xf32>, vector<32x8xf32>, vector<8x8xf32> -> vector<8x8xf32>
    %c1_229 = arith.constant 1 : index
    %c6_230 = arith.constant 6 : index
    %c0_231 = arith.constant 0 : index
    %c0_232 = arith.constant 0 : index
    %306 = vector.load %arg5[%c1_229, %c6_230, %c0_231, %c0_232] : memref<2x12x1x8xf32, #tpu.memory_space<vmem>>, vector<1x1x1x8xf32>
    %307 = vector.shape_cast %306 : vector<1x1x1x8xf32> to vector<1x8xf32>
    %308 = vector.broadcast %307 : vector<1x8xf32> to vector<8x8xf32>
    %309 = arith.addf %305, %308 : vector<8x8xf32>
    %c1_233 = arith.constant 1 : index
    %c7_234 = arith.constant 7 : index
    %c0_235 = arith.constant 0 : index
    %c0_236 = arith.constant 0 : index
    %310 = vector.load %arg4[%c1_233, %c7_234, %c0_235, %c0_236] : memref<2x12x32x8xf32, #tpu.memory_space<vmem>>, vector<1x1x32x8xf32>
    %311 = vector.shape_cast %310 : vector<1x1x32x8xf32> to vector<32x8xf32>
    %cst_237 = arith.constant dense<0.000000e+00> : vector<8x8xf32>
    %312 = tpu.matmul %251, %311, %cst_237 {dimension_numbers = #tpu.dot_dimension_numbers<[1], [0], [0], [1], [0, 0, 1, 1], [], []>} : vector<8x32xf32>, vector<32x8xf32>, vector<8x8xf32> -> vector<8x8xf32>
    %c1_238 = arith.constant 1 : index
    %c7_239 = arith.constant 7 : index
    %c0_240 = arith.constant 0 : index
    %c0_241 = arith.constant 0 : index
    %313 = vector.load %arg5[%c1_238, %c7_239, %c0_240, %c0_241] : memref<2x12x1x8xf32, #tpu.memory_space<vmem>>, vector<1x1x1x8xf32>
    %314 = vector.shape_cast %313 : vector<1x1x1x8xf32> to vector<1x8xf32>
    %315 = vector.broadcast %314 : vector<1x8xf32> to vector<8x8xf32>
    %316 = arith.addf %312, %315 : vector<8x8xf32>
    %c1_242 = arith.constant 1 : index
    %c8_243 = arith.constant 8 : index
    %c0_244 = arith.constant 0 : index
    %c0_245 = arith.constant 0 : index
    %317 = vector.load %arg4[%c1_242, %c8_243, %c0_244, %c0_245] : memref<2x12x32x8xf32, #tpu.memory_space<vmem>>, vector<1x1x32x8xf32>
    %318 = vector.shape_cast %317 : vector<1x1x32x8xf32> to vector<32x8xf32>
    %cst_246 = arith.constant dense<0.000000e+00> : vector<8x8xf32>
    %319 = tpu.matmul %251, %318, %cst_246 {dimension_numbers = #tpu.dot_dimension_numbers<[1], [0], [0], [1], [0, 0, 1, 1], [], []>} : vector<8x32xf32>, vector<32x8xf32>, vector<8x8xf32> -> vector<8x8xf32>
    %c1_247 = arith.constant 1 : index
    %c8_248 = arith.constant 8 : index
    %c0_249 = arith.constant 0 : index
    %c0_250 = arith.constant 0 : index
    %320 = vector.load %arg5[%c1_247, %c8_248, %c0_249, %c0_250] : memref<2x12x1x8xf32, #tpu.memory_space<vmem>>, vector<1x1x1x8xf32>
    %321 = vector.shape_cast %320 : vector<1x1x1x8xf32> to vector<1x8xf32>
    %322 = vector.broadcast %321 : vector<1x8xf32> to vector<8x8xf32>
    %323 = arith.addf %319, %322 : vector<8x8xf32>
    %c1_251 = arith.constant 1 : index
    %c9_252 = arith.constant 9 : index
    %c0_253 = arith.constant 0 : index
    %c0_254 = arith.constant 0 : index
    %324 = vector.load %arg4[%c1_251, %c9_252, %c0_253, %c0_254] : memref<2x12x32x8xf32, #tpu.memory_space<vmem>>, vector<1x1x32x8xf32>
    %325 = vector.shape_cast %324 : vector<1x1x32x8xf32> to vector<32x8xf32>
    %cst_255 = arith.constant dense<0.000000e+00> : vector<8x8xf32>
    %326 = tpu.matmul %251, %325, %cst_255 {dimension_numbers = #tpu.dot_dimension_numbers<[1], [0], [0], [1], [0, 0, 1, 1], [], []>} : vector<8x32xf32>, vector<32x8xf32>, vector<8x8xf32> -> vector<8x8xf32>
    %c1_256 = arith.constant 1 : index
    %c9_257 = arith.constant 9 : index
    %c0_258 = arith.constant 0 : index
    %c0_259 = arith.constant 0 : index
    %327 = vector.load %arg5[%c1_256, %c9_257, %c0_258, %c0_259] : memref<2x12x1x8xf32, #tpu.memory_space<vmem>>, vector<1x1x1x8xf32>
    %328 = vector.shape_cast %327 : vector<1x1x1x8xf32> to vector<1x8xf32>
    %329 = vector.broadcast %328 : vector<1x8xf32> to vector<8x8xf32>
    %330 = arith.addf %326, %329 : vector<8x8xf32>
    %c1_260 = arith.constant 1 : index
    %c10_261 = arith.constant 10 : index
    %c0_262 = arith.constant 0 : index
    %c0_263 = arith.constant 0 : index
    %331 = vector.load %arg4[%c1_260, %c10_261, %c0_262, %c0_263] : memref<2x12x32x8xf32, #tpu.memory_space<vmem>>, vector<1x1x32x8xf32>
    %332 = vector.shape_cast %331 : vector<1x1x32x8xf32> to vector<32x8xf32>
    %cst_264 = arith.constant dense<0.000000e+00> : vector<8x8xf32>
    %333 = tpu.matmul %251, %332, %cst_264 {dimension_numbers = #tpu.dot_dimension_numbers<[1], [0], [0], [1], [0, 0, 1, 1], [], []>} : vector<8x32xf32>, vector<32x8xf32>, vector<8x8xf32> -> vector<8x8xf32>
    %c1_265 = arith.constant 1 : index
    %c10_266 = arith.constant 10 : index
    %c0_267 = arith.constant 0 : index
    %c0_268 = arith.constant 0 : index
    %334 = vector.load %arg5[%c1_265, %c10_266, %c0_267, %c0_268] : memref<2x12x1x8xf32, #tpu.memory_space<vmem>>, vector<1x1x1x8xf32>
    %335 = vector.shape_cast %334 : vector<1x1x1x8xf32> to vector<1x8xf32>
    %336 = vector.broadcast %335 : vector<1x8xf32> to vector<8x8xf32>
    %337 = arith.addf %333, %336 : vector<8x8xf32>
    %c1_269 = arith.constant 1 : index
    %c11_270 = arith.constant 11 : index
    %c0_271 = arith.constant 0 : index
    %c0_272 = arith.constant 0 : index
    %338 = vector.load %arg4[%c1_269, %c11_270, %c0_271, %c0_272] : memref<2x12x32x8xf32, #tpu.memory_space<vmem>>, vector<1x1x32x8xf32>
    %339 = vector.shape_cast %338 : vector<1x1x32x8xf32> to vector<32x8xf32>
    %cst_273 = arith.constant dense<0.000000e+00> : vector<8x8xf32>
    %340 = tpu.matmul %251, %339, %cst_273 {dimension_numbers = #tpu.dot_dimension_numbers<[1], [0], [0], [1], [0, 0, 1, 1], [], []>} : vector<8x32xf32>, vector<32x8xf32>, vector<8x8xf32> -> vector<8x8xf32>
    %c1_274 = arith.constant 1 : index
    %c11_275 = arith.constant 11 : index
    %c0_276 = arith.constant 0 : index
    %c0_277 = arith.constant 0 : index
    %341 = vector.load %arg5[%c1_274, %c11_275, %c0_276, %c0_277] : memref<2x12x1x8xf32, #tpu.memory_space<vmem>>, vector<1x1x1x8xf32>
    %342 = vector.shape_cast %341 : vector<1x1x1x8xf32> to vector<1x8xf32>
    %343 = vector.broadcast %342 : vector<1x8xf32> to vector<8x8xf32>
    %344 = arith.addf %340, %343 : vector<8x8xf32>
    %cst_278 = arith.constant dense<0.000000e+00> : vector<8x8xf32>
    %345 = tpu.matmul %267, %274, %cst_278 {dimension_numbers = #tpu.dot_dimension_numbers<[1], [1], [0], [0], [0, 0, 1, 0], [], []>} : vector<8x8xf32>, vector<8x8xf32>, vector<8x8xf32> -> vector<8x8xf32>
    %cst_279 = arith.constant 0.353553385 : f32
    %346 = vector.broadcast %cst_279 : f32 to vector<8x8xf32>
    %347 = arith.mulf %345, %346 : vector<8x8xf32>
    %cst_280 = arith.constant dense<0xFF800000> : vector<8xf32>
    %348 = vector.multi_reduction <maximumf>, %347, %cst_280 [1] : vector<8x8xf32> to vector<8xf32>
    %349 = vector.shape_cast %348 : vector<8xf32> to vector<8x1xf32>
    %350 = vector.broadcast %349 : vector<8x1xf32> to vector<8x8xf32>
    %351 = arith.subf %347, %350 : vector<8x8xf32>
    %352 = math.exp %351 : vector<8x8xf32>
    %cst_281 = arith.constant dense<0.000000e+00> : vector<8xf32>
    %353 = vector.multi_reduction <add>, %352, %cst_281 [1] : vector<8x8xf32> to vector<8xf32>
    %354 = vector.shape_cast %353 : vector<8xf32> to vector<8x1xf32>
    %355 = tpu.reciprocal %354 {approx = true} : vector<8x1xf32> -> vector<8x1xf32>
    %356 = vector.broadcast %355 : vector<8x1xf32> to vector<8x8xf32>
    %357 = arith.mulf %352, %356 : vector<8x8xf32>
    %cst_282 = arith.constant dense<0.000000e+00> : vector<8x8xf32>
    %358 = tpu.matmul %357, %281, %cst_282 {dimension_numbers = #tpu.dot_dimension_numbers<[1], [0], [0], [1], [0, 0, 1, 1], [], []>} : vector<8x8xf32>, vector<8x8xf32>, vector<8x8xf32> -> vector<8x8xf32>
    %cst_283 = arith.constant dense<0.000000e+00> : vector<8x8xf32>
    %359 = tpu.matmul %288, %295, %cst_283 {dimension_numbers = #tpu.dot_dimension_numbers<[1], [1], [0], [0], [0, 0, 1, 0], [], []>} : vector<8x8xf32>, vector<8x8xf32>, vector<8x8xf32> -> vector<8x8xf32>
    %cst_284 = arith.constant 0.353553385 : f32
    %360 = vector.broadcast %cst_284 : f32 to vector<8x8xf32>
    %361 = arith.mulf %359, %360 : vector<8x8xf32>
    %cst_285 = arith.constant dense<0xFF800000> : vector<8xf32>
    %362 = vector.multi_reduction <maximumf>, %361, %cst_285 [1] : vector<8x8xf32> to vector<8xf32>
    %363 = vector.shape_cast %362 : vector<8xf32> to vector<8x1xf32>
    %364 = vector.broadcast %363 : vector<8x1xf32> to vector<8x8xf32>
    %365 = arith.subf %361, %364 : vector<8x8xf32>
    %366 = math.exp %365 : vector<8x8xf32>
    %cst_286 = arith.constant dense<0.000000e+00> : vector<8xf32>
    %367 = vector.multi_reduction <add>, %366, %cst_286 [1] : vector<8x8xf32> to vector<8xf32>
    %368 = vector.shape_cast %367 : vector<8xf32> to vector<8x1xf32>
    %369 = tpu.reciprocal %368 {approx = true} : vector<8x1xf32> -> vector<8x1xf32>
    %370 = vector.broadcast %369 : vector<8x1xf32> to vector<8x8xf32>
    %371 = arith.mulf %366, %370 : vector<8x8xf32>
    %cst_287 = arith.constant dense<0.000000e+00> : vector<8x8xf32>
    %372 = tpu.matmul %371, %302, %cst_287 {dimension_numbers = #tpu.dot_dimension_numbers<[1], [0], [0], [1], [0, 0, 1, 1], [], []>} : vector<8x8xf32>, vector<8x8xf32>, vector<8x8xf32> -> vector<8x8xf32>
    %cst_288 = arith.constant dense<0.000000e+00> : vector<8x8xf32>
    %373 = tpu.matmul %309, %316, %cst_288 {dimension_numbers = #tpu.dot_dimension_numbers<[1], [1], [0], [0], [0, 0, 1, 0], [], []>} : vector<8x8xf32>, vector<8x8xf32>, vector<8x8xf32> -> vector<8x8xf32>
    %cst_289 = arith.constant 0.353553385 : f32
    %374 = vector.broadcast %cst_289 : f32 to vector<8x8xf32>
    %375 = arith.mulf %373, %374 : vector<8x8xf32>
    %cst_290 = arith.constant dense<0xFF800000> : vector<8xf32>
    %376 = vector.multi_reduction <maximumf>, %375, %cst_290 [1] : vector<8x8xf32> to vector<8xf32>
    %377 = vector.shape_cast %376 : vector<8xf32> to vector<8x1xf32>
    %378 = vector.broadcast %377 : vector<8x1xf32> to vector<8x8xf32>
    %379 = arith.subf %375, %378 : vector<8x8xf32>
    %380 = math.exp %379 : vector<8x8xf32>
    %cst_291 = arith.constant dense<0.000000e+00> : vector<8xf32>
    %381 = vector.multi_reduction <add>, %380, %cst_291 [1] : vector<8x8xf32> to vector<8xf32>
    %382 = vector.shape_cast %381 : vector<8xf32> to vector<8x1xf32>
    %383 = tpu.reciprocal %382 {approx = true} : vector<8x1xf32> -> vector<8x1xf32>
    %384 = vector.broadcast %383 : vector<8x1xf32> to vector<8x8xf32>
    %385 = arith.mulf %380, %384 : vector<8x8xf32>
    %cst_292 = arith.constant dense<0.000000e+00> : vector<8x8xf32>
    %386 = tpu.matmul %385, %323, %cst_292 {dimension_numbers = #tpu.dot_dimension_numbers<[1], [0], [0], [1], [0, 0, 1, 1], [], []>} : vector<8x8xf32>, vector<8x8xf32>, vector<8x8xf32> -> vector<8x8xf32>
    %cst_293 = arith.constant dense<0.000000e+00> : vector<8x8xf32>
    %387 = tpu.matmul %330, %337, %cst_293 {dimension_numbers = #tpu.dot_dimension_numbers<[1], [1], [0], [0], [0, 0, 1, 0], [], []>} : vector<8x8xf32>, vector<8x8xf32>, vector<8x8xf32> -> vector<8x8xf32>
    %cst_294 = arith.constant 0.353553385 : f32
    %388 = vector.broadcast %cst_294 : f32 to vector<8x8xf32>
    %389 = arith.mulf %387, %388 : vector<8x8xf32>
    %cst_295 = arith.constant dense<0xFF800000> : vector<8xf32>
    %390 = vector.multi_reduction <maximumf>, %389, %cst_295 [1] : vector<8x8xf32> to vector<8xf32>
    %391 = vector.shape_cast %390 : vector<8xf32> to vector<8x1xf32>
    %392 = vector.broadcast %391 : vector<8x1xf32> to vector<8x8xf32>
    %393 = arith.subf %389, %392 : vector<8x8xf32>
    %394 = math.exp %393 : vector<8x8xf32>
    %cst_296 = arith.constant dense<0.000000e+00> : vector<8xf32>
    %395 = vector.multi_reduction <add>, %394, %cst_296 [1] : vector<8x8xf32> to vector<8xf32>
    %396 = vector.shape_cast %395 : vector<8xf32> to vector<8x1xf32>
    %397 = tpu.reciprocal %396 {approx = true} : vector<8x1xf32> -> vector<8x1xf32>
    %398 = vector.broadcast %397 : vector<8x1xf32> to vector<8x8xf32>
    %399 = arith.mulf %394, %398 : vector<8x8xf32>
    %cst_297 = arith.constant dense<0.000000e+00> : vector<8x8xf32>
    %400 = tpu.matmul %399, %344, %cst_297 {dimension_numbers = #tpu.dot_dimension_numbers<[1], [0], [0], [1], [0, 0, 1, 1], [], []>} : vector<8x8xf32>, vector<8x8xf32>, vector<8x8xf32> -> vector<8x8xf32>
    %401 = tpu.concatenate %357, %371, %385, %399 in 1 : vector<8x8xf32>, vector<8x8xf32>, vector<8x8xf32>, vector<8x8xf32> -> vector<8x32xf32>
    %c1_298 = arith.constant 1 : index
    %c0_299 = arith.constant 0 : index
    %c0_300 = arith.constant 0 : index
    %c0_301 = arith.constant 0 : index
    %402 = vector.load %arg12[%c1_298, %c0_299, %c0_300, %c0_301] : memref<2x1x8x32xf32, #tpu.memory_space<vmem>>, vector<1x1x8x32xf32>
    %403 = vector.shape_cast %402 : vector<1x1x8x32xf32> to vector<8x32xf32>
    %404 = vector.shape_cast %401 : vector<8x32xf32> to vector<1x1x8x32xf32>
    tpu.vector_store %arg12[%c1_298, %c0_299, %c0_300, %c0_301], %404 {strides = array<i32>} : memref<2x1x8x32xf32, #tpu.memory_space<vmem>>, vector<1x1x8x32xf32>,
    %405 = tpu.concatenate %358, %372, %386, %400 in 1 : vector<8x8xf32>, vector<8x8xf32>, vector<8x8xf32>, vector<8x8xf32> -> vector<8x32xf32>
    %c1_302 = arith.constant 1 : index
    %c0_303 = arith.constant 0 : index
    %c0_304 = arith.constant 0 : index
    %406 = vector.load %arg6[%c1_302, %c0_303, %c0_304] : memref<2x32x32xf32, #tpu.memory_space<vmem>>, vector<1x32x32xf32>
    %407 = vector.shape_cast %406 : vector<1x32x32xf32> to vector<32x32xf32>
    %cst_305 = arith.constant dense<0.000000e+00> : vector<8x32xf32>
    %408 = tpu.matmul %405, %407, %cst_305 {dimension_numbers = #tpu.dot_dimension_numbers<[1], [0], [0], [1], [0, 0, 1, 1], [], []>} : vector<8x32xf32>, vector<32x32xf32>, vector<8x32xf32> -> vector<8x32xf32>
    %409 = vector.broadcast %254 : vector<1x32xf32> to vector<8x32xf32>
    %410 = arith.addf %408, %409 : vector<8x32xf32>
    %411 = arith.addf %251, %410 : vector<8x32xf32>
    %cst_306 = arith.constant dense<0.000000e+00> : vector<8xf32>
    %412 = vector.multi_reduction <add>, %411, %cst_306 [1] : vector<8x32xf32> to vector<8xf32>
    %413 = vector.shape_cast %412 : vector<8xf32> to vector<8x1xf32>
    %cst_307 = arith.constant 3.200000e+01 : f32
    %414 = vector.broadcast %cst_307 : f32 to vector<8x1xf32>
    %415 = arith.divf %413, %414 : vector<8x1xf32>
    %416 = vector.broadcast %415 : vector<8x1xf32> to vector<8x32xf32>
    %417 = arith.subf %411, %416 : vector<8x32xf32>
    %418 = arith.mulf %417, %417 : vector<8x32xf32>
    %cst_308 = arith.constant dense<0.000000e+00> : vector<8xf32>
    %419 = vector.multi_reduction <add>, %418, %cst_308 [1] : vector<8x32xf32> to vector<8xf32>
    %420 = vector.shape_cast %419 : vector<8xf32> to vector<8x1xf32>
    %cst_309 = arith.constant 3.200000e+01 : f32
    %421 = vector.broadcast %cst_309 : f32 to vector<8x1xf32>
    %422 = arith.divf %420, %421 : vector<8x1xf32>
    %423 = vector.broadcast %415 : vector<8x1xf32> to vector<8x32xf32>
    %424 = arith.subf %411, %423 : vector<8x32xf32>
    %cst_310 = arith.constant 9.99999974E-6 : f32
    %425 = vector.broadcast %cst_310 : f32 to vector<8x1xf32>
    %426 = arith.addf %422, %425 : vector<8x1xf32>
    %427 = math.rsqrt %426 : vector<8x1xf32>
    %428 = vector.broadcast %427 : vector<8x1xf32> to vector<8x32xf32>
    %429 = arith.mulf %424, %428 : vector<8x32xf32>
    %430 = vector.broadcast %255 : vector<1x32xf32> to vector<8x32xf32>
    %431 = arith.mulf %429, %430 : vector<8x32xf32>
    %432 = vector.broadcast %256 : vector<1x32xf32> to vector<8x32xf32>
    %433 = arith.addf %431, %432 : vector<8x32xf32>
    %c1_311 = arith.constant 1 : index
    %c0_312 = arith.constant 0 : index
    %c0_313 = arith.constant 0 : index
    %434 = vector.load %arg7[%c1_311, %c0_312, %c0_313] : memref<2x32x128xf32, #tpu.memory_space<vmem>>, vector<1x32x128xf32>
    %435 = vector.shape_cast %434 : vector<1x32x128xf32> to vector<32x128xf32>
    %cst_314 = arith.constant dense<0.000000e+00> : vector<8x128xf32>
    %436 = tpu.matmul %433, %435, %cst_314 {dimension_numbers = #tpu.dot_dimension_numbers<[1], [0], [0], [1], [0, 0, 1, 1], [], []>} : vector<8x32xf32>, vector<32x128xf32>, vector<8x128xf32> -> vector<8x128xf32>
    %437 = vector.broadcast %257 : vector<1x128xf32> to vector<8x128xf32>
    %438 = arith.addf %436, %437 : vector<8x128xf32>
    %cst_315 = arith.constant 0.000000e+00 : f32
    %439 = vector.broadcast %cst_315 : f32 to vector<8x128xf32>
    %440 = arith.maximumf %438, %439 : vector<8x128xf32>
    %c1_316 = arith.constant 1 : index
    %c0_317 = arith.constant 0 : index
    %c0_318 = arith.constant 0 : index
    %441 = vector.load %arg8[%c1_316, %c0_317, %c0_318] : memref<2x128x32xf32, #tpu.memory_space<vmem>>, vector<1x128x32xf32>
    %442 = vector.shape_cast %441 : vector<1x128x32xf32> to vector<128x32xf32>
    %cst_319 = arith.constant dense<0.000000e+00> : vector<8x32xf32>
    %443 = tpu.matmul %440, %442, %cst_319 {dimension_numbers = #tpu.dot_dimension_numbers<[1], [0], [0], [1], [0, 0, 1, 1], [], []>} : vector<8x128xf32>, vector<128x32xf32>, vector<8x32xf32> -> vector<8x32xf32>
    %444 = vector.broadcast %258 : vector<1x32xf32> to vector<8x32xf32>
    %445 = arith.addf %443, %444 : vector<8x32xf32>
    %446 = arith.addf %433, %445 : vector<8x32xf32>
    %cst_320 = arith.constant dense<0.000000e+00> : vector<8xf32>
    %447 = vector.multi_reduction <add>, %446, %cst_320 [1] : vector<8x32xf32> to vector<8xf32>
    %448 = vector.shape_cast %447 : vector<8xf32> to vector<8x1xf32>
    %cst_321 = arith.constant 3.200000e+01 : f32
    %449 = vector.broadcast %cst_321 : f32 to vector<8x1xf32>
    %450 = arith.divf %448, %449 : vector<8x1xf32>
    %451 = vector.broadcast %450 : vector<8x1xf32> to vector<8x32xf32>
    %452 = arith.subf %446, %451 : vector<8x32xf32>
    %453 = arith.mulf %452, %452 : vector<8x32xf32>
    %cst_322 = arith.constant dense<0.000000e+00> : vector<8xf32>
    %454 = vector.multi_reduction <add>, %453, %cst_322 [1] : vector<8x32xf32> to vector<8xf32>
    %455 = vector.shape_cast %454 : vector<8xf32> to vector<8x1xf32>
    %cst_323 = arith.constant 3.200000e+01 : f32
    %456 = vector.broadcast %cst_323 : f32 to vector<8x1xf32>
    %457 = arith.divf %455, %456 : vector<8x1xf32>
    %458 = vector.broadcast %450 : vector<8x1xf32> to vector<8x32xf32>
    %459 = arith.subf %446, %458 : vector<8x32xf32>
    %cst_324 = arith.constant 9.99999974E-6 : f32
    %460 = vector.broadcast %cst_324 : f32 to vector<8x1xf32>
    %461 = arith.addf %457, %460 : vector<8x1xf32>
    %462 = math.rsqrt %461 : vector<8x1xf32>
    %463 = vector.broadcast %462 : vector<8x1xf32> to vector<8x32xf32>
    %464 = arith.mulf %459, %463 : vector<8x32xf32>
    %465 = vector.broadcast %259 : vector<1x32xf32> to vector<8x32xf32>
    %466 = arith.mulf %464, %465 : vector<8x32xf32>
    %467 = vector.broadcast %260 : vector<1x32xf32> to vector<8x32xf32>
    %468 = arith.addf %466, %467 : vector<8x32xf32>
    %cst_325 = arith.constant dense<0.000000e+00> : vector<8xf32>
    %469 = vector.multi_reduction <add>, %468, %cst_325 [1] : vector<8x32xf32> to vector<8xf32>
    %470 = vector.shape_cast %469 : vector<8xf32> to vector<8x1xf32>
    %cst_326 = arith.constant 3.200000e+01 : f32
    %471 = vector.broadcast %cst_326 : f32 to vector<8x1xf32>
    %472 = arith.divf %470, %471 : vector<8x1xf32>
    %473 = vector.broadcast %472 : vector<8x1xf32> to vector<8x32xf32>
    %474 = arith.subf %468, %473 : vector<8x32xf32>
    %475 = arith.mulf %474, %474 : vector<8x32xf32>
    %cst_327 = arith.constant dense<0.000000e+00> : vector<8xf32>
    %476 = vector.multi_reduction <add>, %475, %cst_327 [1] : vector<8x32xf32> to vector<8xf32>
    %477 = vector.shape_cast %476 : vector<8xf32> to vector<8x1xf32>
    %cst_328 = arith.constant 3.200000e+01 : f32
    %478 = vector.broadcast %cst_328 : f32 to vector<8x1xf32>
    %479 = arith.divf %477, %478 : vector<8x1xf32>
    %480 = vector.broadcast %472 : vector<8x1xf32> to vector<8x32xf32>
    %481 = arith.subf %468, %480 : vector<8x32xf32>
    %cst_329 = arith.constant 9.99999974E-6 : f32
    %482 = vector.broadcast %cst_329 : f32 to vector<8x1xf32>
    %483 = arith.addf %479, %482 : vector<8x1xf32>
    %484 = math.rsqrt %483 : vector<8x1xf32>
    %485 = vector.broadcast %484 : vector<8x1xf32> to vector<8x32xf32>
    %486 = arith.mulf %481, %485 : vector<8x32xf32>
    %487 = vector.broadcast %6 : vector<1x32xf32> to vector<8x32xf32>
    %488 = arith.mulf %486, %487 : vector<8x32xf32>
    %489 = vector.broadcast %7 : vector<1x32xf32> to vector<8x32xf32>
    %490 = arith.addf %488, %489 : vector<8x32xf32>
    %c0_330 = arith.constant 0 : index
    %c0_331 = arith.constant 0 : index
    %491 = vector.load %arg10[%c0_330, %c0_331] : memref<66x32xf32, #tpu.memory_space<vmem>>, vector<32x32xf32>
    %c32 = arith.constant 32 : index
    %c0_332 = arith.constant 0 : index
    %492 = vector.load %arg10[%c32, %c0_332] : memref<66x32xf32, #tpu.memory_space<vmem>>, vector<32x32xf32>
    %c64 = arith.constant 64 : index
    %c0_333 = arith.constant 0 : index
    %493 = vector.load %arg10[%c64, %c0_333] : memref<66x32xf32, #tpu.memory_space<vmem>>, vector<1x32xf32>
    %c65 = arith.constant 65 : index
    %c0_334 = arith.constant 0 : index
    %494 = vector.load %arg10[%c65, %c0_334] : memref<66x32xf32, #tpu.memory_space<vmem>>, vector<1x32xf32>
    %cst_335 = arith.constant dense<0.000000e+00> : vector<8x32xf32>
    %495 = tpu.matmul %490, %491, %cst_335 {dimension_numbers = #tpu.dot_dimension_numbers<[1], [0], [0], [1], [0, 0, 1, 1], [], []>} : vector<8x32xf32>, vector<32x32xf32>, vector<8x32xf32> -> vector<8x32xf32>
    %496 = vector.broadcast %493 : vector<1x32xf32> to vector<8x32xf32>
    %497 = arith.addf %495, %496 : vector<8x32xf32>
    %cst_336 = arith.constant 0.000000e+00 : f32
    %498 = vector.broadcast %cst_336 : f32 to vector<8x32xf32>
    %499 = arith.maximumf %497, %498 : vector<8x32xf32>
    %cst_337 = arith.constant dense<0.000000e+00> : vector<8x32xf32>
    %500 = tpu.matmul %499, %492, %cst_337 {dimension_numbers = #tpu.dot_dimension_numbers<[1], [0], [0], [1], [0, 0, 1, 1], [], []>} : vector<8x32xf32>, vector<32x32xf32>, vector<8x32xf32> -> vector<8x32xf32>
    %501 = vector.broadcast %494 : vector<1x32xf32> to vector<8x32xf32>
    %502 = arith.addf %500, %501 : vector<8x32xf32>
    %503 = tpu.iota {dimensions = array<i32: 1>} : vector<8x32xi32>
    %c0_i32 = arith.constant 0 : i32
    %504 = vector.broadcast %c0_i32 : i32 to vector<8x32xi32>
    %505 = arith.cmpi eq, %503, %504 : vector<8x32xi32>
    %506 = arith.negf %502 : vector<8x32xf32>
    %507 = math.exp %506 : vector<8x32xf32>
    %cst_338 = arith.constant 1.000000e+00 : f32
    %508 = vector.broadcast %cst_338 : f32 to vector<8x32xf32>
    %509 = arith.addf %508, %507 : vector<8x32xf32>
    %510 = arith.divf %508, %509 : vector<8x32xf32>
    %511 = arith.select %505, %510, %502 : vector<8x32xi1>, vector<8x32xf32>
    %512 = tpu.concatenate %490, %511 in 1 : vector<8x32xf32>, vector<8x32xf32> -> vector<8x64xf32>
    %513 = vector.shape_cast %512 : vector<8x64xf32> to vector<1x8x64xf32>
    %c0_339 = arith.constant 0 : index
    %c0_340 = arith.constant 0 : index
    %c0_341 = arith.constant 0 : index
    %514 = vector.load %arg11[%c0_339, %c0_340, %c0_341] : memref<1x8x64xf32, #tpu.memory_space<vmem>>, vector<1x8x64xf32>
    tpu.vector_store %arg11[%c0_339, %c0_340, %c0_341], %513 {strides = array<i32>} : memref<1x8x64xf32, #tpu.memory_space<vmem>>, vector<1x8x64xf32>,
    return
  }
  func.func @transform_0(%arg0: i32) -> (i32, i32, i32) {
    %c0_i32 = arith.constant 0 : i32
    %c0_i32_0 = arith.constant 0 : i32
    %c0_i32_1 = arith.constant 0 : i32
    return %arg0, %c0_i32, %c0_i32_0 : i32, i32, i32
  }
  func.func @transform_1(%arg0: i32) -> (i32, i32) {
    %c0_i32 = arith.constant 0 : i32
    %c0_i32_0 = arith.constant 0 : i32
    %c0_i32_1 = arith.constant 0 : i32
    return %c0_i32, %c0_i32_0 : i32, i32
  }
  func.func @transform_2(%arg0: i32) -> (i32, i32) {
    %c0_i32 = arith.constant 0 : i32
    %c0_i32_0 = arith.constant 0 : i32
    %c0_i32_1 = arith.constant 0 : i32
    return %c0_i32, %c0_i32_0 : i32, i32
  }
  func.func @transform_3(%arg0: i32) -> (i32, i32, i32, i32) {
    %c0_i32 = arith.constant 0 : i32
    %c0_i32_0 = arith.constant 0 : i32
    %c0_i32_1 = arith.constant 0 : i32
    %c0_i32_2 = arith.constant 0 : i32
    %c0_i32_3 = arith.constant 0 : i32
    return %c0_i32, %c0_i32_0, %c0_i32_1, %c0_i32_2 : i32, i32, i32, i32
  }
  func.func @transform_4(%arg0: i32) -> (i32, i32, i32, i32) {
    %c0_i32 = arith.constant 0 : i32
    %c0_i32_0 = arith.constant 0 : i32
    %c0_i32_1 = arith.constant 0 : i32
    %c0_i32_2 = arith.constant 0 : i32
    %c0_i32_3 = arith.constant 0 : i32
    return %c0_i32, %c0_i32_0, %c0_i32_1, %c0_i32_2 : i32, i32, i32, i32
  }
  func.func @transform_5(%arg0: i32) -> (i32, i32, i32) {
    %c0_i32 = arith.constant 0 : i32
    %c0_i32_0 = arith.constant 0 : i32
    %c0_i32_1 = arith.constant 0 : i32
    %c0_i32_2 = arith.constant 0 : i32
    return %c0_i32, %c0_i32_0, %c0_i32_1 : i32, i32, i32
  }
  func.func @transform_6(%arg0: i32) -> (i32, i32, i32) {
    %c0_i32 = arith.constant 0 : i32
    %c0_i32_0 = arith.constant 0 : i32
    %c0_i32_1 = arith.constant 0 : i32
    %c0_i32_2 = arith.constant 0 : i32
    return %c0_i32, %c0_i32_0, %c0_i32_1 : i32, i32, i32
  }
  func.func @transform_7(%arg0: i32) -> (i32, i32, i32) {
    %c0_i32 = arith.constant 0 : i32
    %c0_i32_0 = arith.constant 0 : i32
    %c0_i32_1 = arith.constant 0 : i32
    %c0_i32_2 = arith.constant 0 : i32
    return %c0_i32, %c0_i32_0, %c0_i32_1 : i32, i32, i32
  }
  func.func @transform_8(%arg0: i32) -> (i32, i32, i32) {
    %c0_i32 = arith.constant 0 : i32
    %c0_i32_0 = arith.constant 0 : i32
    %c0_i32_1 = arith.constant 0 : i32
    %c0_i32_2 = arith.constant 0 : i32
    return %c0_i32, %c0_i32_0, %c0_i32_1 : i32, i32, i32
  }
  func.func @transform_9(%arg0: i32) -> (i32, i32) {
    %c0_i32 = arith.constant 0 : i32
    %c0_i32_0 = arith.constant 0 : i32
    %c0_i32_1 = arith.constant 0 : i32
    return %c0_i32, %c0_i32_0 : i32, i32
  }
  func.func @transform_10(%arg0: i32) -> (i32, i32, i32) {
    %c0_i32 = arith.constant 0 : i32
    %c0_i32_0 = arith.constant 0 : i32
    %c0_i32_1 = arith.constant 0 : i32
    return %arg0, %c0_i32, %c0_i32_0 : i32, i32, i32
  }
  func.func @transform_11(%arg0: i32) -> (i32, i32, i32, i32) {
    %c0_i32 = arith.constant 0 : i32
    %c0_i32_0 = arith.constant 0 : i32
    %c0_i32_1 = arith.constant 0 : i32
    %c0_i32_2 = arith.constant 0 : i32
    return %c0_i32, %arg0, %c0_i32_0, %c0_i32_1 : i32, i32, i32, i32
  }
}

</mosaic_0001>

<llo_original>
// kernel: squeeze.3
$region0: #{squeeze.3}
  %s0 = inlined_call_operand.vmem [shape: f32[1,2,8,32], index: 0, kind: input, shape index: {}]
  %s1 = inlined_call_operand.vmem [shape: f32[2,8,4,8], index: 1, kind: output, shape index: {}]
  $region1: #{squeeze.3} parent=0
    #allocation0 [shape = 'u8[65536]{0}', space=vmem, size = 0x10000, scoped, tag = 'scoped mem for output reshape']
    %v2 = vld [vmem:[%s0] sm:$0xff]
    %vm3 = vcmask 64512
    %4 = vst.msk [vmem:[#allocation0] ss:$8 sm:$0xf] %vm3, %v2
    %5 = vst.msk [vmem:[#allocation0] ss:$8 sm:$0xf0] %vm3, %v2
    %s6 = scalar_lea.vmem %s0, 8
    %v7 = vld [vmem:[%s6] sm:$0xff]
    %vm8 = vcmask 64512
    %s9 = scalar_lea.vmem [#allocation0], 64
    %10 = vst.msk [vmem:[%s9] ss:$8 sm:$0xf] %vm8, %v7
    %s11 = scalar_lea.vmem [#allocation0], 64
    %12 = vst.msk [vmem:[%s11] ss:$8 sm:$0xf0] %vm8, %v7
    %v13 = vld [vmem:[%s0] sm:$0xff]
    %14 = vrot.lane.b32.xlu0 %v13, 120
    %v15 = vpop.permute.xlu0 %14
    %vm16 = vcmask 64512
    %s17 = scalar_lea.vmem [#allocation0], 1
    %18 = vst.msk [vmem:[%s17] ss:$8 sm:$0xf] %vm16, %v15
    %s19 = scalar_lea.vmem [#allocation0], 1
    %20 = vst.msk [vmem:[%s19] ss:$8 sm:$0xf0] %vm16, %v15
    %s21 = scalar_lea.vmem %s0, 8
    %v22 = vld [vmem:[%s21] sm:$0xff]
    %23 = vrot.lane.b32.xlu0 %v22, 120
    %v24 = vpop.permute.xlu0 %23
    %vm25 = vcmask 64512
    %s26 = scalar_lea.vmem [#allocation0], 65
    %27 = vst.msk [vmem:[%s26] ss:$8 sm:$0xf] %vm25, %v24
    %s28 = scalar_lea.vmem [#allocation0], 65
    %29 = vst.msk [vmem:[%s28] ss:$8 sm:$0xf0] %vm25, %v24
    %v30 = vld [vmem:[%s0] sm:$0xff]
    %31 = vrot.lane.b32.xlu0 %v30, 112
    %v32 = vpop.permute.xlu0 %31
    %vm33 = vcmask 64512
    %s34 = scalar_lea.vmem [#allocation0], 2
    %35 = vst.msk [vmem:[%s34] ss:$8 sm:$0xf] %vm33, %v32
    %s36 = scalar_lea.vmem [#allocation0], 2
    %37 = vst.msk [vmem:[%s36] ss:$8 sm:$0xf0] %vm33, %v32
    %s38 = scalar_lea.vmem %s0, 8
    %v39 = vld [vmem:[%s38] sm:$0xff]
    %40 = vrot.lane.b32.xlu0 %v39, 112
    %v41 = vpop.permute.xlu0 %40
    %vm42 = vcmask 64512
    %s43 = scalar_lea.vmem [#allocation0], 66
    %44 = vst.msk [vmem:[%s43] ss:$8 sm:$0xf] %vm42, %v41
    %s45 = scalar_lea.vmem [#allocation0], 66
    %46 = vst.msk [vmem:[%s45] ss:$8 sm:$0xf0] %vm42, %v41
    %v47 = vld [vmem:[%s0] sm:$0xff]
    %48 = vrot.lane.b32.xlu0 %v47, 104
    %v49 = vpop.permute.xlu0 %48
    %vm50 = vcmask 64512
    %s51 = scalar_lea.vmem [#allocation0], 3
    %52 = vst.msk [vmem:[%s51] ss:$8 sm:$0xf] %vm50, %v49
    %s53 = scalar_lea.vmem [#allocation0], 3
    %54 = vst.msk [vmem:[%s53] ss:$8 sm:$0xf0] %vm50, %v49
    %s55 = scalar_lea.vmem %s0, 8
    %v56 = vld [vmem:[%s55] sm:$0xff]
    %57 = vrot.lane.b32.xlu0 %v56, 104
    %v58 = vpop.permute.xlu0 %57
    %vm59 = vcmask 64512
    %s60 = scalar_lea.vmem [#allocation0], 67
    %61 = vst.msk [vmem:[%s60] ss:$8 sm:$0xf] %vm59, %v58
    %s62 = scalar_lea.vmem [#allocation0], 67
    %63 = vst.msk [vmem:[%s62] ss:$8 sm:$0xf0] %vm59, %v58
    %s65 = sshll.u32 1, 4
    %s66 = ssub.s32 %s65, 1
    %v68 = vld [vmem:[#allocation0] sm:%s66]
    %s69 = sshll.u32 1, 4
    %s70 = ssub.s32 %s69, 1
    %71 = vst [vmem:[%s1] sm:%s70] %v68
    %s72 = scalar_lea.vmem [#allocation0], 8
    %v73 = vld [vmem:[%s72] sm:%s66]
    %s74 = sshll.u32 1, 4
    %s75 = ssub.s32 %s74, 1
    %s76 = scalar_lea.vmem %s1, 4
    %77 = vst [vmem:[%s76] sm:%s75] %v73
    %s78 = scalar_lea.vmem [#allocation0], 16
    %v79 = vld [vmem:[%s78] sm:%s66]
    %s80 = sshll.u32 1, 4
    %s81 = ssub.s32 %s80, 1
    %s82 = smul.addr 4, 2
    %s83 = scalar_lea.vmem %s1, %s82
    %84 = vst [vmem:[%s83] sm:%s81] %v79
    %s85 = scalar_lea.vmem [#allocation0], 24
    %v86 = vld [vmem:[%s85] sm:%s66]
    %s87 = sshll.u32 1, 4
    %s88 = ssub.s32 %s87, 1
    %s89 = smul.addr 4, 3
    %s90 = scalar_lea.vmem %s1, %s89
    %91 = vst [vmem:[%s90] sm:%s88] %v86
    %s92 = scalar_lea.vmem [#allocation0], 32
    %v93 = vld [vmem:[%s92] sm:%s66]
    %s94 = sshll.u32 1, 4
    %s95 = ssub.s32 %s94, 1
    %s96 = smul.addr 4, 4
    %s97 = scalar_lea.vmem %s1, %s96
    %98 = vst [vmem:[%s97] sm:%s95] %v93
    %s99 = scalar_lea.vmem [#allocation0], 40
    %v100 = vld [vmem:[%s99] sm:%s66]
    %s101 = sshll.u32 1, 4
    %s102 = ssub.s32 %s101, 1
    %s103 = smul.addr 4, 5
    %s104 = scalar_lea.vmem %s1, %s103
    %105 = vst [vmem:[%s104] sm:%s102] %v100
    %s106 = scalar_lea.vmem [#allocation0], 48
    %v107 = vld [vmem:[%s106] sm:%s66]
    %s108 = sshll.u32 1, 4
    %s109 = ssub.s32 %s108, 1
    %s110 = smul.addr 4, 6
    %s111 = scalar_lea.vmem %s1, %s110
    %112 = vst [vmem:[%s111] sm:%s109] %v107
    %s113 = scalar_lea.vmem [#allocation0], 56
    %v114 = vld [vmem:[%s113] sm:%s66]
    %s115 = sshll.u32 1, 4
    %s116 = ssub.s32 %s115, 1
    %s117 = smul.addr 4, 7
    %s118 = scalar_lea.vmem %s1, %s117
    %119 = vst [vmem:[%s118] sm:%s116] %v114
    %s120 = scalar_lea.vmem [#allocation0], 64
    %v121 = vld [vmem:[%s120] sm:%s66]
    %s122 = sshll.u32 1, 4
    %s123 = ssub.s32 %s122, 1
    %s124 = smul.addr 4, 8
    %s125 = scalar_lea.vmem %s1, %s124
    %126 = vst [vmem:[%s125] sm:%s123] %v121
    %s127 = scalar_lea.vmem [#allocation0], 72
    %v128 = vld [vmem:[%s127] sm:%s66]
    %s129 = sshll.u32 1, 4
    %s130 = ssub.s32 %s129, 1
    %s131 = smul.addr 4, 9
    %s132 = scalar_lea.vmem %s1, %s131
    %133 = vst [vmem:[%s132] sm:%s130] %v128
    %s134 = scalar_lea.vmem [#allocation0], 80
    %v135 = vld [vmem:[%s134] sm:%s66]
    %s136 = sshll.u32 1, 4
    %s137 = ssub.s32 %s136, 1
    %s138 = smul.addr 4, 10
    %s139 = scalar_lea.vmem %s1, %s138
    %140 = vst [vmem:[%s139] sm:%s137] %v135
    %s141 = scalar_lea.vmem [#allocation0], 88
    %v142 = vld [vmem:[%s141] sm:%s66]
    %s143 = sshll.u32 1, 4
    %s144 = ssub.s32 %s143, 1
    %s145 = smul.addr 4, 11
    %s146 = scalar_lea.vmem %s1, %s145
    %147 = vst [vmem:[%s146] sm:%s144] %v142
    %s148 = scalar_lea.vmem [#allocation0], 96
    %v149 = vld [vmem:[%s148] sm:%s66]
    %s150 = sshll.u32 1, 4
    %s151 = ssub.s32 %s150, 1
    %s152 = smul.addr 4, 12
    %s153 = scalar_lea.vmem %s1, %s152
    %154 = vst [vmem:[%s153] sm:%s151] %v149
    %s155 = scalar_lea.vmem [#allocation0], 104
    %v156 = vld [vmem:[%s155] sm:%s66]
    %s157 = sshll.u32 1, 4
    %s158 = ssub.s32 %s157, 1
    %s159 = smul.addr 4, 13
    %s160 = scalar_lea.vmem %s1, %s159
    %161 = vst [vmem:[%s160] sm:%s158] %v156
    %s162 = scalar_lea.vmem [#allocation0], 112
    %v163 = vld [vmem:[%s162] sm:%s66]
    %s164 = sshll.u32 1, 4
    %s165 = ssub.s32 %s164, 1
    %s166 = smul.addr 4, 14
    %s167 = scalar_lea.vmem %s1, %s166
    %168 = vst [vmem:[%s167] sm:%s165] %v163
    %s169 = scalar_lea.vmem [#allocation0], 120
    %v170 = vld [vmem:[%s169] sm:%s66]
    %s171 = sshll.u32 1, 4
    %s172 = ssub.s32 %s171, 1
    %s173 = smul.addr 4, 15
    %s174 = scalar_lea.vmem %s1, %s173
    %175 = vst [vmem:[%s174] sm:%s172] %v170

// kernel: _lambda_.1
$region0: #{_lambda_.1}
  #allocation0 [shape = 'u32[]', space=smem, size = 0x4, offset = 0x4, fixed_abs, tag = 'smem constant byte address 0x4 - core index']
  #allocation1 [shape = 'u32[144,128]{1,0:T(1,128)}', space=vmem, size = 0x12000, scoped, tag = 'internal scratch']
  %s0 = inlined_call_operand.vmem [shape: f32[2,8,160], index: 0, kind: input, shape index: {}]
  %s1 = inlined_call_operand.vmem [shape: f32[160,32], index: 1, kind: input, shape index: {}]
  %s2 = inlined_call_operand.vmem [shape: f32[13,32], index: 2, kind: input, shape index: {}]
  %s3 = inlined_call_operand.vmem [shape: f32[2,12,32,8], index: 3, kind: input, shape index: {}]
  %s4 = inlined_call_operand.vmem [shape: f32[2,12,1,8], index: 4, kind: input, shape index: {}]
  %s5 = inlined_call_operand.vmem [shape: f32[2,32,32], index: 5, kind: input, shape index: {}]
  %s6 = inlined_call_operand.vmem [shape: f32[2,32,128], index: 6, kind: input, shape index: {}]
  %s7 = inlined_call_operand.vmem [shape: f32[2,128,32], index: 7, kind: input, shape index: {}]
  %s8 = inlined_call_operand.vmem [shape: f32[2,7,128], index: 8, kind: input, shape index: {}]
  %s9 = inlined_call_operand.vmem [shape: f32[66,32], index: 9, kind: input, shape index: {}]
  %s10 = inlined_call_operand.vmem [shape: f32[2,8,64], index: 10, kind: output, shape index: {0}]
  %s11 = inlined_call_operand.vmem [shape: f32[2,2,8,32], index: 11, kind: output, shape index: {1}]
  %12 = xla_tuple %s10, %s11
  %s13 = sld [smem:[#allocation0]]
  $region115: #{_lambda_.1} parent=0
    _
  %s15 = ssub.s32 1, %s13
  %s16 = scalar_select 0, %s15, %s13
  $region1: #{_lambda_.1} parent=0
    #allocation2 [shape = 'u8[16384]{0}', space=vmem, size = 0x4000, scoped, tag = 'output window, operand 1']
    loop: start=0, step=1, limit=4
    $region2: #{_lambda_.1} parent=1 // loop_pre_header
      _
    $region3: #{_lambda_.1} parent=1 // loop_header
      %s18 = sphi 0, %s22
      %p19 = scmp.ge.s32.totalorder %s18, 4
      %s28 = sphi 0, %s30
      %s31 = sphi 0, %s28
      %s32 = sphi 0, %s31
      %s48 = sphi 0, %s32
      %s52 = sphi 0, %s52
      %s54 = sphi 0, %s52
      %s55 = sphi 0, %s54
      %s69 = sphi 0, %s55
      %s73 = sphi 0, %s73
      %s75 = sphi 0, %s73
      %s76 = sphi 0, %s75
      %s90 = sphi 0, %s76
      %s94 = sphi 0, %s94
      %s96 = sphi 0, %s94
      %s97 = sphi 0, %s96
      %s111 = sphi 0, %s97
      %s115 = sphi 0, %s115
      %s117 = sphi 0, %s115
      %s118 = sphi 0, %s117
      %s132 = sphi 0, %s118
      %s136 = sphi 0, %s136
      %s138 = sphi 0, %s136
      %s139 = sphi 0, %s138
      %s153 = sphi 0, %s139
      %s157 = sphi 0, %s157
      %s159 = sphi 0, %s157
      %s160 = sphi 0, %s159
      %s174 = sphi 0, %s160
      %s178 = sphi 0, %s178
      %s180 = sphi 0, %s178
      %s181 = sphi 0, %s180
      %s195 = sphi 0, %s181
      %s199 = sphi 0, %s199
      %s201 = sphi 0, %s199
      %s202 = sphi 0, %s201
      %s216 = sphi 0, %s202
      %s220 = sphi 0, %s220
      %s222 = sphi 0, %s220
      %s223 = sphi 0, %s222
      %s237 = sphi 0, %s223
      %s243 = sphi 0, %s245
      %s246 = sphi 0, %s243
      %s247 = sphi 0, %s246
      %s263 = sphi 0, %s247
      %s269 = sphi 0, %s271
      %s272 = sphi 0, %s269
      %s273 = sphi 0, %s272
      %s289 = sphi 0, %s273
    $region4: #{_lambda_.1} parent=1 // loop_header_branch
      %21 = sbr.rel (%p19) target = $region8
    $region5: #{_lambda_.1} parent=1 // loop_body
      %s23 = ssub.s32 %s18, 1
      %s24 = ssub.s32 %s18, 2
      %s25 = sadd.s32 %s18, 1
      %s26 = ssub.s32 %s18, %s25
      %p27 = scmp.eq.s32.totalorder %s26, 0
      %s29 = sadd.s32 %s28, 1
      %s30 = scalar_select %p27, %s28, %s29
      %p33 = pneg %p27
      %p34 = scmp.eq.s32.totalorder %s18, 1
      %p35 = por %p33, %p34
      %p36 = scmp.ne.s32.totalorder %s28, %s31
      %p37 = scmp.eq.s32.totalorder %s18, 0
      %p38 = por %p36, %p37
      %p39 = scmp.ne.s32.totalorder %s28, %s31
      %p40 = scmp.eq.s32.totalorder %s23, 1
      %p41 = por %p39, %p40
      %p42 = scmp.ne.s32.totalorder %s31, %s32
      %p43 = scmp.eq.s32.totalorder %s23, 0
      %p44 = por %p42, %p43
      %p45 = scmp.ne.s32.totalorder %s31, %s32
      %p46 = scmp.eq.s32.totalorder %s24, 1
      %p47 = por %p45, %p46
      %p49 = scmp.ne.s32.totalorder %s32, %s48
      %p50 = scmp.eq.s32.totalorder %s24, 0
      %p51 = por %p49, %p50
      %s53 = sadd.s32 %s52, 1
      %p56 = scmp.eq.s32.totalorder %s18, 1
      %p57 = scmp.ne.s32.totalorder %s52, %s54
      %p58 = scmp.eq.s32.totalorder %s18, 0
      %p59 = por %p57, %p58
      %p60 = scmp.ne.s32.totalorder %s52, %s54
      %p61 = scmp.eq.s32.totalorder %s23, 1
      %p62 = por %p60, %p61
      %p63 = scmp.ne.s32.totalorder %s54, %s55
      %p64 = scmp.eq.s32.totalorder %s23, 0
      %p65 = por %p63, %p64
      %p66 = scmp.ne.s32.totalorder %s54, %s55
      %p67 = scmp.eq.s32.totalorder %s24, 1
      %p68 = por %p66, %p67
      %p70 = scmp.ne.s32.totalorder %s55, %s69
      %p71 = scmp.eq.s32.totalorder %s24, 0
      %p72 = por %p70, %p71
      %s74 = sadd.s32 %s73, 1
      %p77 = scmp.eq.s32.totalorder %s18, 1
      %p78 = scmp.ne.s32.totalorder %s73, %s75
      %p79 = scmp.eq.s32.totalorder %s18, 0
      %p80 = por %p78, %p79
      %p81 = scmp.ne.s32.totalorder %s73, %s75
      %p82 = scmp.eq.s32.totalorder %s23, 1
      %p83 = por %p81, %p82
      %p84 = scmp.ne.s32.totalorder %s75, %s76
      %p85 = scmp.eq.s32.totalorder %s23, 0
      %p86 = por %p84, %p85
      %p87 = scmp.ne.s32.totalorder %s75, %s76
      %p88 = scmp.eq.s32.totalorder %s24, 1
      %p89 = por %p87, %p88
      %p91 = scmp.ne.s32.totalorder %s76, %s90
      %p92 = scmp.eq.s32.totalorder %s24, 0
      %p93 = por %p91, %p92
      %s95 = sadd.s32 %s94, 1
      %p98 = scmp.eq.s32.totalorder %s18, 1
      %p99 = scmp.ne.s32.totalorder %s94, %s96
      %p100 = scmp.eq.s32.totalorder %s18, 0
      %p101 = por %p99, %p100
      %p102 = scmp.ne.s32.totalorder %s94, %s96
      %p103 = scmp.eq.s32.totalorder %s23, 1
      %p104 = por %p102, %p103
      %p105 = scmp.ne.s32.totalorder %s96, %s97
      %p106 = scmp.eq.s32.totalorder %s23, 0
      %p107 = por %p105, %p106
      %p108 = scmp.ne.s32.totalorder %s96, %s97
      %p109 = scmp.eq.s32.totalorder %s24, 1
      %p110 = por %p108, %p109
      %p112 = scmp.ne.s32.totalorder %s97, %s111
      %p113 = scmp.eq.s32.totalorder %s24, 0
      %p114 = por %p112, %p113
      %s116 = sadd.s32 %s115, 1
      %p119 = scmp.eq.s32.totalorder %s18, 1
      %p120 = scmp.ne.s32.totalorder %s115, %s117
      %p121 = scmp.eq.s32.totalorder %s18, 0
      %p122 = por %p120, %p121
      %p123 = scmp.ne.s32.totalorder %s115, %s117
      %p124 = scmp.eq.s32.totalorder %s23, 1
      %p125 = por %p123, %p124
      %p126 = scmp.ne.s32.totalorder %s117, %s118
      %p127 = scmp.eq.s32.totalorder %s23, 0
      %p128 = por %p126, %p127
      %p129 = scmp.ne.s32.totalorder %s117, %s118
      %p130 = scmp.eq.s32.totalorder %s24, 1
      %p131 = por %p129, %p130
      %p133 = scmp.ne.s32.totalorder %s118, %s132
      %p134 = scmp.eq.s32.totalorder %s24, 0
      %p135 = por %p133, %p134
      %s137 = sadd.s32 %s136, 1
      %p140 = scmp.eq.s32.totalorder %s18, 1
      %p141 = scmp.ne.s32.totalorder %s136, %s138
      %p142 = scmp.eq.s32.totalorder %s18, 0
      %p143 = por %p141, %p142
      %p144 = scmp.ne.s32.totalorder %s136, %s138
      %p145 = scmp.eq.s32.totalorder %s23, 1
      %p146 = por %p144, %p145
      %p147 = scmp.ne.s32.totalorder %s138, %s139
      %p148 = scmp.eq.s32.totalorder %s23, 0
      %p149 = por %p147, %p148
      %p150 = scmp.ne.s32.totalorder %s138, %s139
      %p151 = scmp.eq.s32.totalorder %s24, 1
      %p152 = por %p150, %p151
      %p154 = scmp.ne.s32.totalorder %s139, %s153
      %p155 = scmp.eq.s32.totalorder %s24, 0
      %p156 = por %p154, %p155
      %s158 = sadd.s32 %s157, 1
      %p161 = scmp.eq.s32.totalorder %s18, 1
      %p162 = scmp.ne.s32.totalorder %s157, %s159
      %p163 = scmp.eq.s32.totalorder %s18, 0
      %p164 = por %p162, %p163
      %p165 = scmp.ne.s32.totalorder %s157, %s159
      %p166 = scmp.eq.s32.totalorder %s23, 1
      %p167 = por %p165, %p166
      %p168 = scmp.ne.s32.totalorder %s159, %s160
      %p169 = scmp.eq.s32.totalorder %s23, 0
      %p170 = por %p168, %p169
      %p171 = scmp.ne.s32.totalorder %s159, %s160
      %p172 = scmp.eq.s32.totalorder %s24, 1
      %p173 = por %p171, %p172
      %p175 = scmp.ne.s32.totalorder %s160, %s174
      %p176 = scmp.eq.s32.totalorder %s24, 0
      %p177 = por %p175, %p176
      %s179 = sadd.s32 %s178, 1
      %p182 = scmp.eq.s32.totalorder %s18, 1
      %p183 = scmp.ne.s32.totalorder %s178, %s180
      %p184 = scmp.eq.s32.totalorder %s18, 0
      %p185 = por %p183, %p184
      %p186 = scmp.ne.s32.totalorder %s178, %s180
      %p187 = scmp.eq.s32.totalorder %s23, 1
      %p188 = por %p186, %p187
      %p189 = scmp.ne.s32.totalorder %s180, %s181
      %p190 = scmp.eq.s32.totalorder %s23, 0
      %p191 = por %p189, %p190
      %p192 = scmp.ne.s32.totalorder %s180, %s181
      %p193 = scmp.eq.s32.totalorder %s24, 1
      %p194 = por %p192, %p193
      %p196 = scmp.ne.s32.totalorder %s181, %s195
      %p197 = scmp.eq.s32.totalorder %s24, 0
      %p198 = por %p196, %p197
      %s200 = sadd.s32 %s199, 1
      %p203 = scmp.eq.s32.totalorder %s18, 1
      %p204 = scmp.ne.s32.totalorder %s199, %s201
      %p205 = scmp.eq.s32.totalorder %s18, 0
      %p206 = por %p204, %p205
      %p207 = scmp.ne.s32.totalorder %s199, %s201
      %p208 = scmp.eq.s32.totalorder %s23, 1
      %p209 = por %p207, %p208
      %p210 = scmp.ne.s32.totalorder %s201, %s202
      %p211 = scmp.eq.s32.totalorder %s23, 0
      %p212 = por %p210, %p211
      %p213 = scmp.ne.s32.totalorder %s201, %s202
      %p214 = scmp.eq.s32.totalorder %s24, 1
      %p215 = por %p213, %p214
      %p217 = scmp.ne.s32.totalorder %s202, %s216
      %p218 = scmp.eq.s32.totalorder %s24, 0
      %p219 = por %p217, %p218
      %s221 = sadd.s32 %s220, 1
      %p224 = scmp.eq.s32.totalorder %s18, 1
      %p225 = scmp.ne.s32.totalorder %s220, %s222
      %p226 = scmp.eq.s32.totalorder %s18, 0
      %p227 = por %p225, %p226
      %p228 = scmp.ne.s32.totalorder %s220, %s222
      %p229 = scmp.eq.s32.totalorder %s23, 1
      %p230 = por %p228, %p229
      %p231 = scmp.ne.s32.totalorder %s222, %s223
      %p232 = scmp.eq.s32.totalorder %s23, 0
      %p233 = por %p231, %p232
      %p234 = scmp.ne.s32.totalorder %s222, %s223
      %p235 = scmp.eq.s32.totalorder %s24, 1
      %p236 = por %p234, %p235
      %p238 = scmp.ne.s32.totalorder %s223, %s237
      %p239 = scmp.eq.s32.totalorder %s24, 0
      %p240 = por %p238, %p239
      %s241 = ssub.s32 %s18, %s25
      %p242 = scmp.eq.s32.totalorder %s241, 0
      %s244 = sadd.s32 %s243, 1
      %s245 = scalar_select %p242, %s243, %s244
      %p248 = pneg %p242
      %p249 = scmp.eq.s32.totalorder %s18, 1
      %p250 = por %p248, %p249
      %p251 = scmp.ne.s32.totalorder %s243, %s246
      %p252 = scmp.eq.s32.totalorder %s18, 0
      %p253 = por %p251, %p252
      %p254 = scmp.ne.s32.totalorder %s243, %s246
      %p255 = scmp.eq.s32.totalorder %s23, 1
      %p256 = por %p254, %p255
      %p257 = scmp.ne.s32.totalorder %s246, %s247
      %p258 = scmp.eq.s32.totalorder %s23, 0
      %p259 = por %p257, %p258
      %p260 = scmp.ne.s32.totalorder %s246, %s247
      %p261 = scmp.eq.s32.totalorder %s24, 1
      %p262 = por %p260, %p261
      %p264 = scmp.ne.s32.totalorder %s247, %s263
      %p265 = scmp.eq.s32.totalorder %s24, 0
      %p266 = por %p264, %p265
      %s267 = ssub.s32 %s18, %s25
      %p268 = scmp.eq.s32.totalorder %s267, 0
      %s270 = sadd.s32 %s269, 1
      %s271 = scalar_select %p268, %s269, %s270
      %p274 = pneg %p268
      %p275 = scmp.eq.s32.totalorder %s18, 1
      %p276 = por %p274, %p275
      %p277 = scmp.ne.s32.totalorder %s269, %s272
      %p278 = scmp.eq.s32.totalorder %s18, 0
      %p279 = por %p277, %p278
      %p280 = scmp.ne.s32.totalorder %s269, %s272
      %p281 = scmp.eq.s32.totalorder %s23, 1
      %p282 = por %p280, %p281
      %p283 = scmp.ne.s32.totalorder %s272, %s273
      %p284 = scmp.eq.s32.totalorder %s23, 0
      %p285 = por %p283, %p284
      %p286 = scmp.ne.s32.totalorder %s272, %s273
      %p287 = scmp.eq.s32.totalorder %s24, 1
      %p288 = por %p286, %p287
      %p290 = scmp.ne.s32.totalorder %s273, %s289
      %p291 = scmp.eq.s32.totalorder %s24, 0
      %p292 = por %p290, %p291
      %p293 = scmp.le.s32.totalorder 1, %s18
      %p294 = scmp.lt.s32.totalorder %s18, 3
      %p295 = pnand %p293, %p294
      %p296 = pneg %p295
      // Predicated region
      $region9: #{_lambda_.1} parent=5 // pred_check
        _
      $region10: #{_lambda_.1} parent=5 // pred_check_branch
        %298 = sbr.rel (%p295) target = $region12
      $region11: #{_lambda_.1} parent=5 // pred_region
        %s299 = ssub.s32 %s18, 1
        // Predicated region
        $region13: #{_lambda_.1} parent=11 // pred_check
          %p300 = pneg %p65
        $region14: #{_lambda_.1} parent=11 // pred_check_branch
          %302 = sbr.rel (%p300) target = $region16
        $region15: #{_lambda_.1} parent=11 // pred_region
          _
        $region16: #{_lambda_.1} parent=11 // pred_fallthru
          _
        // Predicated region
        $region17: #{_lambda_.1} parent=11 // pred_check
          %p303 = pneg %p86
        $region18: #{_lambda_.1} parent=11 // pred_check_branch
          %305 = sbr.rel (%p303) target = $region20
        $region19: #{_lambda_.1} parent=11 // pred_region
          _
        $region20: #{_lambda_.1} parent=11 // pred_fallthru
          _
        // Predicated region
        $region21: #{_lambda_.1} parent=11 // pred_check
          %p306 = pneg %p107
        $region22: #{_lambda_.1} parent=11 // pred_check_branch
          %308 = sbr.rel (%p306) target = $region24
        $region23: #{_lambda_.1} parent=11 // pred_region
          _
        $region24: #{_lambda_.1} parent=11 // pred_fallthru
          _
        // Predicated region
        $region25: #{_lambda_.1} parent=11 // pred_check
          %p309 = pneg %p128
        $region26: #{_lambda_.1} parent=11 // pred_check_branch
          %311 = sbr.rel (%p309) target = $region28
        $region27: #{_lambda_.1} parent=11 // pred_region
          _
        $region28: #{_lambda_.1} parent=11 // pred_fallthru
          _
        // Predicated region
        $region29: #{_lambda_.1} parent=11 // pred_check
          %p312 = pneg %p149
        $region30: #{_lambda_.1} parent=11 // pred_check_branch
          %314 = sbr.rel (%p312) target = $region32
        $region31: #{_lambda_.1} parent=11 // pred_region
          _
        $region32: #{_lambda_.1} parent=11 // pred_fallthru
          _
        // Predicated region
        $region33: #{_lambda_.1} parent=11 // pred_check
          %p315 = pneg %p170
        $region34: #{_lambda_.1} parent=11 // pred_check_branch
          %317 = sbr.rel (%p315) target = $region36
        $region35: #{_lambda_.1} parent=11 // pred_region
          _
        $region36: #{_lambda_.1} parent=11 // pred_fallthru
          _
        // Predicated region
        $region37: #{_lambda_.1} parent=11 // pred_check
          %p318 = pneg %p191
        $region38: #{_lambda_.1} parent=11 // pred_check_branch
          %320 = sbr.rel (%p318) target = $region40
        $region39: #{_lambda_.1} parent=11 // pred_region
          _
        $region40: #{_lambda_.1} parent=11 // pred_fallthru
          _
        // Predicated region
        $region41: #{_lambda_.1} parent=11 // pred_check
          %p321 = pneg %p212
        $region42: #{_lambda_.1} parent=11 // pred_check_branch
          %323 = sbr.rel (%p321) target = $region44
        $region43: #{_lambda_.1} parent=11 // pred_region
          _
        $region44: #{_lambda_.1} parent=11 // pred_fallthru
          _
        // Predicated region
        $region45: #{_lambda_.1} parent=11 // pred_check
          %p324 = pneg %p233
        $region46: #{_lambda_.1} parent=11 // pred_check_branch
          %326 = sbr.rel (%p324) target = $region48
        $region47: #{_lambda_.1} parent=11 // pred_region
          _
        $region48: #{_lambda_.1} parent=11 // pred_fallthru
          _
      $region12: #{_lambda_.1} parent=5 // pred_fallthru
        _
      %p327 = scmp.lt.s32.totalorder %s18, 2
      // Predicated region
      $region49: #{_lambda_.1} parent=5 // pred_check
        %p328 = pneg %p327
      $region50: #{_lambda_.1} parent=5 // pred_check_branch
        %330 = sbr.rel (%p328) target = $region52
      $region51: #{_lambda_.1} parent=5 // pred_region
        // Predicated region
        $region53: #{_lambda_.1} parent=51 // pred_check
          %p331 = pneg %p38
        $region54: #{_lambda_.1} parent=51 // pred_check_branch
          %333 = sbr.rel (%p331) target = $region56
        $region55: #{_lambda_.1} parent=51 // pred_region
          %p334 = scmp.lt.s32.totalorder %s18, 1
          %s335 = scalar_select %p334, %s18, 1
          %s336 = smul.addr %s335, 2
          %s337 = smul.addr %s336, 8
          %s338 = scalar_lea.vmem %s0, %s337
        $region56: #{_lambda_.1} parent=51 // pred_fallthru
          _
      $region52: #{_lambda_.1} parent=5 // pred_fallthru
        _
      %p339 = scmp.le.s32.totalorder 1, %s18
      %p340 = scmp.lt.s32.totalorder %s18, 3
      %p341 = pnand %p339, %p340
      %p342 = pneg %p341
      // Predicated region
      $region57: #{_lambda_.1} parent=5 // pred_check
        _
      $region58: #{_lambda_.1} parent=5 // pred_check_branch
        %344 = sbr.rel (%p341) target = $region60
      $region59: #{_lambda_.1} parent=5 // pred_region
        %s345 = ssub.s32 %s18, 1
        %p346 = scmp.lt.s32.totalorder %s23, 1
        %s347 = scalar_select %p346, %s23, 1
        %s348 = smul.addr %s347, 2
        %s349 = smul.addr %s348, 8
        %s350 = scalar_lea.vmem %s0, %s349
        %p351 = pneg %p44
        %p352 = pneg %p41
        %p353 = pneg %p65
        %p354 = pneg %p62
        %p355 = pneg %p86
        %p356 = pneg %p83
        %p357 = pneg %p107
        %p358 = pneg %p104
        %p359 = pneg %p128
        %p360 = pneg %p125
        %p361 = pneg %p149
        %p362 = pneg %p146
        %p363 = pneg %p170
        %p364 = pneg %p167
        %p365 = pneg %p191
        %p366 = pneg %p188
        %p367 = pneg %p212
        %p368 = pneg %p209
        %p369 = pneg %p233
        %p370 = pneg %p230
        %p371 = pneg %p259
        %p372 = pneg %p256
        %p373 = scmp.lt.s32.totalorder %s23, 1
        %s374 = scalar_select %p373, %s23, 1
        %s375 = smul.addr %s374, 8
        %s376 = scalar_lea.vmem %s10, %s375
        %p377 = pneg %p285
        %p378 = pneg %p282
        %s379 = sand.u32 %s272, 1
        %s380 = sand.u32 %s272, 1
        %s381 = smul.addr %s380, 16
        %s382 = scalar_lea.vmem [#allocation2], %s381
        %p383 = scmp.lt.s32.totalorder %s23, 1
        %s384 = scalar_select %p383, %s23, 1
        %s385 = smul.addr %s384, 2
        %s386 = smul.addr %s385, 8
        %s387 = scalar_lea.vmem %s0, %s386
        %p388 = scmp.lt.s32.totalorder %s23, 1
        %s389 = scalar_select %p388, %s23, 1
        %s390 = smul.addr %s389, 8
        %s391 = scalar_lea.vmem %s10, %s390
        %v392 = vld [vmem:[%s387] sm:$0xff]
        %v393 = vld [vmem:[%s387 + $0x8] sm:$0xff]
        %v394 = vld [vmem:[%s2] sm:$0xff]
        %v395 = vld [vmem:[%s2 + $0x8] sm:$0x1]
        %v396 = vld [vmem:[%s2 + $0x9] sm:$0x1]
        %v397 = vld [vmem:[%s2 + $0xa] sm:$0x1]
        %v398 = vld [vmem:[%s2 + $0xb] sm:$0x1]
        %v399 = vld [vmem:[%s2 + $0xc] sm:$0x1]
        %v400 = vld [vmem:[%s1] sm:$0xff]
        %v401 = vld [vmem:[%s1 + $0x8] sm:$0xff]
        %v402 = vld [vmem:[%s1 + $0x10] sm:$0xff]
        %v403 = vld [vmem:[%s1 + $0x18] sm:$0xff]
        %v404 = vld [vmem:[%s1 + $0x20] sm:$0xff]
        %v405 = vld [vmem:[%s1 + $0x28] sm:$0xff]
        %v406 = vld [vmem:[%s1 + $0x30] sm:$0xff]
        %v407 = vld [vmem:[%s1 + $0x38] sm:$0xff]
        %v408 = vld [vmem:[%s1 + $0x40] sm:$0xff]
        %v409 = vld [vmem:[%s1 + $0x48] sm:$0xff]
        %v410 = vld [vmem:[%s1 + $0x50] sm:$0xff]
        %v411 = vld [vmem:[%s1 + $0x58] sm:$0xff]
        %v412 = vld [vmem:[%s1 + $0x60] sm:$0xff]
        %v413 = vld [vmem:[%s1 + $0x68] sm:$0xff]
        %v414 = vld [vmem:[%s1 + $0x70] sm:$0xff]
        %v415 = vld [vmem:[%s1 + $0x78] sm:$0xff]
        %v416 = vld [vmem:[%s1 + $0x80] sm:$0xff]
        %v417 = vld [vmem:[%s1 + $0x88] sm:$0xff]
        %v418 = vld [vmem:[%s1 + $0x90] sm:$0xff]
        %v419 = vld [vmem:[%s1 + $0x98] sm:$0xff]
        %v420 = vlaneseq
        %v421 = vshrl.u32 %v420, 7
        %v422 = vsub.s32 0, %v421
        %v423 = vrot.slane %v395, %v422
        %vm424 = vcmask 261120
        %v426 = vsel %vm424, %v393, 0
        %428 = vmatprep.subr.mxu0 0.0
        %429 = vmatpush1.msra.mxu0 %v415
        %430 = vmatprep.subr.mxu0 0.0
        %431 = vmatpush1.msra.mxu0 %v414
        %432 = vmatprep.subr.mxu0 0.0
        %433 = vmatpush1.msra.mxu0 %v413
        %434 = vmatprep.subr.mxu0 0.0
        %435 = vmatpush1.msra.mxu0 %v412
        %436 = vmatprep.subr.mxu0 0.0
        %437 = vmatpush1.msra.mxu0 %v411
        %438 = vmatprep.subr.mxu0 0.0
        %439 = vmatpush1.msra.mxu0 %v410
        %440 = vmatprep.subr.mxu0 0.0
        %441 = vmatpush1.msra.mxu0 %v409
        %442 = vmatprep.subr.mxu0 0.0
        %443 = vmatpush1.msra.mxu0 %v408
        %444 = vmatprep.subr.mxu0 0.0
        %445 = vmatpush1.msra.mxu0 %v407
        %446 = vmatprep.subr.mxu0 0.0
        %447 = vmatpush1.msra.mxu0 %v406
        %448 = vmatprep.subr.mxu0 0.0
        %449 = vmatpush1.msra.mxu0 %v405
        %450 = vmatprep.subr.mxu0 0.0
        %451 = vmatpush1.msra.mxu0 %v404
        %452 = vmatprep.subr.mxu0 0.0
        %453 = vmatpush1.msra.mxu0 %v403
        %454 = vmatprep.subr.mxu0 0.0
        %455 = vmatpush1.msra.mxu0 %v402
        %456 = vmatprep.subr.mxu0 0.0
        %457 = vmatpush1.msra.mxu0 %v401
        %458 = vmatprep.subr.mxu0 0.0
        %459 = vmatpush1.msra.mxu0 %v400
        %460 = vmatprep.subr.mxu0 0.0
        %461 = vmatpush2.msra.mxu0 0.0
        %462 = vmatprep.subr.mxu0 0.0
        %463 = vmatpush2.msra.mxu0 0.0
        %464 = vmatprep.subr.mxu0 0.0
        %465 = vmatpush2.msra.mxu0 0.0
        %466 = vmatprep.subr.mxu0 0.0
        %467 = vmatpush2.msra.mxu0 0.0
        %468 = vmatprep.subr.mxu0 0.0
        %469 = vmatpush2.msra.mxu0 0.0
        %470 = vmatprep.subr.mxu0 0.0
        %471 = vmatpush2.msra.mxu0 0.0
        %472 = vmatprep.subr.mxu0 0.0
        %473 = vmatpush2.msra.mxu0 0.0
        %474 = vmatprep.subr.mxu0 0.0
        %475 = vmatpush2.msra.mxu0 0.0
        %476 = vmatprep.subr.mxu0 0.0
        %477 = vmatpush2.msra.mxu0 0.0
        %478 = vmatprep.subr.mxu0 0.0
        %479 = vmatpush2.msra.mxu0 0.0
        %480 = vmatprep.subr.mxu0 0.0
        %481 = vmatpush2.msra.mxu0 0.0
        %482 = vmatprep.subr.mxu0 0.0
        %483 = vmatpush2.msra.mxu0 0.0
        %484 = vmatprep.subr.mxu0 0.0
        %485 = vmatpush2.msra.mxu0 %v419
        %486 = vmatprep.subr.mxu0 0.0
        %487 = vmatpush2.msra.mxu0 %v418
        %488 = vmatprep.subr.mxu0 0.0
        %489 = vmatpush2.msra.mxu0 %v417
        %490 = vmatprep.subr.mxu0 0.0
        %491 = vmatpush2.msra.mxu0 %v416
        %492 = vmatprep.mubr.f32.mxu0 %v426
        %493 = vmatmul.mubr.f32.gmra.mxu0 %v392
        %v494 = vpop.f32.mrf.mxu0
        %v495 = vadd.f32 %v423, %v494
        %v496 = vpop.f32.mrf.mxu0
        %497 = vdwg.mxu0
        %v498 = vadd.f32 %v495, %v394
        %v499 = vsel %vm424, %v498, 0.0
        %500 = vadd.xlane.f32.xlu0 %v499
        %v501 = vpop.xlane.xlu0 %500
        %v502 = vrcp.pop 32.0
        %v503 = vmul.f32 %v501, %v502
        %v504 = vsub.f32 %v498, %v503
        %v505 = vmul.f32 %v504, %v504
        %v506 = vsel %vm424, %v505, 0.0
        %507 = vadd.xlane.f32.xlu0 %v506
        %v508 = vpop.xlane.xlu0 %507
        %v509 = vmul.f32 %v508, %v502
        %v510 = vadd.f32 %v509, 1e-05
        %v511 = vrsqrt.pop %v510
        %v512 = vmul.f32 %v504, %v511
        %v513 = vlaneseq
        %v514 = vshrl.u32 %v513, 7
        %v515 = vsub.s32 0, %v514
        %v516 = vrot.slane %v396, %v515
        %v517 = vmul.f32 %v512, %v516
        %v518 = vlaneseq
        %v519 = vshrl.u32 %v518, 7
        %v520 = vsub.s32 0, %v519
        %v521 = vrot.slane %v397, %v520
        %v522 = vadd.f32 %v517, %v521
        %v523 = vld [vmem:[%s8] sm:$0x7f]
        %v524 = vld [vmem:[%s3] sm:$0xff]
        %v525 = vld [vmem:[%s3 + $0x8] sm:$0xff]
        %v526 = vld [vmem:[%s3 + $0x10] sm:$0xff]
        %v527 = vld [vmem:[%s3 + $0x18] sm:$0xff]
        %v528 = vld [vmem:[%s4] sm:$0x1]
        %v530 = vlaneseq
        %v531 = vshrl.u32 %v530, 7
        %v532 = vsub.s32 0, %v531
        %v533 = vrot.slane %v528, %v532
        %v536 = vsel %vm424, %v522, 0
        %538 = vmatprep.subr.mxu0 0.0
        %539 = vmatpush1.msra.mxu0 0.0
        %540 = vmatprep.subr.mxu0 0.0
        %541 = vmatpush1.msra.mxu0 0.0
        %542 = vmatprep.subr.mxu0 0.0
        %543 = vmatpush1.msra.mxu0 0.0
        %544 = vmatprep.subr.mxu0 0.0
        %545 = vmatpush1.msra.mxu0 0.0
        %546 = vmatprep.subr.mxu0 0.0
        %547 = vmatpush1.msra.mxu0 0.0
        %548 = vmatprep.subr.mxu0 0.0
        %549 = vmatpush1.msra.mxu0 0.0
        %550 = vmatprep.subr.mxu0 0.0
        %551 = vmatpush1.msra.mxu0 0.0
        %552 = vmatprep.subr.mxu0 0.0
        %553 = vmatpush1.msra.mxu0 0.0
        %554 = vmatprep.subr.mxu0 0.0
        %555 = vmatpush1.msra.mxu0 0.0
        %556 = vmatprep.subr.mxu0 0.0
        %557 = vmatpush1.msra.mxu0 0.0
        %558 = vmatprep.subr.mxu0 0.0
        %559 = vmatpush1.msra.mxu0 0.0
        %560 = vmatprep.subr.mxu0 0.0
        %561 = vmatpush1.msra.mxu0 0.0
        %562 = vmatprep.subr.mxu0 0.0
        %563 = vmatpush1.msra.mxu0 %v527
        %564 = vmatprep.subr.mxu0 0.0
        %565 = vmatpush1.msra.mxu0 %v526
        %566 = vmatprep.subr.mxu0 0.0
        %567 = vmatpush1.msra.mxu0 %v525
        %568 = vmatprep.subr.mxu0 0.0
        %569 = vmatpush1.msra.mxu0 %v524
        %570 = vmatprep.subr.mxu0 0.0
        %571 = vmatpush2.msra.mxu0 0.0
        %572 = vmatprep.subr.mxu0 0.0
        %573 = vmatpush2.msra.mxu0 0.0
        %574 = vmatprep.subr.mxu0 0.0
        %575 = vmatpush2.msra.mxu0 0.0
        %576 = vmatprep.subr.mxu0 0.0
        %577 = vmatpush2.msra.mxu0 0.0
        %578 = vmatprep.subr.mxu0 0.0
        %579 = vmatpush2.msra.mxu0 0.0
        %580 = vmatprep.subr.mxu0 0.0
        %581 = vmatpush2.msra.mxu0 0.0
        %582 = vmatprep.subr.mxu0 0.0
        %583 = vmatpush2.msra.mxu0 0.0
        %584 = vmatprep.subr.mxu0 0.0
        %585 = vmatpush2.msra.mxu0 0.0
        %586 = vmatprep.subr.mxu0 0.0
        %587 = vmatpush2.msra.mxu0 0.0
        %588 = vmatprep.subr.mxu0 0.0
        %589 = vmatpush2.msra.mxu0 0.0
        %590 = vmatprep.subr.mxu0 0.0
        %591 = vmatpush2.msra.mxu0 0.0
        %592 = vmatprep.subr.mxu0 0.0
        %593 = vmatpush2.msra.mxu0 0.0
        %594 = vmatprep.subr.mxu0 0.0
        %595 = vmatpush2.msra.mxu0 0.0
        %596 = vmatprep.subr.mxu0 0.0
        %597 = vmatpush2.msra.mxu0 0.0
        %598 = vmatprep.subr.mxu0 0.0
        %599 = vmatpush2.msra.mxu0 0.0
        %600 = vmatprep.subr.mxu0 0.0
        %601 = vmatpush2.msra.mxu0 0.0
        %602 = vmatprep.mubr.f32.mxu0 0.0
        %603 = vmatmul.mubr.f32.gmra.mxu0 %v536
        %v604 = vpop.f32.mrf.mxu0
        %v605 = vadd.f32 %v533, %v604
        %v606 = vpop.f32.mrf.mxu0
        %607 = vdwg.mxu0
        %s608 = scalar_lea.vmem %s3, 32
        %v609 = vld [vmem:[%s608] sm:$0xff]
        %v610 = vld [vmem:[%s608 + $0x8] sm:$0xff]
        %v611 = vld [vmem:[%s608 + $0x10] sm:$0xff]
        %v612 = vld [vmem:[%s608 + $0x18] sm:$0xff]
        %s613 = scalar_lea.vmem %s4, 1
        %v614 = vld [vmem:[%s613] sm:$0x1]
        %v616 = vlaneseq
        %v617 = vshrl.u32 %v616, 7
        %v618 = vsub.s32 0, %v617
        %v619 = vrot.slane %v614, %v618
        %621 = vmatprep.subr.mxu0 0.0
        %622 = vmatpush1.msra.mxu0 0.0
        %623 = vmatprep.subr.mxu0 0.0
        %624 = vmatpush1.msra.mxu0 0.0
        %625 = vmatprep.subr.mxu0 0.0
        %626 = vmatpush1.msra.mxu0 0.0
        %627 = vmatprep.subr.mxu0 0.0
        %628 = vmatpush1.msra.mxu0 0.0
        %629 = vmatprep.subr.mxu0 0.0
        %630 = vmatpush1.msra.mxu0 0.0
        %631 = vmatprep.subr.mxu0 0.0
        %632 = vmatpush1.msra.mxu0 0.0
        %633 = vmatprep.subr.mxu0 0.0
        %634 = vmatpush1.msra.mxu0 0.0
        %635 = vmatprep.subr.mxu0 0.0
        %636 = vmatpush1.msra.mxu0 0.0
        %637 = vmatprep.subr.mxu0 0.0
        %638 = vmatpush1.msra.mxu0 0.0
        %639 = vmatprep.subr.mxu0 0.0
        %640 = vmatpush1.msra.mxu0 0.0
        %641 = vmatprep.subr.mxu0 0.0
        %642 = vmatpush1.msra.mxu0 0.0
        %643 = vmatprep.subr.mxu0 0.0
        %644 = vmatpush1.msra.mxu0 0.0
        %645 = vmatprep.subr.mxu0 0.0
        %646 = vmatpush1.msra.mxu0 %v612
        %647 = vmatprep.subr.mxu0 0.0
        %648 = vmatpush1.msra.mxu0 %v611
        %649 = vmatprep.subr.mxu0 0.0
        %650 = vmatpush1.msra.mxu0 %v610
        %651 = vmatprep.subr.mxu0 0.0
        %652 = vmatpush1.msra.mxu0 %v609
        %653 = vmatprep.subr.mxu0 0.0
        %654 = vmatpush2.msra.mxu0 0.0
        %655 = vmatprep.subr.mxu0 0.0
        %656 = vmatpush2.msra.mxu0 0.0
        %657 = vmatprep.subr.mxu0 0.0
        %658 = vmatpush2.msra.mxu0 0.0
        %659 = vmatprep.subr.mxu0 0.0
        %660 = vmatpush2.msra.mxu0 0.0
        %661 = vmatprep.subr.mxu0 0.0
        %662 = vmatpush2.msra.mxu0 0.0
        %663 = vmatprep.subr.mxu0 0.0
        %664 = vmatpush2.msra.mxu0 0.0
        %665 = vmatprep.subr.mxu0 0.0
        %666 = vmatpush2.msra.mxu0 0.0
        %667 = vmatprep.subr.mxu0 0.0
        %668 = vmatpush2.msra.mxu0 0.0
        %669 = vmatprep.subr.mxu0 0.0
        %670 = vmatpush2.msra.mxu0 0.0
        %671 = vmatprep.subr.mxu0 0.0
        %672 = vmatpush2.msra.mxu0 0.0
        %673 = vmatprep.subr.mxu0 0.0
        %674 = vmatpush2.msra.mxu0 0.0
        %675 = vmatprep.subr.mxu0 0.0
        %676 = vmatpush2.msra.mxu0 0.0
        %677 = vmatprep.subr.mxu0 0.0
        %678 = vmatpush2.msra.mxu0 0.0
        %679 = vmatprep.subr.mxu0 0.0
        %680 = vmatpush2.msra.mxu0 0.0
        %681 = vmatprep.subr.mxu0 0.0
        %682 = vmatpush2.msra.mxu0 0.0
        %683 = vmatprep.subr.mxu0 0.0
        %684 = vmatpush2.msra.mxu0 0.0
        %685 = vmatprep.mubr.f32.mxu0 0.0
        %686 = vmatmul.mubr.f32.gmra.mxu0 %v536
        %v687 = vpop.f32.mrf.mxu0
        %v688 = vadd.f32 %v619, %v687
        %v689 = vpop.f32.mrf.mxu0
        %690 = vdwg.mxu0
        %s691 = scalar_lea.vmem %s3, 64
        %v692 = vld [vmem:[%s691] sm:$0xff]
        %v693 = vld [vmem:[%s691 + $0x8] sm:$0xff]
        %v694 = vld [vmem:[%s691 + $0x10] sm:$0xff]
        %v695 = vld [vmem:[%s691 + $0x18] sm:$0xff]
        %s696 = scalar_lea.vmem %s4, 2
        %v697 = vld [vmem:[%s696] sm:$0x1]
        %v699 = vlaneseq
        %v700 = vshrl.u32 %v699, 7
        %v701 = vsub.s32 0, %v700
        %v702 = vrot.slane %v697, %v701
        %704 = vmatprep.subr.mxu0 0.0
        %705 = vmatpush1.msra.mxu0 0.0
        %706 = vmatprep.subr.mxu0 0.0
        %707 = vmatpush1.msra.mxu0 0.0
        %708 = vmatprep.subr.mxu0 0.0
        %709 = vmatpush1.msra.mxu0 0.0
        %710 = vmatprep.subr.mxu0 0.0
        %711 = vmatpush1.msra.mxu0 0.0
        %712 = vmatprep.subr.mxu0 0.0
        %713 = vmatpush1.msra.mxu0 0.0
        %714 = vmatprep.subr.mxu0 0.0
        %715 = vmatpush1.msra.mxu0 0.0
        %716 = vmatprep.subr.mxu0 0.0
        %717 = vmatpush1.msra.mxu0 0.0
        %718 = vmatprep.subr.mxu0 0.0
        %719 = vmatpush1.msra.mxu0 0.0
        %720 = vmatprep.subr.mxu0 0.0
        %721 = vmatpush1.msra.mxu0 0.0
        %722 = vmatprep.subr.mxu0 0.0
        %723 = vmatpush1.msra.mxu0 0.0
        %724 = vmatprep.subr.mxu0 0.0
        %725 = vmatpush1.msra.mxu0 0.0
        %726 = vmatprep.subr.mxu0 0.0
        %727 = vmatpush1.msra.mxu0 0.0
        %728 = vmatprep.subr.mxu0 0.0
        %729 = vmatpush1.msra.mxu0 %v695
        %730 = vmatprep.subr.mxu0 0.0
        %731 = vmatpush1.msra.mxu0 %v694
        %732 = vmatprep.subr.mxu0 0.0
        %733 = vmatpush1.msra.mxu0 %v693
        %734 = vmatprep.subr.mxu0 0.0
        %735 = vmatpush1.msra.mxu0 %v692
        %736 = vmatprep.subr.mxu0 0.0
        %737 = vmatpush2.msra.mxu0 0.0
        %738 = vmatprep.subr.mxu0 0.0
        %739 = vmatpush2.msra.mxu0 0.0
        %740 = vmatprep.subr.mxu0 0.0
        %741 = vmatpush2.msra.mxu0 0.0
        %742 = vmatprep.subr.mxu0 0.0
        %743 = vmatpush2.msra.mxu0 0.0
        %744 = vmatprep.subr.mxu0 0.0
        %745 = vmatpush2.msra.mxu0 0.0
        %746 = vmatprep.subr.mxu0 0.0
        %747 = vmatpush2.msra.mxu0 0.0
        %748 = vmatprep.subr.mxu0 0.0
        %749 = vmatpush2.msra.mxu0 0.0
        %750 = vmatprep.subr.mxu0 0.0
        %751 = vmatpush2.msra.mxu0 0.0
        %752 = vmatprep.subr.mxu0 0.0
        %753 = vmatpush2.msra.mxu0 0.0
        %754 = vmatprep.subr.mxu0 0.0
        %755 = vmatpush2.msra.mxu0 0.0
        %756 = vmatprep.subr.mxu0 0.0
        %757 = vmatpush2.msra.mxu0 0.0
        %758 = vmatprep.subr.mxu0 0.0
        %759 = vmatpush2.msra.mxu0 0.0
        %760 = vmatprep.subr.mxu0 0.0
        %761 = vmatpush2.msra.mxu0 0.0
        %762 = vmatprep.subr.mxu0 0.0
        %763 = vmatpush2.msra.mxu0 0.0
        %764 = vmatprep.subr.mxu0 0.0
        %765 = vmatpush2.msra.mxu0 0.0
        %766 = vmatprep.subr.mxu0 0.0
        %767 = vmatpush2.msra.mxu0 0.0
        %768 = vmatprep.mubr.f32.mxu0 0.0
        %769 = vmatmul.mubr.f32.gmra.mxu0 %v536
        %v770 = vpop.f32.mrf.mxu0
        %v771 = vadd.f32 %v702, %v770
        %v772 = vpop.f32.mrf.mxu0
        %773 = vdwg.mxu0
        %s774 = scalar_lea.vmem %s3, 96
        %v775 = vld [vmem:[%s774] sm:$0xff]
        %v776 = vld [vmem:[%s774 + $0x8] sm:$0xff]
        %v777 = vld [vmem:[%s774 + $0x10] sm:$0xff]
        %v778 = vld [vmem:[%s774 + $0x18] sm:$0xff]
        %s779 = scalar_lea.vmem %s4, 3
        %v780 = vld [vmem:[%s779] sm:$0x1]
        %v782 = vlaneseq
        %v783 = vshrl.u32 %v782, 7
        %v784 = vsub.s32 0, %v783
        %v785 = vrot.slane %v780, %v784
        %787 = vmatprep.subr.mxu0 0.0
        %788 = vmatpush1.msra.mxu0 0.0
        %789 = vmatprep.subr.mxu0 0.0
        %790 = vmatpush1.msra.mxu0 0.0
        %791 = vmatprep.subr.mxu0 0.0
        %792 = vmatpush1.msra.mxu0 0.0
        %793 = vmatprep.subr.mxu0 0.0
        %794 = vmatpush1.msra.mxu0 0.0
        %795 = vmatprep.subr.mxu0 0.0
        %796 = vmatpush1.msra.mxu0 0.0
        %797 = vmatprep.subr.mxu0 0.0
        %798 = vmatpush1.msra.mxu0 0.0
        %799 = vmatprep.subr.mxu0 0.0
        %800 = vmatpush1.msra.mxu0 0.0
        %801 = vmatprep.subr.mxu0 0.0
        %802 = vmatpush1.msra.mxu0 0.0
        %803 = vmatprep.subr.mxu0 0.0
        %804 = vmatpush1.msra.mxu0 0.0
        %805 = vmatprep.subr.mxu0 0.0
        %806 = vmatpush1.msra.mxu0 0.0
        %807 = vmatprep.subr.mxu0 0.0
        %808 = vmatpush1.msra.mxu0 0.0
        %809 = vmatprep.subr.mxu0 0.0
        %810 = vmatpush1.msra.mxu0 0.0
        %811 = vmatprep.subr.mxu0 0.0
        %812 = vmatpush1.msra.mxu0 %v778
        %813 = vmatprep.subr.mxu0 0.0
        %814 = vmatpush1.msra.mxu0 %v777
        %815 = vmatprep.subr.mxu0 0.0
        %816 = vmatpush1.msra.mxu0 %v776
        %817 = vmatprep.subr.mxu0 0.0
        %818 = vmatpush1.msra.mxu0 %v775
        %819 = vmatprep.subr.mxu0 0.0
        %820 = vmatpush2.msra.mxu0 0.0
        %821 = vmatprep.subr.mxu0 0.0
        %822 = vmatpush2.msra.mxu0 0.0
        %823 = vmatprep.subr.mxu0 0.0
        %824 = vmatpush2.msra.mxu0 0.0
        %825 = vmatprep.subr.mxu0 0.0
        %826 = vmatpush2.msra.mxu0 0.0
        %827 = vmatprep.subr.mxu0 0.0
        %828 = vmatpush2.msra.mxu0 0.0
        %829 = vmatprep.subr.mxu0 0.0
        %830 = vmatpush2.msra.mxu0 0.0
        %831 = vmatprep.subr.mxu0 0.0
        %832 = vmatpush2.msra.mxu0 0.0
        %833 = vmatprep.subr.mxu0 0.0
        %834 = vmatpush2.msra.mxu0 0.0
        %835 = vmatprep.subr.mxu0 0.0
        %836 = vmatpush2.msra.mxu0 0.0
        %837 = vmatprep.subr.mxu0 0.0
        %838 = vmatpush2.msra.mxu0 0.0
        %839 = vmatprep.subr.mxu0 0.0
        %840 = vmatpush2.msra.mxu0 0.0
        %841 = vmatprep.subr.mxu0 0.0
        %842 = vmatpush2.msra.mxu0 0.0
        %843 = vmatprep.subr.mxu0 0.0
        %844 = vmatpush2.msra.mxu0 0.0
        %845 = vmatprep.subr.mxu0 0.0
        %846 = vmatpush2.msra.mxu0 0.0
        %847 = vmatprep.subr.mxu0 0.0
        %848 = vmatpush2.msra.mxu0 0.0
        %849 = vmatprep.subr.mxu0 0.0
        %850 = vmatpush2.msra.mxu0 0.0
        %851 = vmatprep.mubr.f32.mxu0 0.0
        %852 = vmatmul.mubr.f32.gmra.mxu0 %v536
        %v853 = vpop.f32.mrf.mxu0
        %v854 = vadd.f32 %v785, %v853
        %v855 = vpop.f32.mrf.mxu0
        %856 = vdwg.mxu0
        %s857 = scalar_lea.vmem %s3, 128
        %v858 = vld [vmem:[%s857] sm:$0xff]
        %v859 = vld [vmem:[%s857 + $0x8] sm:$0xff]
        %v860 = vld [vmem:[%s857 + $0x10] sm:$0xff]
        %v861 = vld [vmem:[%s857 + $0x18] sm:$0xff]
        %s862 = scalar_lea.vmem %s4, 4
        %v863 = vld [vmem:[%s862] sm:$0x1]
        %v865 = vlaneseq
        %v866 = vshrl.u32 %v865, 7
        %v867 = vsub.s32 0, %v866
        %v868 = vrot.slane %v863, %v867
        %870 = vmatprep.subr.mxu0 0.0
        %871 = vmatpush1.msra.mxu0 0.0
        %872 = vmatprep.subr.mxu0 0.0
        %873 = vmatpush1.msra.mxu0 0.0
        %874 = vmatprep.subr.mxu0 0.0
        %875 = vmatpush1.msra.mxu0 0.0
        %876 = vmatprep.subr.mxu0 0.0
        %877 = vmatpush1.msra.mxu0 0.0
        %878 = vmatprep.subr.mxu0 0.0
        %879 = vmatpush1.msra.mxu0 0.0
        %880 = vmatprep.subr.mxu0 0.0
        %881 = vmatpush1.msra.mxu0 0.0
        %882 = vmatprep.subr.mxu0 0.0
        %883 = vmatpush1.msra.mxu0 0.0
        %884 = vmatprep.subr.mxu0 0.0
        %885 = vmatpush1.msra.mxu0 0.0
        %886 = vmatprep.subr.mxu0 0.0
        %887 = vmatpush1.msra.mxu0 0.0
        %888 = vmatprep.subr.mxu0 0.0
        %889 = vmatpush1.msra.mxu0 0.0
        %890 = vmatprep.subr.mxu0 0.0
        %891 = vmatpush1.msra.mxu0 0.0
        %892 = vmatprep.subr.mxu0 0.0
        %893 = vmatpush1.msra.mxu0 0.0
        %894 = vmatprep.subr.mxu0 0.0
        %895 = vmatpush1.msra.mxu0 %v861
        %896 = vmatprep.subr.mxu0 0.0
        %897 = vmatpush1.msra.mxu0 %v860
        %898 = vmatprep.subr.mxu0 0.0
        %899 = vmatpush1.msra.mxu0 %v859
        %900 = vmatprep.subr.mxu0 0.0
        %901 = vmatpush1.msra.mxu0 %v858
        %902 = vmatprep.subr.mxu0 0.0
        %903 = vmatpush2.msra.mxu0 0.0
        %904 = vmatprep.subr.mxu0 0.0
        %905 = vmatpush2.msra.mxu0 0.0
        %906 = vmatprep.subr.mxu0 0.0
        %907 = vmatpush2.msra.mxu0 0.0
        %908 = vmatprep.subr.mxu0 0.0
        %909 = vmatpush2.msra.mxu0 0.0
        %910 = vmatprep.subr.mxu0 0.0
        %911 = vmatpush2.msra.mxu0 0.0
        %912 = vmatprep.subr.mxu0 0.0
        %913 = vmatpush2.msra.mxu0 0.0
        %914 = vmatprep.subr.mxu0 0.0
        %915 = vmatpush2.msra.mxu0 0.0
        %916 = vmatprep.subr.mxu0 0.0
        %917 = vmatpush2.msra.mxu0 0.0
        %918 = vmatprep.subr.mxu0 0.0
        %919 = vmatpush2.msra.mxu0 0.0
        %920 = vmatprep.subr.mxu0 0.0
        %921 = vmatpush2.msra.mxu0 0.0
        %922 = vmatprep.subr.mxu0 0.0
        %923 = vmatpush2.msra.mxu0 0.0
        %924 = vmatprep.subr.mxu0 0.0
        %925 = vmatpush2.msra.mxu0 0.0
        %926 = vmatprep.subr.mxu0 0.0
        %927 = vmatpush2.msra.mxu0 0.0
        %928 = vmatprep.subr.mxu0 0.0
        %929 = vmatpush2.msra.mxu0 0.0
        %930 = vmatprep.subr.mxu0 0.0
        %931 = vmatpush2.msra.mxu0 0.0
        %932 = vmatprep.subr.mxu0 0.0
        %933 = vmatpush2.msra.mxu0 0.0
        %934 = vmatprep.mubr.f32.mxu0 0.0
        %935 = vmatmul.mubr.f32.gmra.mxu0 %v536
        %v936 = vpop.f32.mrf.mxu0
        %v937 = vadd.f32 %v868, %v936
        %v938 = vpop.f32.mrf.mxu0
        %939 = vdwg.mxu0
        %s940 = scalar_lea.vmem %s3, 160
        %v941 = vld [vmem:[%s940] sm:$0xff]
        %v942 = vld [vmem:[%s940 + $0x8] sm:$0xff]
        %v943 = vld [vmem:[%s940 + $0x10] sm:$0xff]
        %v944 = vld [vmem:[%s940 + $0x18] sm:$0xff]
        %s945 = scalar_lea.vmem %s4, 5
        %v946 = vld [vmem:[%s945] sm:$0x1]
        %v948 = vlaneseq
        %v949 = vshrl.u32 %v948, 7
        %v950 = vsub.s32 0, %v949
        %v951 = vrot.slane %v946, %v950
        %953 = vmatprep.subr.mxu0 0.0
        %954 = vmatpush1.msra.mxu0 0.0
        %955 = vmatprep.subr.mxu0 0.0
        %956 = vmatpush1.msra.mxu0 0.0
        %957 = vmatprep.subr.mxu0 0.0
        %958 = vmatpush1.msra.mxu0 0.0
        %959 = vmatprep.subr.mxu0 0.0
        %960 = vmatpush1.msra.mxu0 0.0
        %961 = vmatprep.subr.mxu0 0.0
        %962 = vmatpush1.msra.mxu0 0.0
        %963 = vmatprep.subr.mxu0 0.0
        %964 = vmatpush1.msra.mxu0 0.0
        %965 = vmatprep.subr.mxu0 0.0
        %966 = vmatpush1.msra.mxu0 0.0
        %967 = vmatprep.subr.mxu0 0.0
        %968 = vmatpush1.msra.mxu0 0.0
        %969 = vmatprep.subr.mxu0 0.0
        %970 = vmatpush1.msra.mxu0 0.0
        %971 = vmatprep.subr.mxu0 0.0
        %972 = vmatpush1.msra.mxu0 0.0
        %973 = vmatprep.subr.mxu0 0.0
        %974 = vmatpush1.msra.mxu0 0.0
        %975 = vmatprep.subr.mxu0 0.0
        %976 = vmatpush1.msra.mxu0 0.0
        %977 = vmatprep.subr.mxu0 0.0
        %978 = vmatpush1.msra.mxu0 %v944
        %979 = vmatprep.subr.mxu0 0.0
        %980 = vmatpush1.msra.mxu0 %v943
        %981 = vmatprep.subr.mxu0 0.0
        %982 = vmatpush1.msra.mxu0 %v942
        %983 = vmatprep.subr.mxu0 0.0
        %984 = vmatpush1.msra.mxu0 %v941
        %985 = vmatprep.subr.mxu0 0.0
        %986 = vmatpush2.msra.mxu0 0.0
        %987 = vmatprep.subr.mxu0 0.0
        %988 = vmatpush2.msra.mxu0 0.0
        %989 = vmatprep.subr.mxu0 0.0
        %990 = vmatpush2.msra.mxu0 0.0
        %991 = vmatprep.subr.mxu0 0.0
        %992 = vmatpush2.msra.mxu0 0.0
        %993 = vmatprep.subr.mxu0 0.0
        %994 = vmatpush2.msra.mxu0 0.0
        %995 = vmatprep.subr.mxu0 0.0
        %996 = vmatpush2.msra.mxu0 0.0
        %997 = vmatprep.subr.mxu0 0.0
        %998 = vmatpush2.msra.mxu0 0.0
        %999 = vmatprep.subr.mxu0 0.0
        %1000 = vmatpush2.msra.mxu0 0.0
        %1001 = vmatprep.subr.mxu0 0.0
        %1002 = vmatpush2.msra.mxu0 0.0
        %1003 = vmatprep.subr.mxu0 0.0
        %1004 = vmatpush2.msra.mxu0 0.0
        %1005 = vmatprep.subr.mxu0 0.0
        %1006 = vmatpush2.msra.mxu0 0.0
        %1007 = vmatprep.subr.mxu0 0.0
        %1008 = vmatpush2.msra.mxu0 0.0
        %1009 = vmatprep.subr.mxu0 0.0
        %1010 = vmatpush2.msra.mxu0 0.0
        %1011 = vmatprep.subr.mxu0 0.0
        %1012 = vmatpush2.msra.mxu0 0.0
        %1013 = vmatprep.subr.mxu0 0.0
        %1014 = vmatpush2.msra.mxu0 0.0
        %1015 = vmatprep.subr.mxu0 0.0
        %1016 = vmatpush2.msra.mxu0 0.0
        %1017 = vmatprep.mubr.f32.mxu0 0.0
        %1018 = vmatmul.mubr.f32.gmra.mxu0 %v536
        %v1019 = vpop.f32.mrf.mxu0
        %v1020 = vadd.f32 %v951, %v1019
        %v1021 = vpop.f32.mrf.mxu0
        %1022 = vdwg.mxu0
        %s1023 = scalar_lea.vmem %s3, 192
        %v1024 = vld [vmem:[%s1023] sm:$0xff]
        %v1025 = vld [vmem:[%s1023 + $0x8] sm:$0xff]
        %v1026 = vld [vmem:[%s1023 + $0x10] sm:$0xff]
        %v1027 = vld [vmem:[%s1023 + $0x18] sm:$0xff]
        %s1028 = scalar_lea.vmem %s4, 6
        %v1029 = vld [vmem:[%s1028] sm:$0x1]
        %v1031 = vlaneseq
        %v1032 = vshrl.u32 %v1031, 7
        %v1033 = vsub.s32 0, %v1032
        %v1034 = vrot.slane %v1029, %v1033
        %1036 = vmatprep.subr.mxu0 0.0
        %1037 = vmatpush1.msra.mxu0 0.0
        %1038 = vmatprep.subr.mxu0 0.0
        %1039 = vmatpush1.msra.mxu0 0.0
        %1040 = vmatprep.subr.mxu0 0.0
        %1041 = vmatpush1.msra.mxu0 0.0
        %1042 = vmatprep.subr.mxu0 0.0
        %1043 = vmatpush1.msra.mxu0 0.0
        %1044 = vmatprep.subr.mxu0 0.0
        %1045 = vmatpush1.msra.mxu0 0.0
        %1046 = vmatprep.subr.mxu0 0.0
        %1047 = vmatpush1.msra.mxu0 0.0
        %1048 = vmatprep.subr.mxu0 0.0
        %1049 = vmatpush1.msra.mxu0 0.0
        %1050 = vmatprep.subr.mxu0 0.0
        %1051 = vmatpush1.msra.mxu0 0.0
        %1052 = vmatprep.subr.mxu0 0.0
        %1053 = vmatpush1.msra.mxu0 0.0
        %1054 = vmatprep.subr.mxu0 0.0
        %1055 = vmatpush1.msra.mxu0 0.0
        %1056 = vmatprep.subr.mxu0 0.0
        %1057 = vmatpush1.msra.mxu0 0.0
        %1058 = vmatprep.subr.mxu0 0.0
        %1059 = vmatpush1.msra.mxu0 0.0
        %1060 = vmatprep.subr.mxu0 0.0
        %1061 = vmatpush1.msra.mxu0 %v1027
        %1062 = vmatprep.subr.mxu0 0.0
        %1063 = vmatpush1.msra.mxu0 %v1026
        %1064 = vmatprep.subr.mxu0 0.0
        %1065 = vmatpush1.msra.mxu0 %v1025
        %1066 = vmatprep.subr.mxu0 0.0
        %1067 = vmatpush1.msra.mxu0 %v1024
        %1068 = vmatprep.subr.mxu0 0.0
        %1069 = vmatpush2.msra.mxu0 0.0
        %1070 = vmatprep.subr.mxu0 0.0
        %1071 = vmatpush2.msra.mxu0 0.0
        %1072 = vmatprep.subr.mxu0 0.0
        %1073 = vmatpush2.msra.mxu0 0.0
        %1074 = vmatprep.subr.mxu0 0.0
        %1075 = vmatpush2.msra.mxu0 0.0
        %1076 = vmatprep.subr.mxu0 0.0
        %1077 = vmatpush2.msra.mxu0 0.0
        %1078 = vmatprep.subr.mxu0 0.0
        %1079 = vmatpush2.msra.mxu0 0.0
        %1080 = vmatprep.subr.mxu0 0.0
        %1081 = vmatpush2.msra.mxu0 0.0
        %1082 = vmatprep.subr.mxu0 0.0
        %1083 = vmatpush2.msra.mxu0 0.0
        %1084 = vmatprep.subr.mxu0 0.0
        %1085 = vmatpush2.msra.mxu0 0.0
        %1086 = vmatprep.subr.mxu0 0.0
        %1087 = vmatpush2.msra.mxu0 0.0
        %1088 = vmatprep.subr.mxu0 0.0
        %1089 = vmatpush2.msra.mxu0 0.0
        %1090 = vmatprep.subr.mxu0 0.0
        %1091 = vmatpush2.msra.mxu0 0.0
        %1092 = vmatprep.subr.mxu0 0.0
        %1093 = vmatpush2.msra.mxu0 0.0
        %1094 = vmatprep.subr.mxu0 0.0
        %1095 = vmatpush2.msra.mxu0 0.0
        %1096 = vmatprep.subr.mxu0 0.0
        %1097 = vmatpush2.msra.mxu0 0.0
        %1098 = vmatprep.subr.mxu0 0.0
        %1099 = vmatpush2.msra.mxu0 0.0
        %1100 = vmatprep.mubr.f32.mxu0 0.0
        %1101 = vmatmul.mubr.f32.gmra.mxu0 %v536
        %v1102 = vpop.f32.mrf.mxu0
        %v1103 = vadd.f32 %v1034, %v1102
        %v1104 = vpop.f32.mrf.mxu0
        %1105 = vdwg.mxu0
        %s1106 = scalar_lea.vmem %s3, 224
        %v1107 = vld [vmem:[%s1106] sm:$0xff]
        %v1108 = vld [vmem:[%s1106 + $0x8] sm:$0xff]
        %v1109 = vld [vmem:[%s1106 + $0x10] sm:$0xff]
        %v1110 = vld [vmem:[%s1106 + $0x18] sm:$0xff]
        %s1111 = scalar_lea.vmem %s4, 7
        %v1112 = vld [vmem:[%s1111] sm:$0x1]
        %v1114 = vlaneseq
        %v1115 = vshrl.u32 %v1114, 7
        %v1116 = vsub.s32 0, %v1115
        %v1117 = vrot.slane %v1112, %v1116
        %1119 = vmatprep.subr.mxu0 0.0
        %1120 = vmatpush1.msra.mxu0 0.0
        %1121 = vmatprep.subr.mxu0 0.0
        %1122 = vmatpush1.msra.mxu0 0.0
        %1123 = vmatprep.subr.mxu0 0.0
        %1124 = vmatpush1.msra.mxu0 0.0
        %1125 = vmatprep.subr.mxu0 0.0
        %1126 = vmatpush1.msra.mxu0 0.0
        %1127 = vmatprep.subr.mxu0 0.0
        %1128 = vmatpush1.msra.mxu0 0.0
        %1129 = vmatprep.subr.mxu0 0.0
        %1130 = vmatpush1.msra.mxu0 0.0
        %1131 = vmatprep.subr.mxu0 0.0
        %1132 = vmatpush1.msra.mxu0 0.0
        %1133 = vmatprep.subr.mxu0 0.0
        %1134 = vmatpush1.msra.mxu0 0.0
        %1135 = vmatprep.subr.mxu0 0.0
        %1136 = vmatpush1.msra.mxu0 0.0
        %1137 = vmatprep.subr.mxu0 0.0
        %1138 = vmatpush1.msra.mxu0 0.0
        %1139 = vmatprep.subr.mxu0 0.0
        %1140 = vmatpush1.msra.mxu0 0.0
        %1141 = vmatprep.subr.mxu0 0.0
        %1142 = vmatpush1.msra.mxu0 0.0
        %1143 = vmatprep.subr.mxu0 0.0
        %1144 = vmatpush1.msra.mxu0 %v1110
        %1145 = vmatprep.subr.mxu0 0.0
        %1146 = vmatpush1.msra.mxu0 %v1109
        %1147 = vmatprep.subr.mxu0 0.0
        %1148 = vmatpush1.msra.mxu0 %v1108
        %1149 = vmatprep.subr.mxu0 0.0
        %1150 = vmatpush1.msra.mxu0 %v1107
        %1151 = vmatprep.subr.mxu0 0.0
        %1152 = vmatpush2.msra.mxu0 0.0
        %1153 = vmatprep.subr.mxu0 0.0
        %1154 = vmatpush2.msra.mxu0 0.0
        %1155 = vmatprep.subr.mxu0 0.0
        %1156 = vmatpush2.msra.mxu0 0.0
        %1157 = vmatprep.subr.mxu0 0.0
        %1158 = vmatpush2.msra.mxu0 0.0
        %1159 = vmatprep.subr.mxu0 0.0
        %1160 = vmatpush2.msra.mxu0 0.0
        %1161 = vmatprep.subr.mxu0 0.0
        %1162 = vmatpush2.msra.mxu0 0.0
        %1163 = vmatprep.subr.mxu0 0.0
        %1164 = vmatpush2.msra.mxu0 0.0
        %1165 = vmatprep.subr.mxu0 0.0
        %1166 = vmatpush2.msra.mxu0 0.0
        %1167 = vmatprep.subr.mxu0 0.0
        %1168 = vmatpush2.msra.mxu0 0.0
        %1169 = vmatprep.subr.mxu0 0.0
        %1170 = vmatpush2.msra.mxu0 0.0
        %1171 = vmatprep.subr.mxu0 0.0
        %1172 = vmatpush2.msra.mxu0 0.0
        %1173 = vmatprep.subr.mxu0 0.0
        %1174 = vmatpush2.msra.mxu0 0.0
        %1175 = vmatprep.subr.mxu0 0.0
        %1176 = vmatpush2.msra.mxu0 0.0
        %1177 = vmatprep.subr.mxu0 0.0
        %1178 = vmatpush2.msra.mxu0 0.0
        %1179 = vmatprep.subr.mxu0 0.0
        %1180 = vmatpush2.msra.mxu0 0.0
        %1181 = vmatprep.subr.mxu0 0.0
        %1182 = vmatpush2.msra.mxu0 0.0
        %1183 = vmatprep.mubr.f32.mxu0 0.0
        %1184 = vmatmul.mubr.f32.gmra.mxu0 %v536
        %v1185 = vpop.f32.mrf.mxu0
        %v1186 = vadd.f32 %v1117, %v1185
        %v1187 = vpop.f32.mrf.mxu0
        %1188 = vdwg.mxu0
        %s1189 = scalar_lea.vmem %s3, 256
        %v1190 = vld [vmem:[%s1189] sm:$0xff]
        %v1191 = vld [vmem:[%s1189 + $0x8] sm:$0xff]
        %v1192 = vld [vmem:[%s1189 + $0x10] sm:$0xff]
        %v1193 = vld [vmem:[%s1189 + $0x18] sm:$0xff]
        %s1194 = scalar_lea.vmem %s4, 8
        %v1195 = vld [vmem:[%s1194] sm:$0x1]
        %v1197 = vlaneseq
        %v1198 = vshrl.u32 %v1197, 7
        %v1199 = vsub.s32 0, %v1198
        %v1200 = vrot.slane %v1195, %v1199
        %1202 = vmatprep.subr.mxu0 0.0
        %1203 = vmatpush1.msra.mxu0 0.0
        %1204 = vmatprep.subr.mxu0 0.0
        %1205 = vmatpush1.msra.mxu0 0.0
        %1206 = vmatprep.subr.mxu0 0.0
        %1207 = vmatpush1.msra.mxu0 0.0
        %1208 = vmatprep.subr.mxu0 0.0
        %1209 = vmatpush1.msra.mxu0 0.0
        %1210 = vmatprep.subr.mxu0 0.0
        %1211 = vmatpush1.msra.mxu0 0.0
        %1212 = vmatprep.subr.mxu0 0.0
        %1213 = vmatpush1.msra.mxu0 0.0
        %1214 = vmatprep.subr.mxu0 0.0
        %1215 = vmatpush1.msra.mxu0 0.0
        %1216 = vmatprep.subr.mxu0 0.0
        %1217 = vmatpush1.msra.mxu0 0.0
        %1218 = vmatprep.subr.mxu0 0.0
        %1219 = vmatpush1.msra.mxu0 0.0
        %1220 = vmatprep.subr.mxu0 0.0
        %1221 = vmatpush1.msra.mxu0 0.0
        %1222 = vmatprep.subr.mxu0 0.0
        %1223 = vmatpush1.msra.mxu0 0.0
        %1224 = vmatprep.subr.mxu0 0.0
        %1225 = vmatpush1.msra.mxu0 0.0
        %1226 = vmatprep.subr.mxu0 0.0
        %1227 = vmatpush1.msra.mxu0 %v1193
        %1228 = vmatprep.subr.mxu0 0.0
        %1229 = vmatpush1.msra.mxu0 %v1192
        %1230 = vmatprep.subr.mxu0 0.0
        %1231 = vmatpush1.msra.mxu0 %v1191
        %1232 = vmatprep.subr.mxu0 0.0
        %1233 = vmatpush1.msra.mxu0 %v1190
        %1234 = vmatprep.subr.mxu0 0.0
        %1235 = vmatpush2.msra.mxu0 0.0
        %1236 = vmatprep.subr.mxu0 0.0
        %1237 = vmatpush2.msra.mxu0 0.0
        %1238 = vmatprep.subr.mxu0 0.0
        %1239 = vmatpush2.msra.mxu0 0.0
        %1240 = vmatprep.subr.mxu0 0.0
        %1241 = vmatpush2.msra.mxu0 0.0
        %1242 = vmatprep.subr.mxu0 0.0
        %1243 = vmatpush2.msra.mxu0 0.0
        %1244 = vmatprep.subr.mxu0 0.0
        %1245 = vmatpush2.msra.mxu0 0.0
        %1246 = vmatprep.subr.mxu0 0.0
        %1247 = vmatpush2.msra.mxu0 0.0
        %1248 = vmatprep.subr.mxu0 0.0
        %1249 = vmatpush2.msra.mxu0 0.0
        %1250 = vmatprep.subr.mxu0 0.0
        %1251 = vmatpush2.msra.mxu0 0.0
        %1252 = vmatprep.subr.mxu0 0.0
        %1253 = vmatpush2.msra.mxu0 0.0
        %1254 = vmatprep.subr.mxu0 0.0
        %1255 = vmatpush2.msra.mxu0 0.0
        %1256 = vmatprep.subr.mxu0 0.0
        %1257 = vmatpush2.msra.mxu0 0.0
        %1258 = vmatprep.subr.mxu0 0.0
        %1259 = vmatpush2.msra.mxu0 0.0
        %1260 = vmatprep.subr.mxu0 0.0
        %1261 = vmatpush2.msra.mxu0 0.0
        %1262 = vmatprep.subr.mxu0 0.0
        %1263 = vmatpush2.msra.mxu0 0.0
        %1264 = vmatprep.subr.mxu0 0.0
        %1265 = vmatpush2.msra.mxu0 0.0
        %1266 = vmatprep.mubr.f32.mxu0 0.0
        %1267 = vmatmul.mubr.f32.gmra.mxu0 %v536
        %v1268 = vpop.f32.mrf.mxu0
        %v1269 = vadd.f32 %v1200, %v1268
        %v1270 = vpop.f32.mrf.mxu0
        %1271 = vdwg.mxu0
        %s1272 = scalar_lea.vmem %s3, 288
        %v1273 = vld [vmem:[%s1272] sm:$0xff]
        %v1274 = vld [vmem:[%s1272 + $0x8] sm:$0xff]
        %v1275 = vld [vmem:[%s1272 + $0x10] sm:$0xff]
        %v1276 = vld [vmem:[%s1272 + $0x18] sm:$0xff]
        %s1277 = scalar_lea.vmem %s4, 9
        %v1278 = vld [vmem:[%s1277] sm:$0x1]
        %v1280 = vlaneseq
        %v1281 = vshrl.u32 %v1280, 7
        %v1282 = vsub.s32 0, %v1281
        %v1283 = vrot.slane %v1278, %v1282
        %1285 = vmatprep.subr.mxu0 0.0
        %1286 = vmatpush1.msra.mxu0 0.0
        %1287 = vmatprep.subr.mxu0 0.0
        %1288 = vmatpush1.msra.mxu0 0.0
        %1289 = vmatprep.subr.mxu0 0.0
        %1290 = vmatpush1.msra.mxu0 0.0
        %1291 = vmatprep.subr.mxu0 0.0
        %1292 = vmatpush1.msra.mxu0 0.0
        %1293 = vmatprep.subr.mxu0 0.0
        %1294 = vmatpush1.msra.mxu0 0.0
        %1295 = vmatprep.subr.mxu0 0.0
        %1296 = vmatpush1.msra.mxu0 0.0
        %1297 = vmatprep.subr.mxu0 0.0
        %1298 = vmatpush1.msra.mxu0 0.0
        %1299 = vmatprep.subr.mxu0 0.0
        %1300 = vmatpush1.msra.mxu0 0.0
        %1301 = vmatprep.subr.mxu0 0.0
        %1302 = vmatpush1.msra.mxu0 0.0
        %1303 = vmatprep.subr.mxu0 0.0
        %1304 = vmatpush1.msra.mxu0 0.0
        %1305 = vmatprep.subr.mxu0 0.0
        %1306 = vmatpush1.msra.mxu0 0.0
        %1307 = vmatprep.subr.mxu0 0.0
        %1308 = vmatpush1.msra.mxu0 0.0
        %1309 = vmatprep.subr.mxu0 0.0
        %1310 = vmatpush1.msra.mxu0 %v1276
        %1311 = vmatprep.subr.mxu0 0.0
        %1312 = vmatpush1.msra.mxu0 %v1275
        %1313 = vmatprep.subr.mxu0 0.0
        %1314 = vmatpush1.msra.mxu0 %v1274
        %1315 = vmatprep.subr.mxu0 0.0
        %1316 = vmatpush1.msra.mxu0 %v1273
        %1317 = vmatprep.subr.mxu0 0.0
        %1318 = vmatpush2.msra.mxu0 0.0
        %1319 = vmatprep.subr.mxu0 0.0
        %1320 = vmatpush2.msra.mxu0 0.0
        %1321 = vmatprep.subr.mxu0 0.0
        %1322 = vmatpush2.msra.mxu0 0.0
        %1323 = vmatprep.subr.mxu0 0.0
        %1324 = vmatpush2.msra.mxu0 0.0
        %1325 = vmatprep.subr.mxu0 0.0
        %1326 = vmatpush2.msra.mxu0 0.0
        %1327 = vmatprep.subr.mxu0 0.0
        %1328 = vmatpush2.msra.mxu0 0.0
        %1329 = vmatprep.subr.mxu0 0.0
        %1330 = vmatpush2.msra.mxu0 0.0
        %1331 = vmatprep.subr.mxu0 0.0
        %1332 = vmatpush2.msra.mxu0 0.0
        %1333 = vmatprep.subr.mxu0 0.0
        %1334 = vmatpush2.msra.mxu0 0.0
        %1335 = vmatprep.subr.mxu0 0.0
        %1336 = vmatpush2.msra.mxu0 0.0
        %1337 = vmatprep.subr.mxu0 0.0
        %1338 = vmatpush2.msra.mxu0 0.0
        %1339 = vmatprep.subr.mxu0 0.0
        %1340 = vmatpush2.msra.mxu0 0.0
        %1341 = vmatprep.subr.mxu0 0.0
        %1342 = vmatpush2.msra.mxu0 0.0
        %1343 = vmatprep.subr.mxu0 0.0
        %1344 = vmatpush2.msra.mxu0 0.0
        %1345 = vmatprep.subr.mxu0 0.0
        %1346 = vmatpush2.msra.mxu0 0.0
        %1347 = vmatprep.subr.mxu0 0.0
        %1348 = vmatpush2.msra.mxu0 0.0
        %1349 = vmatprep.mubr.f32.mxu0 0.0
        %1350 = vmatmul.mubr.f32.gmra.mxu0 %v536
        %v1351 = vpop.f32.mrf.mxu0
        %v1352 = vadd.f32 %v1283, %v1351
        %v1353 = vpop.f32.mrf.mxu0
        %1354 = vdwg.mxu0
        %s1355 = scalar_lea.vmem %s3, 320
        %v1356 = vld [vmem:[%s1355] sm:$0xff]
        %v1357 = vld [vmem:[%s1355 + $0x8] sm:$0xff]
        %v1358 = vld [vmem:[%s1355 + $0x10] sm:$0xff]
        %v1359 = vld [vmem:[%s1355 + $0x18] sm:$0xff]
        %s1360 = scalar_lea.vmem %s4, 10
        %v1361 = vld [vmem:[%s1360] sm:$0x1]
        %v1363 = vlaneseq
        %v1364 = vshrl.u32 %v1363, 7
        %v1365 = vsub.s32 0, %v1364
        %v1366 = vrot.slane %v1361, %v1365
        %1368 = vmatprep.subr.mxu0 0.0
        %1369 = vmatpush1.msra.mxu0 0.0
        %1370 = vmatprep.subr.mxu0 0.0
        %1371 = vmatpush1.msra.mxu0 0.0
        %1372 = vmatprep.subr.mxu0 0.0
        %1373 = vmatpush1.msra.mxu0 0.0
        %1374 = vmatprep.subr.mxu0 0.0
        %1375 = vmatpush1.msra.mxu0 0.0
        %1376 = vmatprep.subr.mxu0 0.0
        %1377 = vmatpush1.msra.mxu0 0.0
        %1378 = vmatprep.subr.mxu0 0.0
        %1379 = vmatpush1.msra.mxu0 0.0
        %1380 = vmatprep.subr.mxu0 0.0
        %1381 = vmatpush1.msra.mxu0 0.0
        %1382 = vmatprep.subr.mxu0 0.0
        %1383 = vmatpush1.msra.mxu0 0.0
        %1384 = vmatprep.subr.mxu0 0.0
        %1385 = vmatpush1.msra.mxu0 0.0
        %1386 = vmatprep.subr.mxu0 0.0
        %1387 = vmatpush1.msra.mxu0 0.0
        %1388 = vmatprep.subr.mxu0 0.0
        %1389 = vmatpush1.msra.mxu0 0.0
        %1390 = vmatprep.subr.mxu0 0.0
        %1391 = vmatpush1.msra.mxu0 0.0
        %1392 = vmatprep.subr.mxu0 0.0
        %1393 = vmatpush1.msra.mxu0 %v1359
        %1394 = vmatprep.subr.mxu0 0.0
        %1395 = vmatpush1.msra.mxu0 %v1358
        %1396 = vmatprep.subr.mxu0 0.0
        %1397 = vmatpush1.msra.mxu0 %v1357
        %1398 = vmatprep.subr.mxu0 0.0
        %1399 = vmatpush1.msra.mxu0 %v1356
        %1400 = vmatprep.subr.mxu0 0.0
        %1401 = vmatpush2.msra.mxu0 0.0
        %1402 = vmatprep.subr.mxu0 0.0
        %1403 = vmatpush2.msra.mxu0 0.0
        %1404 = vmatprep.subr.mxu0 0.0
        %1405 = vmatpush2.msra.mxu0 0.0
        %1406 = vmatprep.subr.mxu0 0.0
        %1407 = vmatpush2.msra.mxu0 0.0
        %1408 = vmatprep.subr.mxu0 0.0
        %1409 = vmatpush2.msra.mxu0 0.0
        %1410 = vmatprep.subr.mxu0 0.0
        %1411 = vmatpush2.msra.mxu0 0.0
        %1412 = vmatprep.subr.mxu0 0.0
        %1413 = vmatpush2.msra.mxu0 0.0
        %1414 = vmatprep.subr.mxu0 0.0
        %1415 = vmatpush2.msra.mxu0 0.0
        %1416 = vmatprep.subr.mxu0 0.0
        %1417 = vmatpush2.msra.mxu0 0.0
        %1418 = vmatprep.subr.mxu0 0.0
        %1419 = vmatpush2.msra.mxu0 0.0
        %1420 = vmatprep.subr.mxu0 0.0
        %1421 = vmatpush2.msra.mxu0 0.0
        %1422 = vmatprep.subr.mxu0 0.0
        %1423 = vmatpush2.msra.mxu0 0.0
        %1424 = vmatprep.subr.mxu0 0.0
        %1425 = vmatpush2.msra.mxu0 0.0
        %1426 = vmatprep.subr.mxu0 0.0
        %1427 = vmatpush2.msra.mxu0 0.0
        %1428 = vmatprep.subr.mxu0 0.0
        %1429 = vmatpush2.msra.mxu0 0.0
        %1430 = vmatprep.subr.mxu0 0.0
        %1431 = vmatpush2.msra.mxu0 0.0
        %1432 = vmatprep.mubr.f32.mxu0 0.0
        %1433 = vmatmul.mubr.f32.gmra.mxu0 %v536
        %v1434 = vpop.f32.mrf.mxu0
        %v1435 = vadd.f32 %v1366, %v1434
        %v1436 = vpop.f32.mrf.mxu0
        %1437 = vdwg.mxu0
        %s1438 = scalar_lea.vmem %s3, 352
        %v1439 = vld [vmem:[%s1438] sm:$0xff]
        %v1440 = vld [vmem:[%s1438 + $0x8] sm:$0xff]
        %v1441 = vld [vmem:[%s1438 + $0x10] sm:$0xff]
        %v1442 = vld [vmem:[%s1438 + $0x18] sm:$0xff]
        %s1443 = scalar_lea.vmem %s4, 11
        %v1444 = vld [vmem:[%s1443] sm:$0x1]
        %v1446 = vlaneseq
        %v1447 = vshrl.u32 %v1446, 7
        %v1448 = vsub.s32 0, %v1447
        %v1449 = vrot.slane %v1444, %v1448
        %1451 = vmatprep.subr.mxu0 0.0
        %1452 = vmatpush1.msra.mxu0 0.0
        %1453 = vmatprep.subr.mxu0 0.0
        %1454 = vmatpush1.msra.mxu0 0.0
        %1455 = vmatprep.subr.mxu0 0.0
        %1456 = vmatpush1.msra.mxu0 0.0
        %1457 = vmatprep.subr.mxu0 0.0
        %1458 = vmatpush1.msra.mxu0 0.0
        %1459 = vmatprep.subr.mxu0 0.0
        %1460 = vmatpush1.msra.mxu0 0.0
        %1461 = vmatprep.subr.mxu0 0.0
        %1462 = vmatpush1.msra.mxu0 0.0
        %1463 = vmatprep.subr.mxu0 0.0
        %1464 = vmatpush1.msra.mxu0 0.0
        %1465 = vmatprep.subr.mxu0 0.0
        %1466 = vmatpush1.msra.mxu0 0.0
        %1467 = vmatprep.subr.mxu0 0.0
        %1468 = vmatpush1.msra.mxu0 0.0
        %1469 = vmatprep.subr.mxu0 0.0
        %1470 = vmatpush1.msra.mxu0 0.0
        %1471 = vmatprep.subr.mxu0 0.0
        %1472 = vmatpush1.msra.mxu0 0.0
        %1473 = vmatprep.subr.mxu0 0.0
        %1474 = vmatpush1.msra.mxu0 0.0
        %1475 = vmatprep.subr.mxu0 0.0
        %1476 = vmatpush1.msra.mxu0 %v1442
        %1477 = vmatprep.subr.mxu0 0.0
        %1478 = vmatpush1.msra.mxu0 %v1441
        %1479 = vmatprep.subr.mxu0 0.0
        %1480 = vmatpush1.msra.mxu0 %v1440
        %1481 = vmatprep.subr.mxu0 0.0
        %1482 = vmatpush1.msra.mxu0 %v1439
        %1483 = vmatprep.subr.mxu0 0.0
        %1484 = vmatpush2.msra.mxu0 0.0
        %1485 = vmatprep.subr.mxu0 0.0
        %1486 = vmatpush2.msra.mxu0 0.0
        %1487 = vmatprep.subr.mxu0 0.0
        %1488 = vmatpush2.msra.mxu0 0.0
        %1489 = vmatprep.subr.mxu0 0.0
        %1490 = vmatpush2.msra.mxu0 0.0
        %1491 = vmatprep.subr.mxu0 0.0
        %1492 = vmatpush2.msra.mxu0 0.0
        %1493 = vmatprep.subr.mxu0 0.0
        %1494 = vmatpush2.msra.mxu0 0.0
        %1495 = vmatprep.subr.mxu0 0.0
        %1496 = vmatpush2.msra.mxu0 0.0
        %1497 = vmatprep.subr.mxu0 0.0
        %1498 = vmatpush2.msra.mxu0 0.0
        %1499 = vmatprep.subr.mxu0 0.0
        %1500 = vmatpush2.msra.mxu0 0.0
        %1501 = vmatprep.subr.mxu0 0.0
        %1502 = vmatpush2.msra.mxu0 0.0
        %1503 = vmatprep.subr.mxu0 0.0
        %1504 = vmatpush2.msra.mxu0 0.0
        %1505 = vmatprep.subr.mxu0 0.0
        %1506 = vmatpush2.msra.mxu0 0.0
        %1507 = vmatprep.subr.mxu0 0.0
        %1508 = vmatpush2.msra.mxu0 0.0
        %1509 = vmatprep.subr.mxu0 0.0
        %1510 = vmatpush2.msra.mxu0 0.0
        %1511 = vmatprep.subr.mxu0 0.0
        %1512 = vmatpush2.msra.mxu0 0.0
        %1513 = vmatprep.subr.mxu0 0.0
        %1514 = vmatpush2.msra.mxu0 0.0
        %1515 = vmatprep.mubr.f32.mxu0 0.0
        %1516 = vmatmul.mubr.f32.gmra.mxu0 %v536
        %v1517 = vpop.f32.mrf.mxu0
        %v1518 = vadd.f32 %v1449, %v1517
        %v1519 = vpop.f32.mrf.mxu0
        %1520 = vdwg.mxu0
        %vm1521 = vcmask 64512
        %v1523 = vsel %vm1521, %v605, 0
        %v1526 = vsel %vm1521, %v688, 0
        %1528 = vmatprep.subr.mxu0 0.0
        %1529 = vmatpush1.xpose.msra.mxu0 0.0
        %1530 = vmatprep.subr.mxu0 0.0
        %1531 = vmatpush1.xpose.msra.mxu0 0.0
        %1532 = vmatprep.subr.mxu0 0.0
        %1533 = vmatpush1.xpose.msra.mxu0 0.0
        %1534 = vmatprep.subr.mxu0 0.0
        %1535 = vmatpush1.xpose.msra.mxu0 0.0
        %1536 = vmatprep.subr.mxu0 0.0
        %1537 = vmatpush1.xpose.msra.mxu0 0.0
        %1538 = vmatprep.subr.mxu0 0.0
        %1539 = vmatpush1.xpose.msra.mxu0 0.0
        %1540 = vmatprep.subr.mxu0 0.0
        %1541 = vmatpush1.xpose.msra.mxu0 0.0
        %1542 = vmatprep.subr.mxu0 0.0
        %1543 = vmatpush1.xpose.msra.mxu0 0.0
        %1544 = vmatprep.subr.mxu0 0.0
        %1545 = vmatpush1.xpose.msra.mxu0 0.0
        %1546 = vmatprep.subr.mxu0 0.0
        %1547 = vmatpush1.xpose.msra.mxu0 0.0
        %1548 = vmatprep.subr.mxu0 0.0
        %1549 = vmatpush1.xpose.msra.mxu0 0.0
        %1550 = vmatprep.subr.mxu0 0.0
        %1551 = vmatpush1.xpose.msra.mxu0 0.0
        %1552 = vmatprep.subr.mxu0 0.0
        %1553 = vmatpush1.xpose.msra.mxu0 0.0
        %1554 = vmatprep.subr.mxu0 0.0
        %1555 = vmatpush1.xpose.msra.mxu0 0.0
        %1556 = vmatprep.subr.mxu0 0.0
        %1557 = vmatpush1.xpose.msra.mxu0 0.0
        %1558 = vmatprep.subr.mxu0 0.0
        %1559 = vmatpush1.xpose.msra.mxu0 %v1526
        %1560 = vmatprep.subr.mxu0 0.0
        %1561 = vmatpush2.xpose.msra.mxu0 0.0
        %1562 = vmatprep.subr.mxu0 0.0
        %1563 = vmatpush2.xpose.msra.mxu0 0.0
        %1564 = vmatprep.subr.mxu0 0.0
        %1565 = vmatpush2.xpose.msra.mxu0 0.0
        %1566 = vmatprep.subr.mxu0 0.0
        %1567 = vmatpush2.xpose.msra.mxu0 0.0
        %1568 = vmatprep.subr.mxu0 0.0
        %1569 = vmatpush2.xpose.msra.mxu0 0.0
        %1570 = vmatprep.subr.mxu0 0.0
        %1571 = vmatpush2.xpose.msra.mxu0 0.0
        %1572 = vmatprep.subr.mxu0 0.0
        %1573 = vmatpush2.xpose.msra.mxu0 0.0
        %1574 = vmatprep.subr.mxu0 0.0
        %1575 = vmatpush2.xpose.msra.mxu0 0.0
        %1576 = vmatprep.subr.mxu0 0.0
        %1577 = vmatpush2.xpose.msra.mxu0 0.0
        %1578 = vmatprep.subr.mxu0 0.0
        %1579 = vmatpush2.xpose.msra.mxu0 0.0
        %1580 = vmatprep.subr.mxu0 0.0
        %1581 = vmatpush2.xpose.msra.mxu0 0.0
        %1582 = vmatprep.subr.mxu0 0.0
        %1583 = vmatpush2.xpose.msra.mxu0 0.0
        %1584 = vmatprep.subr.mxu0 0.0
        %1585 = vmatpush2.xpose.msra.mxu0 0.0
        %1586 = vmatprep.subr.mxu0 0.0
        %1587 = vmatpush2.xpose.msra.mxu0 0.0
        %1588 = vmatprep.subr.mxu0 0.0
        %1589 = vmatpush2.xpose.msra.mxu0 0.0
        %1590 = vmatprep.subr.mxu0 0.0
        %1591 = vmatpush2.xpose.msra.mxu0 0.0
        %1592 = vmatprep.mubr.f32.mxu0 0.0
        %1593 = vmatmul.mubr.f32.gmra.mxu0 %v1523
        %v1594 = vpop.f32.mrf.mxu0
        %v1595 = vadd.f32 0.0, %v1594
        %v1596 = vpop.f32.mrf.mxu0
        %1597 = vdwg.mxu0
        %v1598 = vmul.f32 %v1595, 0.35355338
        %v1599 = vsel %vm1521, %v1598, -inf
        %1600 = vmax.xlane.f32.xlu0 %v1599
        %v1601 = vpop.xlane.xlu0 %1600
        %v1602 = vsub.f32 %v1598, %v1601
        %v1603 = vmul.f32 %v1602, 1.442695
        %v1604 = vpow.pop %v1603
        %v1605 = vsel %vm1521, %v1604, 0.0
        %1606 = vadd.xlane.f32.xlu0 %v1605
        %v1607 = vpop.xlane.xlu0 %1606
        %v1608 = vrcp.pop %v1607
        %v1609 = vmul.f32 %v1604, %v1608
        %v1611 = vsel %vm1521, %v1609, 0
        %1613 = vmatprep.subr.mxu0 0.0
        %1614 = vmatpush1.msra.mxu0 0.0
        %1615 = vmatprep.subr.mxu0 0.0
        %1616 = vmatpush1.msra.mxu0 0.0
        %1617 = vmatprep.subr.mxu0 0.0
        %1618 = vmatpush1.msra.mxu0 0.0
        %1619 = vmatprep.subr.mxu0 0.0
        %1620 = vmatpush1.msra.mxu0 0.0
        %1621 = vmatprep.subr.mxu0 0.0
        %1622 = vmatpush1.msra.mxu0 0.0
        %1623 = vmatprep.subr.mxu0 0.0
        %1624 = vmatpush1.msra.mxu0 0.0
        %1625 = vmatprep.subr.mxu0 0.0
        %1626 = vmatpush1.msra.mxu0 0.0
        %1627 = vmatprep.subr.mxu0 0.0
        %1628 = vmatpush1.msra.mxu0 0.0
        %1629 = vmatprep.subr.mxu0 0.0
        %1630 = vmatpush1.msra.mxu0 0.0
        %1631 = vmatprep.subr.mxu0 0.0
        %1632 = vmatpush1.msra.mxu0 0.0
        %1633 = vmatprep.subr.mxu0 0.0
        %1634 = vmatpush1.msra.mxu0 0.0
        %1635 = vmatprep.subr.mxu0 0.0
        %1636 = vmatpush1.msra.mxu0 0.0
        %1637 = vmatprep.subr.mxu0 0.0
        %1638 = vmatpush1.msra.mxu0 0.0
        %1639 = vmatprep.subr.mxu0 0.0
        %1640 = vmatpush1.msra.mxu0 0.0
        %1641 = vmatprep.subr.mxu0 0.0
        %1642 = vmatpush1.msra.mxu0 0.0
        %1643 = vmatprep.subr.mxu0 0.0
        %1644 = vmatpush1.msra.mxu0 %v771
        %1645 = vmatprep.subr.mxu0 0.0
        %1646 = vmatpush2.msra.mxu0 0.0
        %1647 = vmatprep.subr.mxu0 0.0
        %1648 = vmatpush2.msra.mxu0 0.0
        %1649 = vmatprep.subr.mxu0 0.0
        %1650 = vmatpush2.msra.mxu0 0.0
        %1651 = vmatprep.subr.mxu0 0.0
        %1652 = vmatpush2.msra.mxu0 0.0
        %1653 = vmatprep.subr.mxu0 0.0
        %1654 = vmatpush2.msra.mxu0 0.0
        %1655 = vmatprep.subr.mxu0 0.0
        %1656 = vmatpush2.msra.mxu0 0.0
        %1657 = vmatprep.subr.mxu0 0.0
        %1658 = vmatpush2.msra.mxu0 0.0
        %1659 = vmatprep.subr.mxu0 0.0
        %1660 = vmatpush2.msra.mxu0 0.0
        %1661 = vmatprep.subr.mxu0 0.0
        %1662 = vmatpush2.msra.mxu0 0.0
        %1663 = vmatprep.subr.mxu0 0.0
        %1664 = vmatpush2.msra.mxu0 0.0
        %1665 = vmatprep.subr.mxu0 0.0
        %1666 = vmatpush2.msra.mxu0 0.0
        %1667 = vmatprep.subr.mxu0 0.0
        %1668 = vmatpush2.msra.mxu0 0.0
        %1669 = vmatprep.subr.mxu0 0.0
        %1670 = vmatpush2.msra.mxu0 0.0
        %1671 = vmatprep.subr.mxu0 0.0
        %1672 = vmatpush2.msra.mxu0 0.0
        %1673 = vmatprep.subr.mxu0 0.0
        %1674 = vmatpush2.msra.mxu0 0.0
        %1675 = vmatprep.subr.mxu0 0.0
        %1676 = vmatpush2.msra.mxu0 0.0
        %1677 = vmatprep.mubr.f32.mxu0 0.0
        %1678 = vmatmul.mubr.f32.gmra.mxu0 %v1611
        %v1679 = vpop.f32.mrf.mxu0
        %v1680 = vadd.f32 0.0, %v1679
        %v1681 = vpop.f32.mrf.mxu0
        %1682 = vdwg.mxu0
        %v1684 = vsel %vm1521, %v854, 0
        %v1687 = vsel %vm1521, %v937, 0
        %1689 = vmatprep.subr.mxu0 0.0
        %1690 = vmatpush1.xpose.msra.mxu0 0.0
        %1691 = vmatprep.subr.mxu0 0.0
        %1692 = vmatpush1.xpose.msra.mxu0 0.0
        %1693 = vmatprep.subr.mxu0 0.0
        %1694 = vmatpush1.xpose.msra.mxu0 0.0
        %1695 = vmatprep.subr.mxu0 0.0
        %1696 = vmatpush1.xpose.msra.mxu0 0.0
        %1697 = vmatprep.subr.mxu0 0.0
        %1698 = vmatpush1.xpose.msra.mxu0 0.0
        %1699 = vmatprep.subr.mxu0 0.0
        %1700 = vmatpush1.xpose.msra.mxu0 0.0
        %1701 = vmatprep.subr.mxu0 0.0
        %1702 = vmatpush1.xpose.msra.mxu0 0.0
        %1703 = vmatprep.subr.mxu0 0.0
        %1704 = vmatpush1.xpose.msra.mxu0 0.0
        %1705 = vmatprep.subr.mxu0 0.0
        %1706 = vmatpush1.xpose.msra.mxu0 0.0
        %1707 = vmatprep.subr.mxu0 0.0
        %1708 = vmatpush1.xpose.msra.mxu0 0.0
        %1709 = vmatprep.subr.mxu0 0.0
        %1710 = vmatpush1.xpose.msra.mxu0 0.0
        %1711 = vmatprep.subr.mxu0 0.0
        %1712 = vmatpush1.xpose.msra.mxu0 0.0
        %1713 = vmatprep.subr.mxu0 0.0
        %1714 = vmatpush1.xpose.msra.mxu0 0.0
        %1715 = vmatprep.subr.mxu0 0.0
        %1716 = vmatpush1.xpose.msra.mxu0 0.0
        %1717 = vmatprep.subr.mxu0 0.0
        %1718 = vmatpush1.xpose.msra.mxu0 0.0
        %1719 = vmatprep.subr.mxu0 0.0
        %1720 = vmatpush1.xpose.msra.mxu0 %v1687
        %1721 = vmatprep.subr.mxu0 0.0
        %1722 = vmatpush2.xpose.msra.mxu0 0.0
        %1723 = vmatprep.subr.mxu0 0.0
        %1724 = vmatpush2.xpose.msra.mxu0 0.0
        %1725 = vmatprep.subr.mxu0 0.0
        %1726 = vmatpush2.xpose.msra.mxu0 0.0
        %1727 = vmatprep.subr.mxu0 0.0
        %1728 = vmatpush2.xpose.msra.mxu0 0.0
        %1729 = vmatprep.subr.mxu0 0.0
        %1730 = vmatpush2.xpose.msra.mxu0 0.0
        %1731 = vmatprep.subr.mxu0 0.0
        %1732 = vmatpush2.xpose.msra.mxu0 0.0
        %1733 = vmatprep.subr.mxu0 0.0
        %1734 = vmatpush2.xpose.msra.mxu0 0.0
        %1735 = vmatprep.subr.mxu0 0.0
        %1736 = vmatpush2.xpose.msra.mxu0 0.0
        %1737 = vmatprep.subr.mxu0 0.0
        %1738 = vmatpush2.xpose.msra.mxu0 0.0
        %1739 = vmatprep.subr.mxu0 0.0
        %1740 = vmatpush2.xpose.msra.mxu0 0.0
        %1741 = vmatprep.subr.mxu0 0.0
        %1742 = vmatpush2.xpose.msra.mxu0 0.0
        %1743 = vmatprep.subr.mxu0 0.0
        %1744 = vmatpush2.xpose.msra.mxu0 0.0
        %1745 = vmatprep.subr.mxu0 0.0
        %1746 = vmatpush2.xpose.msra.mxu0 0.0
        %1747 = vmatprep.subr.mxu0 0.0
        %1748 = vmatpush2.xpose.msra.mxu0 0.0
        %1749 = vmatprep.subr.mxu0 0.0
        %1750 = vmatpush2.xpose.msra.mxu0 0.0
        %1751 = vmatprep.subr.mxu0 0.0
        %1752 = vmatpush2.xpose.msra.mxu0 0.0
        %1753 = vmatprep.mubr.f32.mxu0 0.0
        %1754 = vmatmul.mubr.f32.gmra.mxu0 %v1684
        %v1755 = vpop.f32.mrf.mxu0
        %v1756 = vadd.f32 0.0, %v1755
        %v1757 = vpop.f32.mrf.mxu0
        %1758 = vdwg.mxu0
        %v1759 = vmul.f32 %v1756, 0.35355338
        %v1760 = vsel %vm1521, %v1759, -inf
        %1761 = vmax.xlane.f32.xlu0 %v1760
        %v1762 = vpop.xlane.xlu0 %1761
        %v1763 = vsub.f32 %v1759, %v1762
        %v1764 = vmul.f32 %v1763, 1.442695
        %v1765 = vpow.pop %v1764
        %v1766 = vsel %vm1521, %v1765, 0.0
        %1767 = vadd.xlane.f32.xlu0 %v1766
        %v1768 = vpop.xlane.xlu0 %1767
        %v1769 = vrcp.pop %v1768
        %v1770 = vmul.f32 %v1765, %v1769
        %v1772 = vsel %vm1521, %v1770, 0
        %1774 = vmatprep.subr.mxu0 0.0
        %1775 = vmatpush1.msra.mxu0 0.0
        %1776 = vmatprep.subr.mxu0 0.0
        %1777 = vmatpush1.msra.mxu0 0.0
        %1778 = vmatprep.subr.mxu0 0.0
        %1779 = vmatpush1.msra.mxu0 0.0
        %1780 = vmatprep.subr.mxu0 0.0
        %1781 = vmatpush1.msra.mxu0 0.0
        %1782 = vmatprep.subr.mxu0 0.0
        %1783 = vmatpush1.msra.mxu0 0.0
        %1784 = vmatprep.subr.mxu0 0.0
        %1785 = vmatpush1.msra.mxu0 0.0
        %1786 = vmatprep.subr.mxu0 0.0
        %1787 = vmatpush1.msra.mxu0 0.0
        %1788 = vmatprep.subr.mxu0 0.0
        %1789 = vmatpush1.msra.mxu0 0.0
        %1790 = vmatprep.subr.mxu0 0.0
        %1791 = vmatpush1.msra.mxu0 0.0
        %1792 = vmatprep.subr.mxu0 0.0
        %1793 = vmatpush1.msra.mxu0 0.0
        %1794 = vmatprep.subr.mxu0 0.0
        %1795 = vmatpush1.msra.mxu0 0.0
        %1796 = vmatprep.subr.mxu0 0.0
        %1797 = vmatpush1.msra.mxu0 0.0
        %1798 = vmatprep.subr.mxu0 0.0
        %1799 = vmatpush1.msra.mxu0 0.0
        %1800 = vmatprep.subr.mxu0 0.0
        %1801 = vmatpush1.msra.mxu0 0.0
        %1802 = vmatprep.subr.mxu0 0.0
        %1803 = vmatpush1.msra.mxu0 0.0
        %1804 = vmatprep.subr.mxu0 0.0
        %1805 = vmatpush1.msra.mxu0 %v1020
        %1806 = vmatprep.subr.mxu0 0.0
        %1807 = vmatpush2.msra.mxu0 0.0
        %1808 = vmatprep.subr.mxu0 0.0
        %1809 = vmatpush2.msra.mxu0 0.0
        %1810 = vmatprep.subr.mxu0 0.0
        %1811 = vmatpush2.msra.mxu0 0.0
        %1812 = vmatprep.subr.mxu0 0.0
        %1813 = vmatpush2.msra.mxu0 0.0
        %1814 = vmatprep.subr.mxu0 0.0
        %1815 = vmatpush2.msra.mxu0 0.0
        %1816 = vmatprep.subr.mxu0 0.0
        %1817 = vmatpush2.msra.mxu0 0.0
        %1818 = vmatprep.subr.mxu0 0.0
        %1819 = vmatpush2.msra.mxu0 0.0
        %1820 = vmatprep.subr.mxu0 0.0
        %1821 = vmatpush2.msra.mxu0 0.0
        %1822 = vmatprep.subr.mxu0 0.0
        %1823 = vmatpush2.msra.mxu0 0.0
        %1824 = vmatprep.subr.mxu0 0.0
        %1825 = vmatpush2.msra.mxu0 0.0
        %1826 = vmatprep.subr.mxu0 0.0
        %1827 = vmatpush2.msra.mxu0 0.0
        %1828 = vmatprep.subr.mxu0 0.0
        %1829 = vmatpush2.msra.mxu0 0.0
        %1830 = vmatprep.subr.mxu0 0.0
        %1831 = vmatpush2.msra.mxu0 0.0
        %1832 = vmatprep.subr.mxu0 0.0
        %1833 = vmatpush2.msra.mxu0 0.0
        %1834 = vmatprep.subr.mxu0 0.0
        %1835 = vmatpush2.msra.mxu0 0.0
        %1836 = vmatprep.subr.mxu0 0.0
        %1837 = vmatpush2.msra.mxu0 0.0
        %1838 = vmatprep.mubr.f32.mxu0 0.0
        %1839 = vmatmul.mubr.f32.gmra.mxu0 %v1772
        %v1840 = vpop.f32.mrf.mxu0
        %v1841 = vadd.f32 0.0, %v1840
        %v1842 = vpop.f32.mrf.mxu0
        %1843 = vdwg.mxu0
        %v1845 = vsel %vm1521, %v1103, 0
        %v1848 = vsel %vm1521, %v1186, 0
        %1850 = vmatprep.subr.mxu0 0.0
        %1851 = vmatpush1.xpose.msra.mxu0 0.0
        %1852 = vmatprep.subr.mxu0 0.0
        %1853 = vmatpush1.xpose.msra.mxu0 0.0
        %1854 = vmatprep.subr.mxu0 0.0
        %1855 = vmatpush1.xpose.msra.mxu0 0.0
        %1856 = vmatprep.subr.mxu0 0.0
        %1857 = vmatpush1.xpose.msra.mxu0 0.0
        %1858 = vmatprep.subr.mxu0 0.0
        %1859 = vmatpush1.xpose.msra.mxu0 0.0
        %1860 = vmatprep.subr.mxu0 0.0
        %1861 = vmatpush1.xpose.msra.mxu0 0.0
        %1862 = vmatprep.subr.mxu0 0.0
        %1863 = vmatpush1.xpose.msra.mxu0 0.0
        %1864 = vmatprep.subr.mxu0 0.0
        %1865 = vmatpush1.xpose.msra.mxu0 0.0
        %1866 = vmatprep.subr.mxu0 0.0
        %1867 = vmatpush1.xpose.msra.mxu0 0.0
        %1868 = vmatprep.subr.mxu0 0.0
        %1869 = vmatpush1.xpose.msra.mxu0 0.0
        %1870 = vmatprep.subr.mxu0 0.0
        %1871 = vmatpush1.xpose.msra.mxu0 0.0
        %1872 = vmatprep.subr.mxu0 0.0
        %1873 = vmatpush1.xpose.msra.mxu0 0.0
        %1874 = vmatprep.subr.mxu0 0.0
        %1875 = vmatpush1.xpose.msra.mxu0 0.0
        %1876 = vmatprep.subr.mxu0 0.0
        %1877 = vmatpush1.xpose.msra.mxu0 0.0
        %1878 = vmatprep.subr.mxu0 0.0
        %1879 = vmatpush1.xpose.msra.mxu0 0.0
        %1880 = vmatprep.subr.mxu0 0.0
        %1881 = vmatpush1.xpose.msra.mxu0 %v1848
        %1882 = vmatprep.subr.mxu0 0.0
        %1883 = vmatpush2.xpose.msra.mxu0 0.0
        %1884 = vmatprep.subr.mxu0 0.0
        %1885 = vmatpush2.xpose.msra.mxu0 0.0
        %1886 = vmatprep.subr.mxu0 0.0
        %1887 = vmatpush2.xpose.msra.mxu0 0.0
        %1888 = vmatprep.subr.mxu0 0.0
        %1889 = vmatpush2.xpose.msra.mxu0 0.0
        %1890 = vmatprep.subr.mxu0 0.0
        %1891 = vmatpush2.xpose.msra.mxu0 0.0
        %1892 = vmatprep.subr.mxu0 0.0
        %1893 = vmatpush2.xpose.msra.mxu0 0.0
        %1894 = vmatprep.subr.mxu0 0.0
        %1895 = vmatpush2.xpose.msra.mxu0 0.0
        %1896 = vmatprep.subr.mxu0 0.0
        %1897 = vmatpush2.xpose.msra.mxu0 0.0
        %1898 = vmatprep.subr.mxu0 0.0
        %1899 = vmatpush2.xpose.msra.mxu0 0.0
        %1900 = vmatprep.subr.mxu0 0.0
        %1901 = vmatpush2.xpose.msra.mxu0 0.0
        %1902 = vmatprep.subr.mxu0 0.0
        %1903 = vmatpush2.xpose.msra.mxu0 0.0
        %1904 = vmatprep.subr.mxu0 0.0
        %1905 = vmatpush2.xpose.msra.mxu0 0.0
        %1906 = vmatprep.subr.mxu0 0.0
        %1907 = vmatpush2.xpose.msra.mxu0 0.0
        %1908 = vmatprep.subr.mxu0 0.0
        %1909 = vmatpush2.xpose.msra.mxu0 0.0
        %1910 = vmatprep.subr.mxu0 0.0
        %1911 = vmatpush2.xpose.msra.mxu0 0.0
        %1912 = vmatprep.subr.mxu0 0.0
        %1913 = vmatpush2.xpose.msra.mxu0 0.0
        %1914 = vmatprep.mubr.f32.mxu0 0.0
        %1915 = vmatmul.mubr.f32.gmra.mxu0 %v1845
        %v1916 = vpop.f32.mrf.mxu0
        %v1917 = vadd.f32 0.0, %v1916
        %v1918 = vpop.f32.mrf.mxu0
        %1919 = vdwg.mxu0
        %v1920 = vmul.f32 %v1917, 0.35355338
        %v1921 = vsel %vm1521, %v1920, -inf
        %1922 = vmax.xlane.f32.xlu0 %v1921
        %v1923 = vpop.xlane.xlu0 %1922
        %v1924 = vsub.f32 %v1920, %v1923
        %v1925 = vmul.f32 %v1924, 1.442695
        %v1926 = vpow.pop %v1925
        %v1927 = vsel %vm1521, %v1926, 0.0
        %1928 = vadd.xlane.f32.xlu0 %v1927
        %v1929 = vpop.xlane.xlu0 %1928
        %v1930 = vrcp.pop %v1929
        %v1931 = vmul.f32 %v1926, %v1930
        %v1933 = vsel %vm1521, %v1931, 0
        %1935 = vmatprep.subr.mxu0 0.0
        %1936 = vmatpush1.msra.mxu0 0.0
        %1937 = vmatprep.subr.mxu0 0.0
        %1938 = vmatpush1.msra.mxu0 0.0
        %1939 = vmatprep.subr.mxu0 0.0
        %1940 = vmatpush1.msra.mxu0 0.0
        %1941 = vmatprep.subr.mxu0 0.0
        %1942 = vmatpush1.msra.mxu0 0.0
        %1943 = vmatprep.subr.mxu0 0.0
        %1944 = vmatpush1.msra.mxu0 0.0
        %1945 = vmatprep.subr.mxu0 0.0
        %1946 = vmatpush1.msra.mxu0 0.0
        %1947 = vmatprep.subr.mxu0 0.0
        %1948 = vmatpush1.msra.mxu0 0.0
        %1949 = vmatprep.subr.mxu0 0.0
        %1950 = vmatpush1.msra.mxu0 0.0
        %1951 = vmatprep.subr.mxu0 0.0
        %1952 = vmatpush1.msra.mxu0 0.0
        %1953 = vmatprep.subr.mxu0 0.0
        %1954 = vmatpush1.msra.mxu0 0.0
        %1955 = vmatprep.subr.mxu0 0.0
        %1956 = vmatpush1.msra.mxu0 0.0
        %1957 = vmatprep.subr.mxu0 0.0
        %1958 = vmatpush1.msra.mxu0 0.0
        %1959 = vmatprep.subr.mxu0 0.0
        %1960 = vmatpush1.msra.mxu0 0.0
        %1961 = vmatprep.subr.mxu0 0.0
        %1962 = vmatpush1.msra.mxu0 0.0
        %1963 = vmatprep.subr.mxu0 0.0
        %1964 = vmatpush1.msra.mxu0 0.0
        %1965 = vmatprep.subr.mxu0 0.0
        %1966 = vmatpush1.msra.mxu0 %v1269
        %1967 = vmatprep.subr.mxu0 0.0
        %1968 = vmatpush2.msra.mxu0 0.0
        %1969 = vmatprep.subr.mxu0 0.0
        %1970 = vmatpush2.msra.mxu0 0.0
        %1971 = vmatprep.subr.mxu0 0.0
        %1972 = vmatpush2.msra.mxu0 0.0
        %1973 = vmatprep.subr.mxu0 0.0
        %1974 = vmatpush2.msra.mxu0 0.0
        %1975 = vmatprep.subr.mxu0 0.0
        %1976 = vmatpush2.msra.mxu0 0.0
        %1977 = vmatprep.subr.mxu0 0.0
        %1978 = vmatpush2.msra.mxu0 0.0
        %1979 = vmatprep.subr.mxu0 0.0
        %1980 = vmatpush2.msra.mxu0 0.0
        %1981 = vmatprep.subr.mxu0 0.0
        %1982 = vmatpush2.msra.mxu0 0.0
        %1983 = vmatprep.subr.mxu0 0.0
        %1984 = vmatpush2.msra.mxu0 0.0
        %1985 = vmatprep.subr.mxu0 0.0
        %1986 = vmatpush2.msra.mxu0 0.0
        %1987 = vmatprep.subr.mxu0 0.0
        %1988 = vmatpush2.msra.mxu0 0.0
        %1989 = vmatprep.subr.mxu0 0.0
        %1990 = vmatpush2.msra.mxu0 0.0
        %1991 = vmatprep.subr.mxu0 0.0
        %1992 = vmatpush2.msra.mxu0 0.0
        %1993 = vmatprep.subr.mxu0 0.0
        %1994 = vmatpush2.msra.mxu0 0.0
        %1995 = vmatprep.subr.mxu0 0.0
        %1996 = vmatpush2.msra.mxu0 0.0
        %1997 = vmatprep.subr.mxu0 0.0
        %1998 = vmatpush2.msra.mxu0 0.0
        %1999 = vmatprep.mubr.f32.mxu0 0.0
        %2000 = vmatmul.mubr.f32.gmra.mxu0 %v1933
        %v2001 = vpop.f32.mrf.mxu0
        %v2002 = vadd.f32 0.0, %v2001
        %v2003 = vpop.f32.mrf.mxu0
        %2004 = vdwg.mxu0
        %v2006 = vsel %vm1521, %v1352, 0
        %v2009 = vsel %vm1521, %v1435, 0
        %2011 = vmatprep.subr.mxu0 0.0
        %2012 = vmatpush1.xpose.msra.mxu0 0.0
        %2013 = vmatprep.subr.mxu0 0.0
        %2014 = vmatpush1.xpose.msra.mxu0 0.0
        %2015 = vmatprep.subr.mxu0 0.0
        %2016 = vmatpush1.xpose.msra.mxu0 0.0
        %2017 = vmatprep.subr.mxu0 0.0
        %2018 = vmatpush1.xpose.msra.mxu0 0.0
        %2019 = vmatprep.subr.mxu0 0.0
        %2020 = vmatpush1.xpose.msra.mxu0 0.0
        %2021 = vmatprep.subr.mxu0 0.0
        %2022 = vmatpush1.xpose.msra.mxu0 0.0
        %2023 = vmatprep.subr.mxu0 0.0
        %2024 = vmatpush1.xpose.msra.mxu0 0.0
        %2025 = vmatprep.subr.mxu0 0.0
        %2026 = vmatpush1.xpose.msra.mxu0 0.0
        %2027 = vmatprep.subr.mxu0 0.0
        %2028 = vmatpush1.xpose.msra.mxu0 0.0
        %2029 = vmatprep.subr.mxu0 0.0
        %2030 = vmatpush1.xpose.msra.mxu0 0.0
        %2031 = vmatprep.subr.mxu0 0.0
        %2032 = vmatpush1.xpose.msra.mxu0 0.0
        %2033 = vmatprep.subr.mxu0 0.0
        %2034 = vmatpush1.xpose.msra.mxu0 0.0
        %2035 = vmatprep.subr.mxu0 0.0
        %2036 = vmatpush1.xpose.msra.mxu0 0.0
        %2037 = vmatprep.subr.mxu0 0.0
        %2038 = vmatpush1.xpose.msra.mxu0 0.0
        %2039 = vmatprep.subr.mxu0 0.0
        %2040 = vmatpush1.xpose.msra.mxu0 0.0
        %2041 = vmatprep.subr.mxu0 0.0
        %2042 = vmatpush1.xpose.msra.mxu0 %v2009
        %2043 = vmatprep.subr.mxu0 0.0
        %2044 = vmatpush2.xpose.msra.mxu0 0.0
        %2045 = vmatprep.subr.mxu0 0.0
        %2046 = vmatpush2.xpose.msra.mxu0 0.0
        %2047 = vmatprep.subr.mxu0 0.0
        %2048 = vmatpush2.xpose.msra.mxu0 0.0
        %2049 = vmatprep.subr.mxu0 0.0
        %2050 = vmatpush2.xpose.msra.mxu0 0.0
        %2051 = vmatprep.subr.mxu0 0.0
        %2052 = vmatpush2.xpose.msra.mxu0 0.0
        %2053 = vmatprep.subr.mxu0 0.0
        %2054 = vmatpush2.xpose.msra.mxu0 0.0
        %2055 = vmatprep.subr.mxu0 0.0
        %2056 = vmatpush2.xpose.msra.mxu0 0.0
        %2057 = vmatprep.subr.mxu0 0.0
        %2058 = vmatpush2.xpose.msra.mxu0 0.0
        %2059 = vmatprep.subr.mxu0 0.0
        %2060 = vmatpush2.xpose.msra.mxu0 0.0
        %2061 = vmatprep.subr.mxu0 0.0
        %2062 = vmatpush2.xpose.msra.mxu0 0.0
        %2063 = vmatprep.subr.mxu0 0.0
        %2064 = vmatpush2.xpose.msra.mxu0 0.0
        %2065 = vmatprep.subr.mxu0 0.0
        %2066 = vmatpush2.xpose.msra.mxu0 0.0
        %2067 = vmatprep.subr.mxu0 0.0
        %2068 = vmatpush2.xpose.msra.mxu0 0.0
        %2069 = vmatprep.subr.mxu0 0.0
        %2070 = vmatpush2.xpose.msra.mxu0 0.0
        %2071 = vmatprep.subr.mxu0 0.0
        %2072 = vmatpush2.xpose.msra.mxu0 0.0
        %2073 = vmatprep.subr.mxu0 0.0
        %2074 = vmatpush2.xpose.msra.mxu0 0.0
        %2075 = vmatprep.mubr.f32.mxu0 0.0
        %2076 = vmatmul.mubr.f32.gmra.mxu0 %v2006
        %v2077 = vpop.f32.mrf.mxu0
        %v2078 = vadd.f32 0.0, %v2077
        %v2079 = vpop.f32.mrf.mxu0
        %2080 = vdwg.mxu0
        %v2081 = vmul.f32 %v2078, 0.35355338
        %v2082 = vsel %vm1521, %v2081, -inf
        %2083 = vmax.xlane.f32.xlu0 %v2082
        %v2084 = vpop.xlane.xlu0 %2083
        %v2085 = vsub.f32 %v2081, %v2084
        %v2086 = vmul.f32 %v2085, 1.442695
        %v2087 = vpow.pop %v2086
        %v2088 = vsel %vm1521, %v2087, 0.0
        %2089 = vadd.xlane.f32.xlu0 %v2088
        %v2090 = vpop.xlane.xlu0 %2089
        %v2091 = vrcp.pop %v2090
        %v2092 = vmul.f32 %v2087, %v2091
        %v2094 = vsel %vm1521, %v2092, 0
        %2096 = vmatprep.subr.mxu0 0.0
        %2097 = vmatpush1.msra.mxu0 0.0
        %2098 = vmatprep.subr.mxu0 0.0
        %2099 = vmatpush1.msra.mxu0 0.0
        %2100 = vmatprep.subr.mxu0 0.0
        %2101 = vmatpush1.msra.mxu0 0.0
        %2102 = vmatprep.subr.mxu0 0.0
        %2103 = vmatpush1.msra.mxu0 0.0
        %2104 = vmatprep.subr.mxu0 0.0
        %2105 = vmatpush1.msra.mxu0 0.0
        %2106 = vmatprep.subr.mxu0 0.0
        %2107 = vmatpush1.msra.mxu0 0.0
        %2108 = vmatprep.subr.mxu0 0.0
        %2109 = vmatpush1.msra.mxu0 0.0
        %2110 = vmatprep.subr.mxu0 0.0
        %2111 = vmatpush1.msra.mxu0 0.0
        %2112 = vmatprep.subr.mxu0 0.0
        %2113 = vmatpush1.msra.mxu0 0.0
        %2114 = vmatprep.subr.mxu0 0.0
        %2115 = vmatpush1.msra.mxu0 0.0
        %2116 = vmatprep.subr.mxu0 0.0
        %2117 = vmatpush1.msra.mxu0 0.0
        %2118 = vmatprep.subr.mxu0 0.0
        %2119 = vmatpush1.msra.mxu0 0.0
        %2120 = vmatprep.subr.mxu0 0.0
        %2121 = vmatpush1.msra.mxu0 0.0
        %2122 = vmatprep.subr.mxu0 0.0
        %2123 = vmatpush1.msra.mxu0 0.0
        %2124 = vmatprep.subr.mxu0 0.0
        %2125 = vmatpush1.msra.mxu0 0.0
        %2126 = vmatprep.subr.mxu0 0.0
        %2127 = vmatpush1.msra.mxu0 %v1518
        %2128 = vmatprep.subr.mxu0 0.0
        %2129 = vmatpush2.msra.mxu0 0.0
        %2130 = vmatprep.subr.mxu0 0.0
        %2131 = vmatpush2.msra.mxu0 0.0
        %2132 = vmatprep.subr.mxu0 0.0
        %2133 = vmatpush2.msra.mxu0 0.0
        %2134 = vmatprep.subr.mxu0 0.0
        %2135 = vmatpush2.msra.mxu0 0.0
        %2136 = vmatprep.subr.mxu0 0.0
        %2137 = vmatpush2.msra.mxu0 0.0
        %2138 = vmatprep.subr.mxu0 0.0
        %2139 = vmatpush2.msra.mxu0 0.0
        %2140 = vmatprep.subr.mxu0 0.0
        %2141 = vmatpush2.msra.mxu0 0.0
        %2142 = vmatprep.subr.mxu0 0.0
        %2143 = vmatpush2.msra.mxu0 0.0
        %2144 = vmatprep.subr.mxu0 0.0
        %2145 = vmatpush2.msra.mxu0 0.0
        %2146 = vmatprep.subr.mxu0 0.0
        %2147 = vmatpush2.msra.mxu0 0.0
        %2148 = vmatprep.subr.mxu0 0.0
        %2149 = vmatpush2.msra.mxu0 0.0
        %2150 = vmatprep.subr.mxu0 0.0
        %2151 = vmatpush2.msra.mxu0 0.0
        %2152 = vmatprep.subr.mxu0 0.0
        %2153 = vmatpush2.msra.mxu0 0.0
        %2154 = vmatprep.subr.mxu0 0.0
        %2155 = vmatpush2.msra.mxu0 0.0
        %2156 = vmatprep.subr.mxu0 0.0
        %2157 = vmatpush2.msra.mxu0 0.0
        %2158 = vmatprep.subr.mxu0 0.0
        %2159 = vmatpush2.msra.mxu0 0.0
        %2160 = vmatprep.mubr.f32.mxu0 0.0
        %2161 = vmatmul.mubr.f32.gmra.mxu0 %v2094
        %v2162 = vpop.f32.mrf.mxu0
        %v2163 = vadd.f32 0.0, %v2162
        %v2164 = vpop.f32.mrf.mxu0
        %2165 = vdwg.mxu0
        %2166 = vrot.lane.b32.xlu0 %v1770, 8
        %v2167 = vpop.permute.xlu0 %2166
        %2169 = vrot.lane.b32.xlu0 %v1931, 16
        %v2170 = vpop.permute.xlu0 %2169
        %2172 = vrot.lane.b32.xlu0 %v2092, 24
        %v2173 = vpop.permute.xlu0 %2172
        %v2175 = vsel %vm1521, %v1609, %v2167
        %vm2176 = vcmask 130048
        %v2177 = vsel %vm2176, %v2175, %v2170
        %vm2178 = vcmask 195584
        %v2179 = vsel %vm2178, %v2177, %v2173
        %2180 = vst.msk [vmem:[%s382] sm:$0xff] %vm424, %v2179
        %2182 = vrot.lane.b32.xlu0 %v1841, 8
        %v2183 = vpop.permute.xlu0 %2182
        %2186 = vrot.lane.b32.xlu0 %v2002, 16
        %v2187 = vpop.permute.xlu0 %2186
        %2190 = vrot.lane.b32.xlu0 %v2163, 24
        %v2191 = vpop.permute.xlu0 %2190
        %v2193 = vsel %vm1521, %v1680, %v2183
        %v2194 = vsel %vm2176, %v2193, %v2187
        %v2195 = vsel %vm2178, %v2194, %v2191
        %v2196 = vld [vmem:[%s5] sm:$0xff]
        %v2197 = vld [vmem:[%s5 + $0x8] sm:$0xff]
        %v2198 = vld [vmem:[%s5 + $0x10] sm:$0xff]
        %v2199 = vld [vmem:[%s5 + $0x18] sm:$0xff]
        %v2200 = vlaneseq
        %v2201 = vshrl.u32 %v2200, 7
        %v2202 = vsub.s32 0, %v2201
        %v2203 = vrot.slane %v523, %v2202
        %v2205 = vsel %vm424, %v2195, 0
        %2207 = vmatprep.subr.mxu0 0.0
        %2208 = vmatpush1.msra.mxu0 0.0
        %2209 = vmatprep.subr.mxu0 0.0
        %2210 = vmatpush1.msra.mxu0 0.0
        %2211 = vmatprep.subr.mxu0 0.0
        %2212 = vmatpush1.msra.mxu0 0.0
        %2213 = vmatprep.subr.mxu0 0.0
        %2214 = vmatpush1.msra.mxu0 0.0
        %2215 = vmatprep.subr.mxu0 0.0
        %2216 = vmatpush1.msra.mxu0 0.0
        %2217 = vmatprep.subr.mxu0 0.0
        %2218 = vmatpush1.msra.mxu0 0.0
        %2219 = vmatprep.subr.mxu0 0.0
        %2220 = vmatpush1.msra.mxu0 0.0
        %2221 = vmatprep.subr.mxu0 0.0
        %2222 = vmatpush1.msra.mxu0 0.0
        %2223 = vmatprep.subr.mxu0 0.0
        %2224 = vmatpush1.msra.mxu0 0.0
        %2225 = vmatprep.subr.mxu0 0.0
        %2226 = vmatpush1.msra.mxu0 0.0
        %2227 = vmatprep.subr.mxu0 0.0
        %2228 = vmatpush1.msra.mxu0 0.0
        %2229 = vmatprep.subr.mxu0 0.0
        %2230 = vmatpush1.msra.mxu0 0.0
        %2231 = vmatprep.subr.mxu0 0.0
        %2232 = vmatpush1.msra.mxu0 %v2199
        %2233 = vmatprep.subr.mxu0 0.0
        %2234 = vmatpush1.msra.mxu0 %v2198
        %2235 = vmatprep.subr.mxu0 0.0
        %2236 = vmatpush1.msra.mxu0 %v2197
        %2237 = vmatprep.subr.mxu0 0.0
        %2238 = vmatpush1.msra.mxu0 %v2196
        %2239 = vmatprep.subr.mxu0 0.0
        %2240 = vmatpush2.msra.mxu0 0.0
        %2241 = vmatprep.subr.mxu0 0.0
        %2242 = vmatpush2.msra.mxu0 0.0
        %2243 = vmatprep.subr.mxu0 0.0
        %2244 = vmatpush2.msra.mxu0 0.0
        %2245 = vmatprep.subr.mxu0 0.0
        %2246 = vmatpush2.msra.mxu0 0.0
        %2247 = vmatprep.subr.mxu0 0.0
        %2248 = vmatpush2.msra.mxu0 0.0
        %2249 = vmatprep.subr.mxu0 0.0
        %2250 = vmatpush2.msra.mxu0 0.0
        %2251 = vmatprep.subr.mxu0 0.0
        %2252 = vmatpush2.msra.mxu0 0.0
        %2253 = vmatprep.subr.mxu0 0.0
        %2254 = vmatpush2.msra.mxu0 0.0
        %2255 = vmatprep.subr.mxu0 0.0
        %2256 = vmatpush2.msra.mxu0 0.0
        %2257 = vmatprep.subr.mxu0 0.0
        %2258 = vmatpush2.msra.mxu0 0.0
        %2259 = vmatprep.subr.mxu0 0.0
        %2260 = vmatpush2.msra.mxu0 0.0
        %2261 = vmatprep.subr.mxu0 0.0
        %2262 = vmatpush2.msra.mxu0 0.0
        %2263 = vmatprep.subr.mxu0 0.0
        %2264 = vmatpush2.msra.mxu0 0.0
        %2265 = vmatprep.subr.mxu0 0.0
        %2266 = vmatpush2.msra.mxu0 0.0
        %2267 = vmatprep.subr.mxu0 0.0
        %2268 = vmatpush2.msra.mxu0 0.0
        %2269 = vmatprep.subr.mxu0 0.0
        %2270 = vmatpush2.msra.mxu0 0.0
        %2271 = vmatprep.mubr.f32.mxu0 0.0
        %2272 = vmatmul.mubr.f32.gmra.mxu0 %v2205
        %v2273 = vpop.f32.mrf.mxu0
        %v2274 = vadd.f32 %v2203, %v2273
        %v2275 = vpop.f32.mrf.mxu0
        %2276 = vdwg.mxu0
        %v2277 = vadd.f32 %v522, %v2274
        %v2278 = vsel %vm424, %v2277, 0.0
        %2279 = vadd.xlane.f32.xlu0 %v2278
        %v2280 = vpop.xlane.xlu0 %2279
        %v2281 = vmul.f32 %v2280, %v502
        %v2282 = vsub.f32 %v2277, %v2281
        %v2283 = vmul.f32 %v2282, %v2282
        %v2284 = vsel %vm424, %v2283, 0.0
        %2285 = vadd.xlane.f32.xlu0 %v2284
        %v2286 = vpop.xlane.xlu0 %2285
        %v2287 = vmul.f32 %v2286, %v502
        %v2288 = vadd.f32 %v2287, 1e-05
        %v2289 = vrsqrt.pop %v2288
        %v2290 = vmul.f32 %v2282, %v2289
        %v2291 = vlaneseq
        %v2292 = vshrl.u32 %v2291, 7
        %v2293 = vsub.s32 1, %v2292
        %v2294 = vrot.slane %v523, %v2293
        %v2295 = vmul.f32 %v2290, %v2294
        %v2296 = vlaneseq
        %v2297 = vshrl.u32 %v2296, 7
        %v2298 = vsub.s32 2, %v2297
        %v2299 = vrot.slane %v523, %v2298
        %v2300 = vadd.f32 %v2295, %v2299
        %v2301 = vld [vmem:[%s6] sm:$0xff]
        %v2302 = vld [vmem:[%s6 + $0x8] sm:$0xff]
        %v2303 = vld [vmem:[%s6 + $0x10] sm:$0xff]
        %v2304 = vld [vmem:[%s6 + $0x18] sm:$0xff]
        %v2305 = vlaneseq
        %v2306 = vshrl.u32 %v2305, 7
        %v2307 = vsub.s32 3, %v2306
        %v2308 = vrot.slane %v523, %v2307
        %v2310 = vsel %vm424, %v2300, 0
        %2312 = vmatprep.subr.mxu0 0.0
        %2313 = vmatpush1.msra.mxu0 0.0
        %2314 = vmatprep.subr.mxu0 0.0
        %2315 = vmatpush1.msra.mxu0 0.0
        %2316 = vmatprep.subr.mxu0 0.0
        %2317 = vmatpush1.msra.mxu0 0.0
        %2318 = vmatprep.subr.mxu0 0.0
        %2319 = vmatpush1.msra.mxu0 0.0
        %2320 = vmatprep.subr.mxu0 0.0
        %2321 = vmatpush1.msra.mxu0 0.0
        %2322 = vmatprep.subr.mxu0 0.0
        %2323 = vmatpush1.msra.mxu0 0.0
        %2324 = vmatprep.subr.mxu0 0.0
        %2325 = vmatpush1.msra.mxu0 0.0
        %2326 = vmatprep.subr.mxu0 0.0
        %2327 = vmatpush1.msra.mxu0 0.0
        %2328 = vmatprep.subr.mxu0 0.0
        %2329 = vmatpush1.msra.mxu0 0.0
        %2330 = vmatprep.subr.mxu0 0.0
        %2331 = vmatpush1.msra.mxu0 0.0
        %2332 = vmatprep.subr.mxu0 0.0
        %2333 = vmatpush1.msra.mxu0 0.0
        %2334 = vmatprep.subr.mxu0 0.0
        %2335 = vmatpush1.msra.mxu0 0.0
        %2336 = vmatprep.subr.mxu0 0.0
        %2337 = vmatpush1.msra.mxu0 %v2304
        %2338 = vmatprep.subr.mxu0 0.0
        %2339 = vmatpush1.msra.mxu0 %v2303
        %2340 = vmatprep.subr.mxu0 0.0
        %2341 = vmatpush1.msra.mxu0 %v2302
        %2342 = vmatprep.subr.mxu0 0.0
        %2343 = vmatpush1.msra.mxu0 %v2301
        %2344 = vmatprep.subr.mxu0 0.0
        %2345 = vmatpush2.msra.mxu0 0.0
        %2346 = vmatprep.subr.mxu0 0.0
        %2347 = vmatpush2.msra.mxu0 0.0
        %2348 = vmatprep.subr.mxu0 0.0
        %2349 = vmatpush2.msra.mxu0 0.0
        %2350 = vmatprep.subr.mxu0 0.0
        %2351 = vmatpush2.msra.mxu0 0.0
        %2352 = vmatprep.subr.mxu0 0.0
        %2353 = vmatpush2.msra.mxu0 0.0
        %2354 = vmatprep.subr.mxu0 0.0
        %2355 = vmatpush2.msra.mxu0 0.0
        %2356 = vmatprep.subr.mxu0 0.0
        %2357 = vmatpush2.msra.mxu0 0.0
        %2358 = vmatprep.subr.mxu0 0.0
        %2359 = vmatpush2.msra.mxu0 0.0
        %2360 = vmatprep.subr.mxu0 0.0
        %2361 = vmatpush2.msra.mxu0 0.0
        %2362 = vmatprep.subr.mxu0 0.0
        %2363 = vmatpush2.msra.mxu0 0.0
        %2364 = vmatprep.subr.mxu0 0.0
        %2365 = vmatpush2.msra.mxu0 0.0
        %2366 = vmatprep.subr.mxu0 0.0
        %2367 = vmatpush2.msra.mxu0 0.0
        %2368 = vmatprep.subr.mxu0 0.0
        %2369 = vmatpush2.msra.mxu0 0.0
        %2370 = vmatprep.subr.mxu0 0.0
        %2371 = vmatpush2.msra.mxu0 0.0
        %2372 = vmatprep.subr.mxu0 0.0
        %2373 = vmatpush2.msra.mxu0 0.0
        %2374 = vmatprep.subr.mxu0 0.0
        %2375 = vmatpush2.msra.mxu0 0.0
        %2376 = vmatprep.mubr.f32.mxu0 0.0
        %2377 = vmatmul.mubr.f32.gmra.mxu0 %v2310
        %v2378 = vpop.f32.mrf.mxu0
        %v2379 = vadd.f32 %v2308, %v2378
        %v2380 = vpop.f32.mrf.mxu0
        %2381 = vdwg.mxu0
        %v2382 = vmax.f32 %v2379, 0.0
        %v2383 = vld [vmem:[%s7] sm:$0xff]
        %v2384 = vld [vmem:[%s7 + $0x8] sm:$0xff]
        %v2385 = vld [vmem:[%s7 + $0x10] sm:$0xff]
        %v2386 = vld [vmem:[%s7 + $0x18] sm:$0xff]
        %v2387 = vld [vmem:[%s7 + $0x20] sm:$0xff]
        %v2388 = vld [vmem:[%s7 + $0x28] sm:$0xff]
        %v2389 = vld [vmem:[%s7 + $0x30] sm:$0xff]
        %v2390 = vld [vmem:[%s7 + $0x38] sm:$0xff]
        %v2391 = vld [vmem:[%s7 + $0x40] sm:$0xff]
        %v2392 = vld [vmem:[%s7 + $0x48] sm:$0xff]
        %v2393 = vld [vmem:[%s7 + $0x50] sm:$0xff]
        %v2394 = vld [vmem:[%s7 + $0x58] sm:$0xff]
        %v2395 = vld [vmem:[%s7 + $0x60] sm:$0xff]
        %v2396 = vld [vmem:[%s7 + $0x68] sm:$0xff]
        %v2397 = vld [vmem:[%s7 + $0x70] sm:$0xff]
        %v2398 = vld [vmem:[%s7 + $0x78] sm:$0xff]
        %v2399 = vlaneseq
        %v2400 = vshrl.u32 %v2399, 7
        %v2401 = vsub.s32 4, %v2400
        %v2402 = vrot.slane %v523, %v2401
        %2403 = vmatprep.subr.mxu0 0.0
        %2404 = vmatpush1.msra.mxu0 %v2398
        %2405 = vmatprep.subr.mxu0 0.0
        %2406 = vmatpush1.msra.mxu0 %v2397
        %2407 = vmatprep.subr.mxu0 0.0
        %2408 = vmatpush1.msra.mxu0 %v2396
        %2409 = vmatprep.subr.mxu0 0.0
        %2410 = vmatpush1.msra.mxu0 %v2395
        %2411 = vmatprep.subr.mxu0 0.0
        %2412 = vmatpush1.msra.mxu0 %v2394
        %2413 = vmatprep.subr.mxu0 0.0
        %2414 = vmatpush1.msra.mxu0 %v2393
        %2415 = vmatprep.subr.mxu0 0.0
        %2416 = vmatpush1.msra.mxu0 %v2392
        %2417 = vmatprep.subr.mxu0 0.0
        %2418 = vmatpush1.msra.mxu0 %v2391
        %2419 = vmatprep.subr.mxu0 0.0
        %2420 = vmatpush1.msra.mxu0 %v2390
        %2421 = vmatprep.subr.mxu0 0.0
        %2422 = vmatpush1.msra.mxu0 %v2389
        %2423 = vmatprep.subr.mxu0 0.0
        %2424 = vmatpush1.msra.mxu0 %v2388
        %2425 = vmatprep.subr.mxu0 0.0
        %2426 = vmatpush1.msra.mxu0 %v2387
        %2427 = vmatprep.subr.mxu0 0.0
        %2428 = vmatpush1.msra.mxu0 %v2386
        %2429 = vmatprep.subr.mxu0 0.0
        %2430 = vmatpush1.msra.mxu0 %v2385
        %2431 = vmatprep.subr.mxu0 0.0
        %2432 = vmatpush1.msra.mxu0 %v2384
        %2433 = vmatprep.subr.mxu0 0.0
        %2434 = vmatpush1.msra.mxu0 %v2383
        %2435 = vmatprep.subr.mxu0 0.0
        %2436 = vmatpush2.msra.mxu0 0.0
        %2437 = vmatprep.subr.mxu0 0.0
        %2438 = vmatpush2.msra.mxu0 0.0
        %2439 = vmatprep.subr.mxu0 0.0
        %2440 = vmatpush2.msra.mxu0 0.0
        %2441 = vmatprep.subr.mxu0 0.0
        %2442 = vmatpush2.msra.mxu0 0.0
        %2443 = vmatprep.subr.mxu0 0.0
        %2444 = vmatpush2.msra.mxu0 0.0
        %2445 = vmatprep.subr.mxu0 0.0
        %2446 = vmatpush2.msra.mxu0 0.0
        %2447 = vmatprep.subr.mxu0 0.0
        %2448 = vmatpush2.msra.mxu0 0.0
        %2449 = vmatprep.subr.mxu0 0.0
        %2450 = vmatpush2.msra.mxu0 0.0
        %2451 = vmatprep.subr.mxu0 0.0
        %2452 = vmatpush2.msra.mxu0 0.0
        %2453 = vmatprep.subr.mxu0 0.0
        %2454 = vmatpush2.msra.mxu0 0.0
        %2455 = vmatprep.subr.mxu0 0.0
        %2456 = vmatpush2.msra.mxu0 0.0
        %2457 = vmatprep.subr.mxu0 0.0
        %2458 = vmatpush2.msra.mxu0 0.0
        %2459 = vmatprep.subr.mxu0 0.0
        %2460 = vmatpush2.msra.mxu0 0.0
        %2461 = vmatprep.subr.mxu0 0.0
        %2462 = vmatpush2.msra.mxu0 0.0
        %2463 = vmatprep.subr.mxu0 0.0
        %2464 = vmatpush2.msra.mxu0 0.0
        %2465 = vmatprep.subr.mxu0 0.0
        %2466 = vmatpush2.msra.mxu0 0.0
        %2467 = vmatprep.mubr.f32.mxu0 0.0
        %2468 = vmatmul.mubr.f32.gmra.mxu0 %v2382
        %v2469 = vpop.f32.mrf.mxu0
        %v2470 = vadd.f32 %v2402, %v2469
        %v2471 = vpop.f32.mrf.mxu0
        %2472 = vdwg.mxu0
        %v2473 = vadd.f32 %v2300, %v2470
        %v2474 = vsel %vm424, %v2473, 0.0
        %2475 = vadd.xlane.f32.xlu0 %v2474
        %v2476 = vpop.xlane.xlu0 %2475
        %v2477 = vmul.f32 %v2476, %v502
        %v2478 = vsub.f32 %v2473, %v2477
        %v2479 = vmul.f32 %v2478, %v2478
        %v2480 = vsel %vm424, %v2479, 0.0
        %2481 = vadd.xlane.f32.xlu0 %v2480
        %v2482 = vpop.xlane.xlu0 %2481
        %v2483 = vmul.f32 %v2482, %v502
        %v2484 = vadd.f32 %v2483, 1e-05
        %v2485 = vrsqrt.pop %v2484
        %v2486 = vmul.f32 %v2478, %v2485
        %v2487 = vlaneseq
        %v2488 = vshrl.u32 %v2487, 7
        %v2489 = vsub.s32 5, %v2488
        %v2490 = vrot.slane %v523, %v2489
        %v2491 = vmul.f32 %v2486, %v2490
        %v2492 = vlaneseq
        %v2493 = vshrl.u32 %v2492, 7
        %v2494 = vsub.s32 6, %v2493
        %v2495 = vrot.slane %v523, %v2494
        %v2496 = vadd.f32 %v2491, %v2495
        %s2497 = scalar_lea.vmem %s8, 8
        %v2498 = vld [vmem:[%s2497] sm:$0x7f]
        %s2499 = scalar_lea.vmem %s3, 384
        %v2500 = vld [vmem:[%s2499] sm:$0xff]
        %v2501 = vld [vmem:[%s2499 + $0x8] sm:$0xff]
        %v2502 = vld [vmem:[%s2499 + $0x10] sm:$0xff]
        %v2503 = vld [vmem:[%s2499 + $0x18] sm:$0xff]
        %s2504 = scalar_lea.vmem %s4, 12
        %v2505 = vld [vmem:[%s2504] sm:$0x1]
        %v2507 = vlaneseq
        %v2508 = vshrl.u32 %v2507, 7
        %v2509 = vsub.s32 0, %v2508
        %v2510 = vrot.slane %v2505, %v2509
        %v2513 = vsel %vm424, %v2496, 0
        %2515 = vmatprep.subr.mxu0 0.0
        %2516 = vmatpush1.msra.mxu0 0.0
        %2517 = vmatprep.subr.mxu0 0.0
        %2518 = vmatpush1.msra.mxu0 0.0
        %2519 = vmatprep.subr.mxu0 0.0
        %2520 = vmatpush1.msra.mxu0 0.0
        %2521 = vmatprep.subr.mxu0 0.0
        %2522 = vmatpush1.msra.mxu0 0.0
        %2523 = vmatprep.subr.mxu0 0.0
        %2524 = vmatpush1.msra.mxu0 0.0
        %2525 = vmatprep.subr.mxu0 0.0
        %2526 = vmatpush1.msra.mxu0 0.0
        %2527 = vmatprep.subr.mxu0 0.0
        %2528 = vmatpush1.msra.mxu0 0.0
        %2529 = vmatprep.subr.mxu0 0.0
        %2530 = vmatpush1.msra.mxu0 0.0
        %2531 = vmatprep.subr.mxu0 0.0
        %2532 = vmatpush1.msra.mxu0 0.0
        %2533 = vmatprep.subr.mxu0 0.0
        %2534 = vmatpush1.msra.mxu0 0.0
        %2535 = vmatprep.subr.mxu0 0.0
        %2536 = vmatpush1.msra.mxu0 0.0
        %2537 = vmatprep.subr.mxu0 0.0
        %2538 = vmatpush1.msra.mxu0 0.0
        %2539 = vmatprep.subr.mxu0 0.0
        %2540 = vmatpush1.msra.mxu0 %v2503
        %2541 = vmatprep.subr.mxu0 0.0
        %2542 = vmatpush1.msra.mxu0 %v2502
        %2543 = vmatprep.subr.mxu0 0.0
        %2544 = vmatpush1.msra.mxu0 %v2501
        %2545 = vmatprep.subr.mxu0 0.0
        %2546 = vmatpush1.msra.mxu0 %v2500
        %2547 = vmatprep.subr.mxu0 0.0
        %2548 = vmatpush2.msra.mxu0 0.0
        %2549 = vmatprep.subr.mxu0 0.0
        %2550 = vmatpush2.msra.mxu0 0.0
        %2551 = vmatprep.subr.mxu0 0.0
        %2552 = vmatpush2.msra.mxu0 0.0
        %2553 = vmatprep.subr.mxu0 0.0
        %2554 = vmatpush2.msra.mxu0 0.0
        %2555 = vmatprep.subr.mxu0 0.0
        %2556 = vmatpush2.msra.mxu0 0.0
        %2557 = vmatprep.subr.mxu0 0.0
        %2558 = vmatpush2.msra.mxu0 0.0
        %2559 = vmatprep.subr.mxu0 0.0
        %2560 = vmatpush2.msra.mxu0 0.0
        %2561 = vmatprep.subr.mxu0 0.0
        %2562 = vmatpush2.msra.mxu0 0.0
        %2563 = vmatprep.subr.mxu0 0.0
        %2564 = vmatpush2.msra.mxu0 0.0
        %2565 = vmatprep.subr.mxu0 0.0
        %2566 = vmatpush2.msra.mxu0 0.0
        %2567 = vmatprep.subr.mxu0 0.0
        %2568 = vmatpush2.msra.mxu0 0.0
        %2569 = vmatprep.subr.mxu0 0.0
        %2570 = vmatpush2.msra.mxu0 0.0
        %2571 = vmatprep.subr.mxu0 0.0
        %2572 = vmatpush2.msra.mxu0 0.0
        %2573 = vmatprep.subr.mxu0 0.0
        %2574 = vmatpush2.msra.mxu0 0.0
        %2575 = vmatprep.subr.mxu0 0.0
        %2576 = vmatpush2.msra.mxu0 0.0
        %2577 = vmatprep.subr.mxu0 0.0
        %2578 = vmatpush2.msra.mxu0 0.0
        %2579 = vmatprep.mubr.f32.mxu0 0.0
        %2580 = vmatmul.mubr.f32.gmra.mxu0 %v2513
        %v2581 = vpop.f32.mrf.mxu0
        %v2582 = vadd.f32 %v2510, %v2581
        %v2583 = vpop.f32.mrf.mxu0
        %2584 = vdwg.mxu0
        %s2585 = scalar_lea.vmem %s3, 416
        %v2586 = vld [vmem:[%s2585] sm:$0xff]
        %v2587 = vld [vmem:[%s2585 + $0x8] sm:$0xff]
        %v2588 = vld [vmem:[%s2585 + $0x10] sm:$0xff]
        %v2589 = vld [vmem:[%s2585 + $0x18] sm:$0xff]
        %s2590 = scalar_lea.vmem %s4, 13
        %v2591 = vld [vmem:[%s2590] sm:$0x1]
        %v2593 = vlaneseq
        %v2594 = vshrl.u32 %v2593, 7
        %v2595 = vsub.s32 0, %v2594
        %v2596 = vrot.slane %v2591, %v2595
        %2598 = vmatprep.subr.mxu0 0.0
        %2599 = vmatpush1.msra.mxu0 0.0
        %2600 = vmatprep.subr.mxu0 0.0
        %2601 = vmatpush1.msra.mxu0 0.0
        %2602 = vmatprep.subr.mxu0 0.0
        %2603 = vmatpush1.msra.mxu0 0.0
        %2604 = vmatprep.subr.mxu0 0.0
        %2605 = vmatpush1.msra.mxu0 0.0
        %2606 = vmatprep.subr.mxu0 0.0
        %2607 = vmatpush1.msra.mxu0 0.0
        %2608 = vmatprep.subr.mxu0 0.0
        %2609 = vmatpush1.msra.mxu0 0.0
        %2610 = vmatprep.subr.mxu0 0.0
        %2611 = vmatpush1.msra.mxu0 0.0
        %2612 = vmatprep.subr.mxu0 0.0
        %2613 = vmatpush1.msra.mxu0 0.0
        %2614 = vmatprep.subr.mxu0 0.0
        %2615 = vmatpush1.msra.mxu0 0.0
        %2616 = vmatprep.subr.mxu0 0.0
        %2617 = vmatpush1.msra.mxu0 0.0
        %2618 = vmatprep.subr.mxu0 0.0
        %2619 = vmatpush1.msra.mxu0 0.0
        %2620 = vmatprep.subr.mxu0 0.0
        %2621 = vmatpush1.msra.mxu0 0.0
        %2622 = vmatprep.subr.mxu0 0.0
        %2623 = vmatpush1.msra.mxu0 %v2589
        %2624 = vmatprep.subr.mxu0 0.0
        %2625 = vmatpush1.msra.mxu0 %v2588
        %2626 = vmatprep.subr.mxu0 0.0
        %2627 = vmatpush1.msra.mxu0 %v2587
        %2628 = vmatprep.subr.mxu0 0.0
        %2629 = vmatpush1.msra.mxu0 %v2586
        %2630 = vmatprep.subr.mxu0 0.0
        %2631 = vmatpush2.msra.mxu0 0.0
        %2632 = vmatprep.subr.mxu0 0.0
        %2633 = vmatpush2.msra.mxu0 0.0
        %2634 = vmatprep.subr.mxu0 0.0
        %2635 = vmatpush2.msra.mxu0 0.0
        %2636 = vmatprep.subr.mxu0 0.0
        %2637 = vmatpush2.msra.mxu0 0.0
        %2638 = vmatprep.subr.mxu0 0.0
        %2639 = vmatpush2.msra.mxu0 0.0
        %2640 = vmatprep.subr.mxu0 0.0
        %2641 = vmatpush2.msra.mxu0 0.0
        %2642 = vmatprep.subr.mxu0 0.0
        %2643 = vmatpush2.msra.mxu0 0.0
        %2644 = vmatprep.subr.mxu0 0.0
        %2645 = vmatpush2.msra.mxu0 0.0
        %2646 = vmatprep.subr.mxu0 0.0
        %2647 = vmatpush2.msra.mxu0 0.0
        %2648 = vmatprep.subr.mxu0 0.0
        %2649 = vmatpush2.msra.mxu0 0.0
        %2650 = vmatprep.subr.mxu0 0.0
        %2651 = vmatpush2.msra.mxu0 0.0
        %2652 = vmatprep.subr.mxu0 0.0
        %2653 = vmatpush2.msra.mxu0 0.0
        %2654 = vmatprep.subr.mxu0 0.0
        %2655 = vmatpush2.msra.mxu0 0.0
        %2656 = vmatprep.subr.mxu0 0.0
        %2657 = vmatpush2.msra.mxu0 0.0
        %2658 = vmatprep.subr.mxu0 0.0
        %2659 = vmatpush2.msra.mxu0 0.0
        %2660 = vmatprep.subr.mxu0 0.0
        %2661 = vmatpush2.msra.mxu0 0.0
        %2662 = vmatprep.mubr.f32.mxu0 0.0
        %2663 = vmatmul.mubr.f32.gmra.mxu0 %v2513
        %v2664 = vpop.f32.mrf.mxu0
        %v2665 = vadd.f32 %v2596, %v2664
        %v2666 = vpop.f32.mrf.mxu0
        %2667 = vdwg.mxu0
        %s2668 = scalar_lea.vmem %s3, 448
        %v2669 = vld [vmem:[%s2668] sm:$0xff]
        %v2670 = vld [vmem:[%s2668 + $0x8] sm:$0xff]
        %v2671 = vld [vmem:[%s2668 + $0x10] sm:$0xff]
        %v2672 = vld [vmem:[%s2668 + $0x18] sm:$0xff]
        %s2673 = scalar_lea.vmem %s4, 14
        %v2674 = vld [vmem:[%s2673] sm:$0x1]
        %v2676 = vlaneseq
        %v2677 = vshrl.u32 %v2676, 7
        %v2678 = vsub.s32 0, %v2677
        %v2679 = vrot.slane %v2674, %v2678
        %2681 = vmatprep.subr.mxu0 0.0
        %2682 = vmatpush1.msra.mxu0 0.0
        %2683 = vmatprep.subr.mxu0 0.0
        %2684 = vmatpush1.msra.mxu0 0.0
        %2685 = vmatprep.subr.mxu0 0.0
        %2686 = vmatpush1.msra.mxu0 0.0
        %2687 = vmatprep.subr.mxu0 0.0
        %2688 = vmatpush1.msra.mxu0 0.0
        %2689 = vmatprep.subr.mxu0 0.0
        %2690 = vmatpush1.msra.mxu0 0.0
        %2691 = vmatprep.subr.mxu0 0.0
        %2692 = vmatpush1.msra.mxu0 0.0
        %2693 = vmatprep.subr.mxu0 0.0
        %2694 = vmatpush1.msra.mxu0 0.0
        %2695 = vmatprep.subr.mxu0 0.0
        %2696 = vmatpush1.msra.mxu0 0.0
        %2697 = vmatprep.subr.mxu0 0.0
        %2698 = vmatpush1.msra.mxu0 0.0
        %2699 = vmatprep.subr.mxu0 0.0
        %2700 = vmatpush1.msra.mxu0 0.0
        %2701 = vmatprep.subr.mxu0 0.0
        %2702 = vmatpush1.msra.mxu0 0.0
        %2703 = vmatprep.subr.mxu0 0.0
        %2704 = vmatpush1.msra.mxu0 0.0
        %2705 = vmatprep.subr.mxu0 0.0
        %2706 = vmatpush1.msra.mxu0 %v2672
        %2707 = vmatprep.subr.mxu0 0.0
        %2708 = vmatpush1.msra.mxu0 %v2671
        %2709 = vmatprep.subr.mxu0 0.0
        %2710 = vmatpush1.msra.mxu0 %v2670
        %2711 = vmatprep.subr.mxu0 0.0
        %2712 = vmatpush1.msra.mxu0 %v2669
        %2713 = vmatprep.subr.mxu0 0.0
        %2714 = vmatpush2.msra.mxu0 0.0
        %2715 = vmatprep.subr.mxu0 0.0
        %2716 = vmatpush2.msra.mxu0 0.0
        %2717 = vmatprep.subr.mxu0 0.0
        %2718 = vmatpush2.msra.mxu0 0.0
        %2719 = vmatprep.subr.mxu0 0.0
        %2720 = vmatpush2.msra.mxu0 0.0
        %2721 = vmatprep.subr.mxu0 0.0
        %2722 = vmatpush2.msra.mxu0 0.0
        %2723 = vmatprep.subr.mxu0 0.0
        %2724 = vmatpush2.msra.mxu0 0.0
        %2725 = vmatprep.subr.mxu0 0.0
        %2726 = vmatpush2.msra.mxu0 0.0
        %2727 = vmatprep.subr.mxu0 0.0
        %2728 = vmatpush2.msra.mxu0 0.0
        %2729 = vmatprep.subr.mxu0 0.0
        %2730 = vmatpush2.msra.mxu0 0.0
        %2731 = vmatprep.subr.mxu0 0.0
        %2732 = vmatpush2.msra.mxu0 0.0
        %2733 = vmatprep.subr.mxu0 0.0
        %2734 = vmatpush2.msra.mxu0 0.0
        %2735 = vmatprep.subr.mxu0 0.0
        %2736 = vmatpush2.msra.mxu0 0.0
        %2737 = vmatprep.subr.mxu0 0.0
        %2738 = vmatpush2.msra.mxu0 0.0
        %2739 = vmatprep.subr.mxu0 0.0
        %2740 = vmatpush2.msra.mxu0 0.0
        %2741 = vmatprep.subr.mxu0 0.0
        %2742 = vmatpush2.msra.mxu0 0.0
        %2743 = vmatprep.subr.mxu0 0.0
        %2744 = vmatpush2.msra.mxu0 0.0
        %2745 = vmatprep.mubr.f32.mxu0 0.0
        %2746 = vmatmul.mubr.f32.gmra.mxu0 %v2513
        %v2747 = vpop.f32.mrf.mxu0
        %v2748 = vadd.f32 %v2679, %v2747
        %v2749 = vpop.f32.mrf.mxu0
        %2750 = vdwg.mxu0
        %s2751 = scalar_lea.vmem %s3, 480
        %v2752 = vld [vmem:[%s2751] sm:$0xff]
        %v2753 = vld [vmem:[%s2751 + $0x8] sm:$0xff]
        %v2754 = vld [vmem:[%s2751 + $0x10] sm:$0xff]
        %v2755 = vld [vmem:[%s2751 + $0x18] sm:$0xff]
        %s2756 = scalar_lea.vmem %s4, 15
        %v2757 = vld [vmem:[%s2756] sm:$0x1]
        %v2759 = vlaneseq
        %v2760 = vshrl.u32 %v2759, 7
        %v2761 = vsub.s32 0, %v2760
        %v2762 = vrot.slane %v2757, %v2761
        %2764 = vmatprep.subr.mxu0 0.0
        %2765 = vmatpush1.msra.mxu0 0.0
        %2766 = vmatprep.subr.mxu0 0.0
        %2767 = vmatpush1.msra.mxu0 0.0
        %2768 = vmatprep.subr.mxu0 0.0
        %2769 = vmatpush1.msra.mxu0 0.0
        %2770 = vmatprep.subr.mxu0 0.0
        %2771 = vmatpush1.msra.mxu0 0.0
        %2772 = vmatprep.subr.mxu0 0.0
        %2773 = vmatpush1.msra.mxu0 0.0
        %2774 = vmatprep.subr.mxu0 0.0
        %2775 = vmatpush1.msra.mxu0 0.0
        %2776 = vmatprep.subr.mxu0 0.0
        %2777 = vmatpush1.msra.mxu0 0.0
        %2778 = vmatprep.subr.mxu0 0.0
        %2779 = vmatpush1.msra.mxu0 0.0
        %2780 = vmatprep.subr.mxu0 0.0
        %2781 = vmatpush1.msra.mxu0 0.0
        %2782 = vmatprep.subr.mxu0 0.0
        %2783 = vmatpush1.msra.mxu0 0.0
        %2784 = vmatprep.subr.mxu0 0.0
        %2785 = vmatpush1.msra.mxu0 0.0
        %2786 = vmatprep.subr.mxu0 0.0
        %2787 = vmatpush1.msra.mxu0 0.0
        %2788 = vmatprep.subr.mxu0 0.0
        %2789 = vmatpush1.msra.mxu0 %v2755
        %2790 = vmatprep.subr.mxu0 0.0
        %2791 = vmatpush1.msra.mxu0 %v2754
        %2792 = vmatprep.subr.mxu0 0.0
        %2793 = vmatpush1.msra.mxu0 %v2753
        %2794 = vmatprep.subr.mxu0 0.0
        %2795 = vmatpush1.msra.mxu0 %v2752
        %2796 = vmatprep.subr.mxu0 0.0
        %2797 = vmatpush2.msra.mxu0 0.0
        %2798 = vmatprep.subr.mxu0 0.0
        %2799 = vmatpush2.msra.mxu0 0.0
        %2800 = vmatprep.subr.mxu0 0.0
        %2801 = vmatpush2.msra.mxu0 0.0
        %2802 = vmatprep.subr.mxu0 0.0
        %2803 = vmatpush2.msra.mxu0 0.0
        %2804 = vmatprep.subr.mxu0 0.0
        %2805 = vmatpush2.msra.mxu0 0.0
        %2806 = vmatprep.subr.mxu0 0.0
        %2807 = vmatpush2.msra.mxu0 0.0
        %2808 = vmatprep.subr.mxu0 0.0
        %2809 = vmatpush2.msra.mxu0 0.0
        %2810 = vmatprep.subr.mxu0 0.0
        %2811 = vmatpush2.msra.mxu0 0.0
        %2812 = vmatprep.subr.mxu0 0.0
        %2813 = vmatpush2.msra.mxu0 0.0
        %2814 = vmatprep.subr.mxu0 0.0
        %2815 = vmatpush2.msra.mxu0 0.0
        %2816 = vmatprep.subr.mxu0 0.0
        %2817 = vmatpush2.msra.mxu0 0.0
        %2818 = vmatprep.subr.mxu0 0.0
        %2819 = vmatpush2.msra.mxu0 0.0
        %2820 = vmatprep.subr.mxu0 0.0
        %2821 = vmatpush2.msra.mxu0 0.0
        %2822 = vmatprep.subr.mxu0 0.0
        %2823 = vmatpush2.msra.mxu0 0.0
        %2824 = vmatprep.subr.mxu0 0.0
        %2825 = vmatpush2.msra.mxu0 0.0
        %2826 = vmatprep.subr.mxu0 0.0
        %2827 = vmatpush2.msra.mxu0 0.0
        %2828 = vmatprep.mubr.f32.mxu0 0.0
        %2829 = vmatmul.mubr.f32.gmra.mxu0 %v2513
        %v2830 = vpop.f32.mrf.mxu0
        %v2831 = vadd.f32 %v2762, %v2830
        %v2832 = vpop.f32.mrf.mxu0
        %2833 = vdwg.mxu0
        %s2834 = scalar_lea.vmem %s3, 512
        %v2835 = vld [vmem:[%s2834] sm:$0xff]
        %v2836 = vld [vmem:[%s2834 + $0x8] sm:$0xff]
        %v2837 = vld [vmem:[%s2834 + $0x10] sm:$0xff]
        %v2838 = vld [vmem:[%s2834 + $0x18] sm:$0xff]
        %s2839 = scalar_lea.vmem %s4, 16
        %v2840 = vld [vmem:[%s2839] sm:$0x1]
        %v2842 = vlaneseq
        %v2843 = vshrl.u32 %v2842, 7
        %v2844 = vsub.s32 0, %v2843
        %v2845 = vrot.slane %v2840, %v2844
        %2847 = vmatprep.subr.mxu0 0.0
        %2848 = vmatpush1.msra.mxu0 0.0
        %2849 = vmatprep.subr.mxu0 0.0
        %2850 = vmatpush1.msra.mxu0 0.0
        %2851 = vmatprep.subr.mxu0 0.0
        %2852 = vmatpush1.msra.mxu0 0.0
        %2853 = vmatprep.subr.mxu0 0.0
        %2854 = vmatpush1.msra.mxu0 0.0
        %2855 = vmatprep.subr.mxu0 0.0
        %2856 = vmatpush1.msra.mxu0 0.0
        %2857 = vmatprep.subr.mxu0 0.0
        %2858 = vmatpush1.msra.mxu0 0.0
        %2859 = vmatprep.subr.mxu0 0.0
        %2860 = vmatpush1.msra.mxu0 0.0
        %2861 = vmatprep.subr.mxu0 0.0
        %2862 = vmatpush1.msra.mxu0 0.0
        %2863 = vmatprep.subr.mxu0 0.0
        %2864 = vmatpush1.msra.mxu0 0.0
        %2865 = vmatprep.subr.mxu0 0.0
        %2866 = vmatpush1.msra.mxu0 0.0
        %2867 = vmatprep.subr.mxu0 0.0
        %2868 = vmatpush1.msra.mxu0 0.0
        %2869 = vmatprep.subr.mxu0 0.0
        %2870 = vmatpush1.msra.mxu0 0.0
        %2871 = vmatprep.subr.mxu0 0.0
        %2872 = vmatpush1.msra.mxu0 %v2838
        %2873 = vmatprep.subr.mxu0 0.0
        %2874 = vmatpush1.msra.mxu0 %v2837
        %2875 = vmatprep.subr.mxu0 0.0
        %2876 = vmatpush1.msra.mxu0 %v2836
        %2877 = vmatprep.subr.mxu0 0.0
        %2878 = vmatpush1.msra.mxu0 %v2835
        %2879 = vmatprep.subr.mxu0 0.0
        %2880 = vmatpush2.msra.mxu0 0.0
        %2881 = vmatprep.subr.mxu0 0.0
        %2882 = vmatpush2.msra.mxu0 0.0
        %2883 = vmatprep.subr.mxu0 0.0
        %2884 = vmatpush2.msra.mxu0 0.0
        %2885 = vmatprep.subr.mxu0 0.0
        %2886 = vmatpush2.msra.mxu0 0.0
        %2887 = vmatprep.subr.mxu0 0.0
        %2888 = vmatpush2.msra.mxu0 0.0
        %2889 = vmatprep.subr.mxu0 0.0
        %2890 = vmatpush2.msra.mxu0 0.0
        %2891 = vmatprep.subr.mxu0 0.0
        %2892 = vmatpush2.msra.mxu0 0.0
        %2893 = vmatprep.subr.mxu0 0.0
        %2894 = vmatpush2.msra.mxu0 0.0
        %2895 = vmatprep.subr.mxu0 0.0
        %2896 = vmatpush2.msra.mxu0 0.0
        %2897 = vmatprep.subr.mxu0 0.0
        %2898 = vmatpush2.msra.mxu0 0.0
        %2899 = vmatprep.subr.mxu0 0.0
        %2900 = vmatpush2.msra.mxu0 0.0
        %2901 = vmatprep.subr.mxu0 0.0
        %2902 = vmatpush2.msra.mxu0 0.0
        %2903 = vmatprep.subr.mxu0 0.0
        %2904 = vmatpush2.msra.mxu0 0.0
        %2905 = vmatprep.subr.mxu0 0.0
        %2906 = vmatpush2.msra.mxu0 0.0
        %2907 = vmatprep.subr.mxu0 0.0
        %2908 = vmatpush2.msra.mxu0 0.0
        %2909 = vmatprep.subr.mxu0 0.0
        %2910 = vmatpush2.msra.mxu0 0.0
        %2911 = vmatprep.mubr.f32.mxu0 0.0
        %2912 = vmatmul.mubr.f32.gmra.mxu0 %v2513
        %v2913 = vpop.f32.mrf.mxu0
        %v2914 = vadd.f32 %v2845, %v2913
        %v2915 = vpop.f32.mrf.mxu0
        %2916 = vdwg.mxu0
        %s2917 = scalar_lea.vmem %s3, 544
        %v2918 = vld [vmem:[%s2917] sm:$0xff]
        %v2919 = vld [vmem:[%s2917 + $0x8] sm:$0xff]
        %v2920 = vld [vmem:[%s2917 + $0x10] sm:$0xff]
        %v2921 = vld [vmem:[%s2917 + $0x18] sm:$0xff]
        %s2922 = scalar_lea.vmem %s4, 17
        %v2923 = vld [vmem:[%s2922] sm:$0x1]
        %v2925 = vlaneseq
        %v2926 = vshrl.u32 %v2925, 7
        %v2927 = vsub.s32 0, %v2926
        %v2928 = vrot.slane %v2923, %v2927
        %2930 = vmatprep.subr.mxu0 0.0
        %2931 = vmatpush1.msra.mxu0 0.0
        %2932 = vmatprep.subr.mxu0 0.0
        %2933 = vmatpush1.msra.mxu0 0.0
        %2934 = vmatprep.subr.mxu0 0.0
        %2935 = vmatpush1.msra.mxu0 0.0
        %2936 = vmatprep.subr.mxu0 0.0
        %2937 = vmatpush1.msra.mxu0 0.0
        %2938 = vmatprep.subr.mxu0 0.0
        %2939 = vmatpush1.msra.mxu0 0.0
        %2940 = vmatprep.subr.mxu0 0.0
        %2941 = vmatpush1.msra.mxu0 0.0
        %2942 = vmatprep.subr.mxu0 0.0
        %2943 = vmatpush1.msra.mxu0 0.0
        %2944 = vmatprep.subr.mxu0 0.0
        %2945 = vmatpush1.msra.mxu0 0.0
        %2946 = vmatprep.subr.mxu0 0.0
        %2947 = vmatpush1.msra.mxu0 0.0
        %2948 = vmatprep.subr.mxu0 0.0
        %2949 = vmatpush1.msra.mxu0 0.0
        %2950 = vmatprep.subr.mxu0 0.0
        %2951 = vmatpush1.msra.mxu0 0.0
        %2952 = vmatprep.subr.mxu0 0.0
        %2953 = vmatpush1.msra.mxu0 0.0
        %2954 = vmatprep.subr.mxu0 0.0
        %2955 = vmatpush1.msra.mxu0 %v2921
        %2956 = vmatprep.subr.mxu0 0.0
        %2957 = vmatpush1.msra.mxu0 %v2920
        %2958 = vmatprep.subr.mxu0 0.0
        %2959 = vmatpush1.msra.mxu0 %v2919
        %2960 = vmatprep.subr.mxu0 0.0
        %2961 = vmatpush1.msra.mxu0 %v2918
        %2962 = vmatprep.subr.mxu0 0.0
        %2963 = vmatpush2.msra.mxu0 0.0
        %2964 = vmatprep.subr.mxu0 0.0
        %2965 = vmatpush2.msra.mxu0 0.0
        %2966 = vmatprep.subr.mxu0 0.0
        %2967 = vmatpush2.msra.mxu0 0.0
        %2968 = vmatprep.subr.mxu0 0.0
        %2969 = vmatpush2.msra.mxu0 0.0
        %2970 = vmatprep.subr.mxu0 0.0
        %2971 = vmatpush2.msra.mxu0 0.0
        %2972 = vmatprep.subr.mxu0 0.0
        %2973 = vmatpush2.msra.mxu0 0.0
        %2974 = vmatprep.subr.mxu0 0.0
        %2975 = vmatpush2.msra.mxu0 0.0
        %2976 = vmatprep.subr.mxu0 0.0
        %2977 = vmatpush2.msra.mxu0 0.0
        %2978 = vmatprep.subr.mxu0 0.0
        %2979 = vmatpush2.msra.mxu0 0.0
        %2980 = vmatprep.subr.mxu0 0.0
        %2981 = vmatpush2.msra.mxu0 0.0
        %2982 = vmatprep.subr.mxu0 0.0
        %2983 = vmatpush2.msra.mxu0 0.0
        %2984 = vmatprep.subr.mxu0 0.0
        %2985 = vmatpush2.msra.mxu0 0.0
        %2986 = vmatprep.subr.mxu0 0.0
        %2987 = vmatpush2.msra.mxu0 0.0
        %2988 = vmatprep.subr.mxu0 0.0
        %2989 = vmatpush2.msra.mxu0 0.0
        %2990 = vmatprep.subr.mxu0 0.0
        %2991 = vmatpush2.msra.mxu0 0.0
        %2992 = vmatprep.subr.mxu0 0.0
        %2993 = vmatpush2.msra.mxu0 0.0
        %2994 = vmatprep.mubr.f32.mxu0 0.0
        %2995 = vmatmul.mubr.f32.gmra.mxu0 %v2513
        %v2996 = vpop.f32.mrf.mxu0
        %v2997 = vadd.f32 %v2928, %v2996
        %v2998 = vpop.f32.mrf.mxu0
        %2999 = vdwg.mxu0
        %s3000 = scalar_lea.vmem %s3, 576
        %v3001 = vld [vmem:[%s3000] sm:$0xff]
        %v3002 = vld [vmem:[%s3000 + $0x8] sm:$0xff]
        %v3003 = vld [vmem:[%s3000 + $0x10] sm:$0xff]
        %v3004 = vld [vmem:[%s3000 + $0x18] sm:$0xff]
        %s3005 = scalar_lea.vmem %s4, 18
        %v3006 = vld [vmem:[%s3005] sm:$0x1]
        %v3008 = vlaneseq
        %v3009 = vshrl.u32 %v3008, 7
        %v3010 = vsub.s32 0, %v3009
        %v3011 = vrot.slane %v3006, %v3010
        %3013 = vmatprep.subr.mxu0 0.0
        %3014 = vmatpush1.msra.mxu0 0.0
        %3015 = vmatprep.subr.mxu0 0.0
        %3016 = vmatpush1.msra.mxu0 0.0
        %3017 = vmatprep.subr.mxu0 0.0
        %3018 = vmatpush1.msra.mxu0 0.0
        %3019 = vmatprep.subr.mxu0 0.0
        %3020 = vmatpush1.msra.mxu0 0.0
        %3021 = vmatprep.subr.mxu0 0.0
        %3022 = vmatpush1.msra.mxu0 0.0
        %3023 = vmatprep.subr.mxu0 0.0
        %3024 = vmatpush1.msra.mxu0 0.0
        %3025 = vmatprep.subr.mxu0 0.0
        %3026 = vmatpush1.msra.mxu0 0.0
        %3027 = vmatprep.subr.mxu0 0.0
        %3028 = vmatpush1.msra.mxu0 0.0
        %3029 = vmatprep.subr.mxu0 0.0
        %3030 = vmatpush1.msra.mxu0 0.0
        %3031 = vmatprep.subr.mxu0 0.0
        %3032 = vmatpush1.msra.mxu0 0.0
        %3033 = vmatprep.subr.mxu0 0.0
        %3034 = vmatpush1.msra.mxu0 0.0
        %3035 = vmatprep.subr.mxu0 0.0
        %3036 = vmatpush1.msra.mxu0 0.0
        %3037 = vmatprep.subr.mxu0 0.0
        %3038 = vmatpush1.msra.mxu0 %v3004
        %3039 = vmatprep.subr.mxu0 0.0
        %3040 = vmatpush1.msra.mxu0 %v3003
        %3041 = vmatprep.subr.mxu0 0.0
        %3042 = vmatpush1.msra.mxu0 %v3002
        %3043 = vmatprep.subr.mxu0 0.0
        %3044 = vmatpush1.msra.mxu0 %v3001
        %3045 = vmatprep.subr.mxu0 0.0
        %3046 = vmatpush2.msra.mxu0 0.0
        %3047 = vmatprep.subr.mxu0 0.0
        %3048 = vmatpush2.msra.mxu0 0.0
        %3049 = vmatprep.subr.mxu0 0.0
        %3050 = vmatpush2.msra.mxu0 0.0
        %3051 = vmatprep.subr.mxu0 0.0
        %3052 = vmatpush2.msra.mxu0 0.0
        %3053 = vmatprep.subr.mxu0 0.0
        %3054 = vmatpush2.msra.mxu0 0.0
        %3055 = vmatprep.subr.mxu0 0.0
        %3056 = vmatpush2.msra.mxu0 0.0
        %3057 = vmatprep.subr.mxu0 0.0
        %3058 = vmatpush2.msra.mxu0 0.0
        %3059 = vmatprep.subr.mxu0 0.0
        %3060 = vmatpush2.msra.mxu0 0.0
        %3061 = vmatprep.subr.mxu0 0.0
        %3062 = vmatpush2.msra.mxu0 0.0
        %3063 = vmatprep.subr.mxu0 0.0
        %3064 = vmatpush2.msra.mxu0 0.0
        %3065 = vmatprep.subr.mxu0 0.0
        %3066 = vmatpush2.msra.mxu0 0.0
        %3067 = vmatprep.subr.mxu0 0.0
        %3068 = vmatpush2.msra.mxu0 0.0
        %3069 = vmatprep.subr.mxu0 0.0
        %3070 = vmatpush2.msra.mxu0 0.0
        %3071 = vmatprep.subr.mxu0 0.0
        %3072 = vmatpush2.msra.mxu0 0.0
        %3073 = vmatprep.subr.mxu0 0.0
        %3074 = vmatpush2.msra.mxu0 0.0
        %3075 = vmatprep.subr.mxu0 0.0
        %3076 = vmatpush2.msra.mxu0 0.0
        %3077 = vmatprep.mubr.f32.mxu0 0.0
        %3078 = vmatmul.mubr.f32.gmra.mxu0 %v2513
        %v3079 = vpop.f32.mrf.mxu0
        %v3080 = vadd.f32 %v3011, %v3079
        %v3081 = vpop.f32.mrf.mxu0
        %3082 = vdwg.mxu0
        %s3083 = scalar_lea.vmem %s3, 608
        %v3084 = vld [vmem:[%s3083] sm:$0xff]
        %v3085 = vld [vmem:[%s3083 + $0x8] sm:$0xff]
        %v3086 = vld [vmem:[%s3083 + $0x10] sm:$0xff]
        %v3087 = vld [vmem:[%s3083 + $0x18] sm:$0xff]
        %s3088 = scalar_lea.vmem %s4, 19
        %v3089 = vld [vmem:[%s3088] sm:$0x1]
        %v3091 = vlaneseq
        %v3092 = vshrl.u32 %v3091, 7
        %v3093 = vsub.s32 0, %v3092
        %v3094 = vrot.slane %v3089, %v3093
        %3096 = vmatprep.subr.mxu0 0.0
        %3097 = vmatpush1.msra.mxu0 0.0
        %3098 = vmatprep.subr.mxu0 0.0
        %3099 = vmatpush1.msra.mxu0 0.0
        %3100 = vmatprep.subr.mxu0 0.0
        %3101 = vmatpush1.msra.mxu0 0.0
        %3102 = vmatprep.subr.mxu0 0.0
        %3103 = vmatpush1.msra.mxu0 0.0
        %3104 = vmatprep.subr.mxu0 0.0
        %3105 = vmatpush1.msra.mxu0 0.0
        %3106 = vmatprep.subr.mxu0 0.0
        %3107 = vmatpush1.msra.mxu0 0.0
        %3108 = vmatprep.subr.mxu0 0.0
        %3109 = vmatpush1.msra.mxu0 0.0
        %3110 = vmatprep.subr.mxu0 0.0
        %3111 = vmatpush1.msra.mxu0 0.0
        %3112 = vmatprep.subr.mxu0 0.0
        %3113 = vmatpush1.msra.mxu0 0.0
        %3114 = vmatprep.subr.mxu0 0.0
        %3115 = vmatpush1.msra.mxu0 0.0
        %3116 = vmatprep.subr.mxu0 0.0
        %3117 = vmatpush1.msra.mxu0 0.0
        %3118 = vmatprep.subr.mxu0 0.0
        %3119 = vmatpush1.msra.mxu0 0.0
        %3120 = vmatprep.subr.mxu0 0.0
        %3121 = vmatpush1.msra.mxu0 %v3087
        %3122 = vmatprep.subr.mxu0 0.0
        %3123 = vmatpush1.msra.mxu0 %v3086
        %3124 = vmatprep.subr.mxu0 0.0
        %3125 = vmatpush1.msra.mxu0 %v3085
        %3126 = vmatprep.subr.mxu0 0.0
        %3127 = vmatpush1.msra.mxu0 %v3084
        %3128 = vmatprep.subr.mxu0 0.0
        %3129 = vmatpush2.msra.mxu0 0.0
        %3130 = vmatprep.subr.mxu0 0.0
        %3131 = vmatpush2.msra.mxu0 0.0
        %3132 = vmatprep.subr.mxu0 0.0
        %3133 = vmatpush2.msra.mxu0 0.0
        %3134 = vmatprep.subr.mxu0 0.0
        %3135 = vmatpush2.msra.mxu0 0.0
        %3136 = vmatprep.subr.mxu0 0.0
        %3137 = vmatpush2.msra.mxu0 0.0
        %3138 = vmatprep.subr.mxu0 0.0
        %3139 = vmatpush2.msra.mxu0 0.0
        %3140 = vmatprep.subr.mxu0 0.0
        %3141 = vmatpush2.msra.mxu0 0.0
        %3142 = vmatprep.subr.mxu0 0.0
        %3143 = vmatpush2.msra.mxu0 0.0
        %3144 = vmatprep.subr.mxu0 0.0
        %3145 = vmatpush2.msra.mxu0 0.0
        %3146 = vmatprep.subr.mxu0 0.0
        %3147 = vmatpush2.msra.mxu0 0.0
        %3148 = vmatprep.subr.mxu0 0.0
        %3149 = vmatpush2.msra.mxu0 0.0
        %3150 = vmatprep.subr.mxu0 0.0
        %3151 = vmatpush2.msra.mxu0 0.0
        %3152 = vmatprep.subr.mxu0 0.0
        %3153 = vmatpush2.msra.mxu0 0.0
        %3154 = vmatprep.subr.mxu0 0.0
        %3155 = vmatpush2.msra.mxu0 0.0
        %3156 = vmatprep.subr.mxu0 0.0
        %3157 = vmatpush2.msra.mxu0 0.0
        %3158 = vmatprep.subr.mxu0 0.0
        %3159 = vmatpush2.msra.mxu0 0.0
        %3160 = vmatprep.mubr.f32.mxu0 0.0
        %3161 = vmatmul.mubr.f32.gmra.mxu0 %v2513
        %v3162 = vpop.f32.mrf.mxu0
        %v3163 = vadd.f32 %v3094, %v3162
        %v3164 = vpop.f32.mrf.mxu0
        %3165 = vdwg.mxu0
        %s3166 = scalar_lea.vmem %s3, 640
        %v3167 = vld [vmem:[%s3166] sm:$0xff]
        %v3168 = vld [vmem:[%s3166 + $0x8] sm:$0xff]
        %v3169 = vld [vmem:[%s3166 + $0x10] sm:$0xff]
        %v3170 = vld [vmem:[%s3166 + $0x18] sm:$0xff]
        %s3171 = scalar_lea.vmem %s4, 20
        %v3172 = vld [vmem:[%s3171] sm:$0x1]
        %v3174 = vlaneseq
        %v3175 = vshrl.u32 %v3174, 7
        %v3176 = vsub.s32 0, %v3175
        %v3177 = vrot.slane %v3172, %v3176
        %3179 = vmatprep.subr.mxu0 0.0
        %3180 = vmatpush1.msra.mxu0 0.0
        %3181 = vmatprep.subr.mxu0 0.0
        %3182 = vmatpush1.msra.mxu0 0.0
        %3183 = vmatprep.subr.mxu0 0.0
        %3184 = vmatpush1.msra.mxu0 0.0
        %3185 = vmatprep.subr.mxu0 0.0
        %3186 = vmatpush1.msra.mxu0 0.0
        %3187 = vmatprep.subr.mxu0 0.0
        %3188 = vmatpush1.msra.mxu0 0.0
        %3189 = vmatprep.subr.mxu0 0.0
        %3190 = vmatpush1.msra.mxu0 0.0
        %3191 = vmatprep.subr.mxu0 0.0
        %3192 = vmatpush1.msra.mxu0 0.0
        %3193 = vmatprep.subr.mxu0 0.0
        %3194 = vmatpush1.msra.mxu0 0.0
        %3195 = vmatprep.subr.mxu0 0.0
        %3196 = vmatpush1.msra.mxu0 0.0
        %3197 = vmatprep.subr.mxu0 0.0
        %3198 = vmatpush1.msra.mxu0 0.0
        %3199 = vmatprep.subr.mxu0 0.0
        %3200 = vmatpush1.msra.mxu0 0.0
        %3201 = vmatprep.subr.mxu0 0.0
        %3202 = vmatpush1.msra.mxu0 0.0
        %3203 = vmatprep.subr.mxu0 0.0
        %3204 = vmatpush1.msra.mxu0 %v3170
        %3205 = vmatprep.subr.mxu0 0.0
        %3206 = vmatpush1.msra.mxu0 %v3169
        %3207 = vmatprep.subr.mxu0 0.0
        %3208 = vmatpush1.msra.mxu0 %v3168
        %3209 = vmatprep.subr.mxu0 0.0
        %3210 = vmatpush1.msra.mxu0 %v3167
        %3211 = vmatprep.subr.mxu0 0.0
        %3212 = vmatpush2.msra.mxu0 0.0
        %3213 = vmatprep.subr.mxu0 0.0
        %3214 = vmatpush2.msra.mxu0 0.0
        %3215 = vmatprep.subr.mxu0 0.0
        %3216 = vmatpush2.msra.mxu0 0.0
        %3217 = vmatprep.subr.mxu0 0.0
        %3218 = vmatpush2.msra.mxu0 0.0
        %3219 = vmatprep.subr.mxu0 0.0
        %3220 = vmatpush2.msra.mxu0 0.0
        %3221 = vmatprep.subr.mxu0 0.0
        %3222 = vmatpush2.msra.mxu0 0.0
        %3223 = vmatprep.subr.mxu0 0.0
        %3224 = vmatpush2.msra.mxu0 0.0
        %3225 = vmatprep.subr.mxu0 0.0
        %3226 = vmatpush2.msra.mxu0 0.0
        %3227 = vmatprep.subr.mxu0 0.0
        %3228 = vmatpush2.msra.mxu0 0.0
        %3229 = vmatprep.subr.mxu0 0.0
        %3230 = vmatpush2.msra.mxu0 0.0
        %3231 = vmatprep.subr.mxu0 0.0
        %3232 = vmatpush2.msra.mxu0 0.0
        %3233 = vmatprep.subr.mxu0 0.0
        %3234 = vmatpush2.msra.mxu0 0.0
        %3235 = vmatprep.subr.mxu0 0.0
        %3236 = vmatpush2.msra.mxu0 0.0
        %3237 = vmatprep.subr.mxu0 0.0
        %3238 = vmatpush2.msra.mxu0 0.0
        %3239 = vmatprep.subr.mxu0 0.0
        %3240 = vmatpush2.msra.mxu0 0.0
        %3241 = vmatprep.subr.mxu0 0.0
        %3242 = vmatpush2.msra.mxu0 0.0
        %3243 = vmatprep.mubr.f32.mxu0 0.0
        %3244 = vmatmul.mubr.f32.gmra.mxu0 %v2513
        %v3245 = vpop.f32.mrf.mxu0
        %v3246 = vadd.f32 %v3177, %v3245
        %v3247 = vpop.f32.mrf.mxu0
        %3248 = vdwg.mxu0
        %s3249 = scalar_lea.vmem %s3, 672
        %v3250 = vld [vmem:[%s3249] sm:$0xff]
        %v3251 = vld [vmem:[%s3249 + $0x8] sm:$0xff]
        %v3252 = vld [vmem:[%s3249 + $0x10] sm:$0xff]
        %v3253 = vld [vmem:[%s3249 + $0x18] sm:$0xff]
        %s3254 = scalar_lea.vmem %s4, 21
        %v3255 = vld [vmem:[%s3254] sm:$0x1]
        %v3257 = vlaneseq
        %v3258 = vshrl.u32 %v3257, 7
        %v3259 = vsub.s32 0, %v3258
        %v3260 = vrot.slane %v3255, %v3259
        %3262 = vmatprep.subr.mxu0 0.0
        %3263 = vmatpush1.msra.mxu0 0.0
        %3264 = vmatprep.subr.mxu0 0.0
        %3265 = vmatpush1.msra.mxu0 0.0
        %3266 = vmatprep.subr.mxu0 0.0
        %3267 = vmatpush1.msra.mxu0 0.0
        %3268 = vmatprep.subr.mxu0 0.0
        %3269 = vmatpush1.msra.mxu0 0.0
        %3270 = vmatprep.subr.mxu0 0.0
        %3271 = vmatpush1.msra.mxu0 0.0
        %3272 = vmatprep.subr.mxu0 0.0
        %3273 = vmatpush1.msra.mxu0 0.0
        %3274 = vmatprep.subr.mxu0 0.0
        %3275 = vmatpush1.msra.mxu0 0.0
        %3276 = vmatprep.subr.mxu0 0.0
        %3277 = vmatpush1.msra.mxu0 0.0
        %3278 = vmatprep.subr.mxu0 0.0
        %3279 = vmatpush1.msra.mxu0 0.0
        %3280 = vmatprep.subr.mxu0 0.0
        %3281 = vmatpush1.msra.mxu0 0.0
        %3282 = vmatprep.subr.mxu0 0.0
        %3283 = vmatpush1.msra.mxu0 0.0
        %3284 = vmatprep.subr.mxu0 0.0
        %3285 = vmatpush1.msra.mxu0 0.0
        %3286 = vmatprep.subr.mxu0 0.0
        %3287 = vmatpush1.msra.mxu0 %v3253
        %3288 = vmatprep.subr.mxu0 0.0
        %3289 = vmatpush1.msra.mxu0 %v3252
        %3290 = vmatprep.subr.mxu0 0.0
        %3291 = vmatpush1.msra.mxu0 %v3251
        %3292 = vmatprep.subr.mxu0 0.0
        %3293 = vmatpush1.msra.mxu0 %v3250
        %3294 = vmatprep.subr.mxu0 0.0
        %3295 = vmatpush2.msra.mxu0 0.0
        %3296 = vmatprep.subr.mxu0 0.0
        %3297 = vmatpush2.msra.mxu0 0.0
        %3298 = vmatprep.subr.mxu0 0.0
        %3299 = vmatpush2.msra.mxu0 0.0
        %3300 = vmatprep.subr.mxu0 0.0
        %3301 = vmatpush2.msra.mxu0 0.0
        %3302 = vmatprep.subr.mxu0 0.0
        %3303 = vmatpush2.msra.mxu0 0.0
        %3304 = vmatprep.subr.mxu0 0.0
        %3305 = vmatpush2.msra.mxu0 0.0
        %3306 = vmatprep.subr.mxu0 0.0
        %3307 = vmatpush2.msra.mxu0 0.0
        %3308 = vmatprep.subr.mxu0 0.0
        %3309 = vmatpush2.msra.mxu0 0.0
        %3310 = vmatprep.subr.mxu0 0.0
        %3311 = vmatpush2.msra.mxu0 0.0
        %3312 = vmatprep.subr.mxu0 0.0
        %3313 = vmatpush2.msra.mxu0 0.0
        %3314 = vmatprep.subr.mxu0 0.0
        %3315 = vmatpush2.msra.mxu0 0.0
        %3316 = vmatprep.subr.mxu0 0.0
        %3317 = vmatpush2.msra.mxu0 0.0
        %3318 = vmatprep.subr.mxu0 0.0
        %3319 = vmatpush2.msra.mxu0 0.0
        %3320 = vmatprep.subr.mxu0 0.0
        %3321 = vmatpush2.msra.mxu0 0.0
        %3322 = vmatprep.subr.mxu0 0.0
        %3323 = vmatpush2.msra.mxu0 0.0
        %3324 = vmatprep.subr.mxu0 0.0
        %3325 = vmatpush2.msra.mxu0 0.0
        %3326 = vmatprep.mubr.f32.mxu0 0.0
        %3327 = vmatmul.mubr.f32.gmra.mxu0 %v2513
        %v3328 = vpop.f32.mrf.mxu0
        %v3329 = vadd.f32 %v3260, %v3328
        %v3330 = vpop.f32.mrf.mxu0
        %3331 = vdwg.mxu0
        %s3332 = scalar_lea.vmem %s3, 704
        %v3333 = vld [vmem:[%s3332] sm:$0xff]
        %v3334 = vld [vmem:[%s3332 + $0x8] sm:$0xff]
        %v3335 = vld [vmem:[%s3332 + $0x10] sm:$0xff]
        %v3336 = vld [vmem:[%s3332 + $0x18] sm:$0xff]
        %s3337 = scalar_lea.vmem %s4, 22
        %v3338 = vld [vmem:[%s3337] sm:$0x1]
        %v3340 = vlaneseq
        %v3341 = vshrl.u32 %v3340, 7
        %v3342 = vsub.s32 0, %v3341
        %v3343 = vrot.slane %v3338, %v3342
        %3345 = vmatprep.subr.mxu0 0.0
        %3346 = vmatpush1.msra.mxu0 0.0
        %3347 = vmatprep.subr.mxu0 0.0
        %3348 = vmatpush1.msra.mxu0 0.0
        %3349 = vmatprep.subr.mxu0 0.0
        %3350 = vmatpush1.msra.mxu0 0.0
        %3351 = vmatprep.subr.mxu0 0.0
        %3352 = vmatpush1.msra.mxu0 0.0
        %3353 = vmatprep.subr.mxu0 0.0
        %3354 = vmatpush1.msra.mxu0 0.0
        %3355 = vmatprep.subr.mxu0 0.0
        %3356 = vmatpush1.msra.mxu0 0.0
        %3357 = vmatprep.subr.mxu0 0.0
        %3358 = vmatpush1.msra.mxu0 0.0
        %3359 = vmatprep.subr.mxu0 0.0
        %3360 = vmatpush1.msra.mxu0 0.0
        %3361 = vmatprep.subr.mxu0 0.0
        %3362 = vmatpush1.msra.mxu0 0.0
        %3363 = vmatprep.subr.mxu0 0.0
        %3364 = vmatpush1.msra.mxu0 0.0
        %3365 = vmatprep.subr.mxu0 0.0
        %3366 = vmatpush1.msra.mxu0 0.0
        %3367 = vmatprep.subr.mxu0 0.0
        %3368 = vmatpush1.msra.mxu0 0.0
        %3369 = vmatprep.subr.mxu0 0.0
        %3370 = vmatpush1.msra.mxu0 %v3336
        %3371 = vmatprep.subr.mxu0 0.0
        %3372 = vmatpush1.msra.mxu0 %v3335
        %3373 = vmatprep.subr.mxu0 0.0
        %3374 = vmatpush1.msra.mxu0 %v3334
        %3375 = vmatprep.subr.mxu0 0.0
        %3376 = vmatpush1.msra.mxu0 %v3333
        %3377 = vmatprep.subr.mxu0 0.0
        %3378 = vmatpush2.msra.mxu0 0.0
        %3379 = vmatprep.subr.mxu0 0.0
        %3380 = vmatpush2.msra.mxu0 0.0
        %3381 = vmatprep.subr.mxu0 0.0
        %3382 = vmatpush2.msra.mxu0 0.0
        %3383 = vmatprep.subr.mxu0 0.0
        %3384 = vmatpush2.msra.mxu0 0.0
        %3385 = vmatprep.subr.mxu0 0.0
        %3386 = vmatpush2.msra.mxu0 0.0
        %3387 = vmatprep.subr.mxu0 0.0
        %3388 = vmatpush2.msra.mxu0 0.0
        %3389 = vmatprep.subr.mxu0 0.0
        %3390 = vmatpush2.msra.mxu0 0.0
        %3391 = vmatprep.subr.mxu0 0.0
        %3392 = vmatpush2.msra.mxu0 0.0
        %3393 = vmatprep.subr.mxu0 0.0
        %3394 = vmatpush2.msra.mxu0 0.0
        %3395 = vmatprep.subr.mxu0 0.0
        %3396 = vmatpush2.msra.mxu0 0.0
        %3397 = vmatprep.subr.mxu0 0.0
        %3398 = vmatpush2.msra.mxu0 0.0
        %3399 = vmatprep.subr.mxu0 0.0
        %3400 = vmatpush2.msra.mxu0 0.0
        %3401 = vmatprep.subr.mxu0 0.0
        %3402 = vmatpush2.msra.mxu0 0.0
        %3403 = vmatprep.subr.mxu0 0.0
        %3404 = vmatpush2.msra.mxu0 0.0
        %3405 = vmatprep.subr.mxu0 0.0
        %3406 = vmatpush2.msra.mxu0 0.0
        %3407 = vmatprep.subr.mxu0 0.0
        %3408 = vmatpush2.msra.mxu0 0.0
        %3409 = vmatprep.mubr.f32.mxu0 0.0
        %3410 = vmatmul.mubr.f32.gmra.mxu0 %v2513
        %v3411 = vpop.f32.mrf.mxu0
        %v3412 = vadd.f32 %v3343, %v3411
        %v3413 = vpop.f32.mrf.mxu0
        %3414 = vdwg.mxu0
        %s3415 = scalar_lea.vmem %s3, 736
        %v3416 = vld [vmem:[%s3415] sm:$0xff]
        %v3417 = vld [vmem:[%s3415 + $0x8] sm:$0xff]
        %v3418 = vld [vmem:[%s3415 + $0x10] sm:$0xff]
        %v3419 = vld [vmem:[%s3415 + $0x18] sm:$0xff]
        %s3420 = scalar_lea.vmem %s4, 23
        %v3421 = vld [vmem:[%s3420] sm:$0x1]
        %v3423 = vlaneseq
        %v3424 = vshrl.u32 %v3423, 7
        %v3425 = vsub.s32 0, %v3424
        %v3426 = vrot.slane %v3421, %v3425
        %3428 = vmatprep.subr.mxu0 0.0
        %3429 = vmatpush1.msra.mxu0 0.0
        %3430 = vmatprep.subr.mxu0 0.0
        %3431 = vmatpush1.msra.mxu0 0.0
        %3432 = vmatprep.subr.mxu0 0.0
        %3433 = vmatpush1.msra.mxu0 0.0
        %3434 = vmatprep.subr.mxu0 0.0
        %3435 = vmatpush1.msra.mxu0 0.0
        %3436 = vmatprep.subr.mxu0 0.0
        %3437 = vmatpush1.msra.mxu0 0.0
        %3438 = vmatprep.subr.mxu0 0.0
        %3439 = vmatpush1.msra.mxu0 0.0
        %3440 = vmatprep.subr.mxu0 0.0
        %3441 = vmatpush1.msra.mxu0 0.0
        %3442 = vmatprep.subr.mxu0 0.0
        %3443 = vmatpush1.msra.mxu0 0.0
        %3444 = vmatprep.subr.mxu0 0.0
        %3445 = vmatpush1.msra.mxu0 0.0
        %3446 = vmatprep.subr.mxu0 0.0
        %3447 = vmatpush1.msra.mxu0 0.0
        %3448 = vmatprep.subr.mxu0 0.0
        %3449 = vmatpush1.msra.mxu0 0.0
        %3450 = vmatprep.subr.mxu0 0.0
        %3451 = vmatpush1.msra.mxu0 0.0
        %3452 = vmatprep.subr.mxu0 0.0
        %3453 = vmatpush1.msra.mxu0 %v3419
        %3454 = vmatprep.subr.mxu0 0.0
        %3455 = vmatpush1.msra.mxu0 %v3418
        %3456 = vmatprep.subr.mxu0 0.0
        %3457 = vmatpush1.msra.mxu0 %v3417
        %3458 = vmatprep.subr.mxu0 0.0
        %3459 = vmatpush1.msra.mxu0 %v3416
        %3460 = vmatprep.subr.mxu0 0.0
        %3461 = vmatpush2.msra.mxu0 0.0
        %3462 = vmatprep.subr.mxu0 0.0
        %3463 = vmatpush2.msra.mxu0 0.0
        %3464 = vmatprep.subr.mxu0 0.0
        %3465 = vmatpush2.msra.mxu0 0.0
        %3466 = vmatprep.subr.mxu0 0.0
        %3467 = vmatpush2.msra.mxu0 0.0
        %3468 = vmatprep.subr.mxu0 0.0
        %3469 = vmatpush2.msra.mxu0 0.0
        %3470 = vmatprep.subr.mxu0 0.0
        %3471 = vmatpush2.msra.mxu0 0.0
        %3472 = vmatprep.subr.mxu0 0.0
        %3473 = vmatpush2.msra.mxu0 0.0
        %3474 = vmatprep.subr.mxu0 0.0
        %3475 = vmatpush2.msra.mxu0 0.0
        %3476 = vmatprep.subr.mxu0 0.0
        %3477 = vmatpush2.msra.mxu0 0.0
        %3478 = vmatprep.subr.mxu0 0.0
        %3479 = vmatpush2.msra.mxu0 0.0
        %3480 = vmatprep.subr.mxu0 0.0
        %3481 = vmatpush2.msra.mxu0 0.0
        %3482 = vmatprep.subr.mxu0 0.0
        %3483 = vmatpush2.msra.mxu0 0.0
        %3484 = vmatprep.subr.mxu0 0.0
        %3485 = vmatpush2.msra.mxu0 0.0
        %3486 = vmatprep.subr.mxu0 0.0
        %3487 = vmatpush2.msra.mxu0 0.0
        %3488 = vmatprep.subr.mxu0 0.0
        %3489 = vmatpush2.msra.mxu0 0.0
        %3490 = vmatprep.subr.mxu0 0.0
        %3491 = vmatpush2.msra.mxu0 0.0
        %3492 = vmatprep.mubr.f32.mxu0 0.0
        %3493 = vmatmul.mubr.f32.gmra.mxu0 %v2513
        %v3494 = vpop.f32.mrf.mxu0
        %v3495 = vadd.f32 %v3426, %v3494
        %v3496 = vpop.f32.mrf.mxu0
        %3497 = vdwg.mxu0
        %v3499 = vsel %vm1521, %v2582, 0
        %v3502 = vsel %vm1521, %v2665, 0
        %3504 = vmatprep.subr.mxu0 0.0
        %3505 = vmatpush1.xpose.msra.mxu0 0.0
        %3506 = vmatprep.subr.mxu0 0.0
        %3507 = vmatpush1.xpose.msra.mxu0 0.0
        %3508 = vmatprep.subr.mxu0 0.0
        %3509 = vmatpush1.xpose.msra.mxu0 0.0
        %3510 = vmatprep.subr.mxu0 0.0
        %3511 = vmatpush1.xpose.msra.mxu0 0.0
        %3512 = vmatprep.subr.mxu0 0.0
        %3513 = vmatpush1.xpose.msra.mxu0 0.0
        %3514 = vmatprep.subr.mxu0 0.0
        %3515 = vmatpush1.xpose.msra.mxu0 0.0
        %3516 = vmatprep.subr.mxu0 0.0
        %3517 = vmatpush1.xpose.msra.mxu0 0.0
        %3518 = vmatprep.subr.mxu0 0.0
        %3519 = vmatpush1.xpose.msra.mxu0 0.0
        %3520 = vmatprep.subr.mxu0 0.0
        %3521 = vmatpush1.xpose.msra.mxu0 0.0
        %3522 = vmatprep.subr.mxu0 0.0
        %3523 = vmatpush1.xpose.msra.mxu0 0.0
        %3524 = vmatprep.subr.mxu0 0.0
        %3525 = vmatpush1.xpose.msra.mxu0 0.0
        %3526 = vmatprep.subr.mxu0 0.0
        %3527 = vmatpush1.xpose.msra.mxu0 0.0
        %3528 = vmatprep.subr.mxu0 0.0
        %3529 = vmatpush1.xpose.msra.mxu0 0.0
        %3530 = vmatprep.subr.mxu0 0.0
        %3531 = vmatpush1.xpose.msra.mxu0 0.0
        %3532 = vmatprep.subr.mxu0 0.0
        %3533 = vmatpush1.xpose.msra.mxu0 0.0
        %3534 = vmatprep.subr.mxu0 0.0
        %3535 = vmatpush1.xpose.msra.mxu0 %v3502
        %3536 = vmatprep.subr.mxu0 0.0
        %3537 = vmatpush2.xpose.msra.mxu0 0.0
        %3538 = vmatprep.subr.mxu0 0.0
        %3539 = vmatpush2.xpose.msra.mxu0 0.0
        %3540 = vmatprep.subr.mxu0 0.0
        %3541 = vmatpush2.xpose.msra.mxu0 0.0
        %3542 = vmatprep.subr.mxu0 0.0
        %3543 = vmatpush2.xpose.msra.mxu0 0.0
        %3544 = vmatprep.subr.mxu0 0.0
        %3545 = vmatpush2.xpose.msra.mxu0 0.0
        %3546 = vmatprep.subr.mxu0 0.0
        %3547 = vmatpush2.xpose.msra.mxu0 0.0
        %3548 = vmatprep.subr.mxu0 0.0
        %3549 = vmatpush2.xpose.msra.mxu0 0.0
        %3550 = vmatprep.subr.mxu0 0.0
        %3551 = vmatpush2.xpose.msra.mxu0 0.0
        %3552 = vmatprep.subr.mxu0 0.0
        %3553 = vmatpush2.xpose.msra.mxu0 0.0
        %3554 = vmatprep.subr.mxu0 0.0
        %3555 = vmatpush2.xpose.msra.mxu0 0.0
        %3556 = vmatprep.subr.mxu0 0.0
        %3557 = vmatpush2.xpose.msra.mxu0 0.0
        %3558 = vmatprep.subr.mxu0 0.0
        %3559 = vmatpush2.xpose.msra.mxu0 0.0
        %3560 = vmatprep.subr.mxu0 0.0
        %3561 = vmatpush2.xpose.msra.mxu0 0.0
        %3562 = vmatprep.subr.mxu0 0.0
        %3563 = vmatpush2.xpose.msra.mxu0 0.0
        %3564 = vmatprep.subr.mxu0 0.0
        %3565 = vmatpush2.xpose.msra.mxu0 0.0
        %3566 = vmatprep.subr.mxu0 0.0
        %3567 = vmatpush2.xpose.msra.mxu0 0.0
        %3568 = vmatprep.mubr.f32.mxu0 0.0
        %3569 = vmatmul.mubr.f32.gmra.mxu0 %v3499
        %v3570 = vpop.f32.mrf.mxu0
        %v3571 = vadd.f32 0.0, %v3570
        %v3572 = vpop.f32.mrf.mxu0
        %3573 = vdwg.mxu0
        %v3574 = vmul.f32 %v3571, 0.35355338
        %v3575 = vsel %vm1521, %v3574, -inf
        %3576 = vmax.xlane.f32.xlu0 %v3575
        %v3577 = vpop.xlane.xlu0 %3576
        %v3578 = vsub.f32 %v3574, %v3577
        %v3579 = vmul.f32 %v3578, 1.442695
        %v3580 = vpow.pop %v3579
        %v3581 = vsel %vm1521, %v3580, 0.0
        %3582 = vadd.xlane.f32.xlu0 %v3581
        %v3583 = vpop.xlane.xlu0 %3582
        %v3584 = vrcp.pop %v3583
        %v3585 = vmul.f32 %v3580, %v3584
        %v3587 = vsel %vm1521, %v3585, 0
        %3589 = vmatprep.subr.mxu0 0.0
        %3590 = vmatpush1.msra.mxu0 0.0
        %3591 = vmatprep.subr.mxu0 0.0
        %3592 = vmatpush1.msra.mxu0 0.0
        %3593 = vmatprep.subr.mxu0 0.0
        %3594 = vmatpush1.msra.mxu0 0.0
        %3595 = vmatprep.subr.mxu0 0.0
        %3596 = vmatpush1.msra.mxu0 0.0
        %3597 = vmatprep.subr.mxu0 0.0
        %3598 = vmatpush1.msra.mxu0 0.0
        %3599 = vmatprep.subr.mxu0 0.0
        %3600 = vmatpush1.msra.mxu0 0.0
        %3601 = vmatprep.subr.mxu0 0.0
        %3602 = vmatpush1.msra.mxu0 0.0
        %3603 = vmatprep.subr.mxu0 0.0
        %3604 = vmatpush1.msra.mxu0 0.0
        %3605 = vmatprep.subr.mxu0 0.0
        %3606 = vmatpush1.msra.mxu0 0.0
        %3607 = vmatprep.subr.mxu0 0.0
        %3608 = vmatpush1.msra.mxu0 0.0
        %3609 = vmatprep.subr.mxu0 0.0
        %3610 = vmatpush1.msra.mxu0 0.0
        %3611 = vmatprep.subr.mxu0 0.0
        %3612 = vmatpush1.msra.mxu0 0.0
        %3613 = vmatprep.subr.mxu0 0.0
        %3614 = vmatpush1.msra.mxu0 0.0
        %3615 = vmatprep.subr.mxu0 0.0
        %3616 = vmatpush1.msra.mxu0 0.0
        %3617 = vmatprep.subr.mxu0 0.0
        %3618 = vmatpush1.msra.mxu0 0.0
        %3619 = vmatprep.subr.mxu0 0.0
        %3620 = vmatpush1.msra.mxu0 %v2748
        %3621 = vmatprep.subr.mxu0 0.0
        %3622 = vmatpush2.msra.mxu0 0.0
        %3623 = vmatprep.subr.mxu0 0.0
        %3624 = vmatpush2.msra.mxu0 0.0
        %3625 = vmatprep.subr.mxu0 0.0
        %3626 = vmatpush2.msra.mxu0 0.0
        %3627 = vmatprep.subr.mxu0 0.0
        %3628 = vmatpush2.msra.mxu0 0.0
        %3629 = vmatprep.subr.mxu0 0.0
        %3630 = vmatpush2.msra.mxu0 0.0
        %3631 = vmatprep.subr.mxu0 0.0
        %3632 = vmatpush2.msra.mxu0 0.0
        %3633 = vmatprep.subr.mxu0 0.0
        %3634 = vmatpush2.msra.mxu0 0.0
        %3635 = vmatprep.subr.mxu0 0.0
        %3636 = vmatpush2.msra.mxu0 0.0
        %3637 = vmatprep.subr.mxu0 0.0
        %3638 = vmatpush2.msra.mxu0 0.0
        %3639 = vmatprep.subr.mxu0 0.0
        %3640 = vmatpush2.msra.mxu0 0.0
        %3641 = vmatprep.subr.mxu0 0.0
        %3642 = vmatpush2.msra.mxu0 0.0
        %3643 = vmatprep.subr.mxu0 0.0
        %3644 = vmatpush2.msra.mxu0 0.0
        %3645 = vmatprep.subr.mxu0 0.0
        %3646 = vmatpush2.msra.mxu0 0.0
        %3647 = vmatprep.subr.mxu0 0.0
        %3648 = vmatpush2.msra.mxu0 0.0
        %3649 = vmatprep.subr.mxu0 0.0
        %3650 = vmatpush2.msra.mxu0 0.0
        %3651 = vmatprep.subr.mxu0 0.0
        %3652 = vmatpush2.msra.mxu0 0.0
        %3653 = vmatprep.mubr.f32.mxu0 0.0
        %3654 = vmatmul.mubr.f32.gmra.mxu0 %v3587
        %v3655 = vpop.f32.mrf.mxu0
        %v3656 = vadd.f32 0.0, %v3655
        %v3657 = vpop.f32.mrf.mxu0
        %3658 = vdwg.mxu0
        %v3660 = vsel %vm1521, %v2831, 0
        %v3663 = vsel %vm1521, %v2914, 0
        %3665 = vmatprep.subr.mxu0 0.0
        %3666 = vmatpush1.xpose.msra.mxu0 0.0
        %3667 = vmatprep.subr.mxu0 0.0
        %3668 = vmatpush1.xpose.msra.mxu0 0.0
        %3669 = vmatprep.subr.mxu0 0.0
        %3670 = vmatpush1.xpose.msra.mxu0 0.0
        %3671 = vmatprep.subr.mxu0 0.0
        %3672 = vmatpush1.xpose.msra.mxu0 0.0
        %3673 = vmatprep.subr.mxu0 0.0
        %3674 = vmatpush1.xpose.msra.mxu0 0.0
        %3675 = vmatprep.subr.mxu0 0.0
        %3676 = vmatpush1.xpose.msra.mxu0 0.0
        %3677 = vmatprep.subr.mxu0 0.0
        %3678 = vmatpush1.xpose.msra.mxu0 0.0
        %3679 = vmatprep.subr.mxu0 0.0
        %3680 = vmatpush1.xpose.msra.mxu0 0.0
        %3681 = vmatprep.subr.mxu0 0.0
        %3682 = vmatpush1.xpose.msra.mxu0 0.0
        %3683 = vmatprep.subr.mxu0 0.0
        %3684 = vmatpush1.xpose.msra.mxu0 0.0
        %3685 = vmatprep.subr.mxu0 0.0
        %3686 = vmatpush1.xpose.msra.mxu0 0.0
        %3687 = vmatprep.subr.mxu0 0.0
        %3688 = vmatpush1.xpose.msra.mxu0 0.0
        %3689 = vmatprep.subr.mxu0 0.0
        %3690 = vmatpush1.xpose.msra.mxu0 0.0
        %3691 = vmatprep.subr.mxu0 0.0
        %3692 = vmatpush1.xpose.msra.mxu0 0.0
        %3693 = vmatprep.subr.mxu0 0.0
        %3694 = vmatpush1.xpose.msra.mxu0 0.0
        %3695 = vmatprep.subr.mxu0 0.0
        %3696 = vmatpush1.xpose.msra.mxu0 %v3663
        %3697 = vmatprep.subr.mxu0 0.0
        %3698 = vmatpush2.xpose.msra.mxu0 0.0
        %3699 = vmatprep.subr.mxu0 0.0
        %3700 = vmatpush2.xpose.msra.mxu0 0.0
        %3701 = vmatprep.subr.mxu0 0.0
        %3702 = vmatpush2.xpose.msra.mxu0 0.0
        %3703 = vmatprep.subr.mxu0 0.0
        %3704 = vmatpush2.xpose.msra.mxu0 0.0
        %3705 = vmatprep.subr.mxu0 0.0
        %3706 = vmatpush2.xpose.msra.mxu0 0.0
        %3707 = vmatprep.subr.mxu0 0.0
        %3708 = vmatpush2.xpose.msra.mxu0 0.0
        %3709 = vmatprep.subr.mxu0 0.0
        %3710 = vmatpush2.xpose.msra.mxu0 0.0
        %3711 = vmatprep.subr.mxu0 0.0
        %3712 = vmatpush2.xpose.msra.mxu0 0.0
        %3713 = vmatprep.subr.mxu0 0.0
        %3714 = vmatpush2.xpose.msra.mxu0 0.0
        %3715 = vmatprep.subr.mxu0 0.0
        %3716 = vmatpush2.xpose.msra.mxu0 0.0
        %3717 = vmatprep.subr.mxu0 0.0
        %3718 = vmatpush2.xpose.msra.mxu0 0.0
        %3719 = vmatprep.subr.mxu0 0.0
        %3720 = vmatpush2.xpose.msra.mxu0 0.0
        %3721 = vmatprep.subr.mxu0 0.0
        %3722 = vmatpush2.xpose.msra.mxu0 0.0
        %3723 = vmatprep.subr.mxu0 0.0
        %3724 = vmatpush2.xpose.msra.mxu0 0.0
        %3725 = vmatprep.subr.mxu0 0.0
        %3726 = vmatpush2.xpose.msra.mxu0 0.0
        %3727 = vmatprep.subr.mxu0 0.0
        %3728 = vmatpush2.xpose.msra.mxu0 0.0
        %3729 = vmatprep.mubr.f32.mxu0 0.0
        %3730 = vmatmul.mubr.f32.gmra.mxu0 %v3660
        %v3731 = vpop.f32.mrf.mxu0
        %v3732 = vadd.f32 0.0, %v3731
        %v3733 = vpop.f32.mrf.mxu0
        %3734 = vdwg.mxu0
        %v3735 = vmul.f32 %v3732, 0.35355338
        %v3736 = vsel %vm1521, %v3735, -inf
        %3737 = vmax.xlane.f32.xlu0 %v3736
        %v3738 = vpop.xlane.xlu0 %3737
        %v3739 = vsub.f32 %v3735, %v3738
        %v3740 = vmul.f32 %v3739, 1.442695
        %v3741 = vpow.pop %v3740
        %v3742 = vsel %vm1521, %v3741, 0.0
        %3743 = vadd.xlane.f32.xlu0 %v3742
        %v3744 = vpop.xlane.xlu0 %3743
        %v3745 = vrcp.pop %v3744
        %v3746 = vmul.f32 %v3741, %v3745
        %v3748 = vsel %vm1521, %v3746, 0
        %3750 = vmatprep.subr.mxu0 0.0
        %3751 = vmatpush1.msra.mxu0 0.0
        %3752 = vmatprep.subr.mxu0 0.0
        %3753 = vmatpush1.msra.mxu0 0.0
        %3754 = vmatprep.subr.mxu0 0.0
        %3755 = vmatpush1.msra.mxu0 0.0
        %3756 = vmatprep.subr.mxu0 0.0
        %3757 = vmatpush1.msra.mxu0 0.0
        %3758 = vmatprep.subr.mxu0 0.0
        %3759 = vmatpush1.msra.mxu0 0.0
        %3760 = vmatprep.subr.mxu0 0.0
        %3761 = vmatpush1.msra.mxu0 0.0
        %3762 = vmatprep.subr.mxu0 0.0
        %3763 = vmatpush1.msra.mxu0 0.0
        %3764 = vmatprep.subr.mxu0 0.0
        %3765 = vmatpush1.msra.mxu0 0.0
        %3766 = vmatprep.subr.mxu0 0.0
        %3767 = vmatpush1.msra.mxu0 0.0
        %3768 = vmatprep.subr.mxu0 0.0
        %3769 = vmatpush1.msra.mxu0 0.0
        %3770 = vmatprep.subr.mxu0 0.0
        %3771 = vmatpush1.msra.mxu0 0.0
        %3772 = vmatprep.subr.mxu0 0.0
        %3773 = vmatpush1.msra.mxu0 0.0
        %3774 = vmatprep.subr.mxu0 0.0
        %3775 = vmatpush1.msra.mxu0 0.0
        %3776 = vmatprep.subr.mxu0 0.0
        %3777 = vmatpush1.msra.mxu0 0.0
        %3778 = vmatprep.subr.mxu0 0.0
        %3779 = vmatpush1.msra.mxu0 0.0
        %3780 = vmatprep.subr.mxu0 0.0
        %3781 = vmatpush1.msra.mxu0 %v2997
        %3782 = vmatprep.subr.mxu0 0.0
        %3783 = vmatpush2.msra.mxu0 0.0
        %3784 = vmatprep.subr.mxu0 0.0
        %3785 = vmatpush2.msra.mxu0 0.0
        %3786 = vmatprep.subr.mxu0 0.0
        %3787 = vmatpush2.msra.mxu0 0.0
        %3788 = vmatprep.subr.mxu0 0.0
        %3789 = vmatpush2.msra.mxu0 0.0
        %3790 = vmatprep.subr.mxu0 0.0
        %3791 = vmatpush2.msra.mxu0 0.0
        %3792 = vmatprep.subr.mxu0 0.0
        %3793 = vmatpush2.msra.mxu0 0.0
        %3794 = vmatprep.subr.mxu0 0.0
        %3795 = vmatpush2.msra.mxu0 0.0
        %3796 = vmatprep.subr.mxu0 0.0
        %3797 = vmatpush2.msra.mxu0 0.0
        %3798 = vmatprep.subr.mxu0 0.0
        %3799 = vmatpush2.msra.mxu0 0.0
        %3800 = vmatprep.subr.mxu0 0.0
        %3801 = vmatpush2.msra.mxu0 0.0
        %3802 = vmatprep.subr.mxu0 0.0
        %3803 = vmatpush2.msra.mxu0 0.0
        %3804 = vmatprep.subr.mxu0 0.0
        %3805 = vmatpush2.msra.mxu0 0.0
        %3806 = vmatprep.subr.mxu0 0.0
        %3807 = vmatpush2.msra.mxu0 0.0
        %3808 = vmatprep.subr.mxu0 0.0
        %3809 = vmatpush2.msra.mxu0 0.0
        %3810 = vmatprep.subr.mxu0 0.0
        %3811 = vmatpush2.msra.mxu0 0.0
        %3812 = vmatprep.subr.mxu0 0.0
        %3813 = vmatpush2.msra.mxu0 0.0
        %3814 = vmatprep.mubr.f32.mxu0 0.0
        %3815 = vmatmul.mubr.f32.gmra.mxu0 %v3748
        %v3816 = vpop.f32.mrf.mxu0
        %v3817 = vadd.f32 0.0, %v3816
        %v3818 = vpop.f32.mrf.mxu0
        %3819 = vdwg.mxu0
        %v3821 = vsel %vm1521, %v3080, 0
        %v3824 = vsel %vm1521, %v3163, 0
        %3826 = vmatprep.subr.mxu0 0.0
        %3827 = vmatpush1.xpose.msra.mxu0 0.0
        %3828 = vmatprep.subr.mxu0 0.0
        %3829 = vmatpush1.xpose.msra.mxu0 0.0
        %3830 = vmatprep.subr.mxu0 0.0
        %3831 = vmatpush1.xpose.msra.mxu0 0.0
        %3832 = vmatprep.subr.mxu0 0.0
        %3833 = vmatpush1.xpose.msra.mxu0 0.0
        %3834 = vmatprep.subr.mxu0 0.0
        %3835 = vmatpush1.xpose.msra.mxu0 0.0
        %3836 = vmatprep.subr.mxu0 0.0
        %3837 = vmatpush1.xpose.msra.mxu0 0.0
        %3838 = vmatprep.subr.mxu0 0.0
        %3839 = vmatpush1.xpose.msra.mxu0 0.0
        %3840 = vmatprep.subr.mxu0 0.0
        %3841 = vmatpush1.xpose.msra.mxu0 0.0
        %3842 = vmatprep.subr.mxu0 0.0
        %3843 = vmatpush1.xpose.msra.mxu0 0.0
        %3844 = vmatprep.subr.mxu0 0.0
        %3845 = vmatpush1.xpose.msra.mxu0 0.0
        %3846 = vmatprep.subr.mxu0 0.0
        %3847 = vmatpush1.xpose.msra.mxu0 0.0
        %3848 = vmatprep.subr.mxu0 0.0
        %3849 = vmatpush1.xpose.msra.mxu0 0.0
        %3850 = vmatprep.subr.mxu0 0.0
        %3851 = vmatpush1.xpose.msra.mxu0 0.0
        %3852 = vmatprep.subr.mxu0 0.0
        %3853 = vmatpush1.xpose.msra.mxu0 0.0
        %3854 = vmatprep.subr.mxu0 0.0
        %3855 = vmatpush1.xpose.msra.mxu0 0.0
        %3856 = vmatprep.subr.mxu0 0.0
        %3857 = vmatpush1.xpose.msra.mxu0 %v3824
        %3858 = vmatprep.subr.mxu0 0.0
        %3859 = vmatpush2.xpose.msra.mxu0 0.0
        %3860 = vmatprep.subr.mxu0 0.0
        %3861 = vmatpush2.xpose.msra.mxu0 0.0
        %3862 = vmatprep.subr.mxu0 0.0
        %3863 = vmatpush2.xpose.msra.mxu0 0.0
        %3864 = vmatprep.subr.mxu0 0.0
        %3865 = vmatpush2.xpose.msra.mxu0 0.0
        %3866 = vmatprep.subr.mxu0 0.0
        %3867 = vmatpush2.xpose.msra.mxu0 0.0
        %3868 = vmatprep.subr.mxu0 0.0
        %3869 = vmatpush2.xpose.msra.mxu0 0.0
        %3870 = vmatprep.subr.mxu0 0.0
        %3871 = vmatpush2.xpose.msra.mxu0 0.0
        %3872 = vmatprep.subr.mxu0 0.0
        %3873 = vmatpush2.xpose.msra.mxu0 0.0
        %3874 = vmatprep.subr.mxu0 0.0
        %3875 = vmatpush2.xpose.msra.mxu0 0.0
        %3876 = vmatprep.subr.mxu0 0.0
        %3877 = vmatpush2.xpose.msra.mxu0 0.0
        %3878 = vmatprep.subr.mxu0 0.0
        %3879 = vmatpush2.xpose.msra.mxu0 0.0
        %3880 = vmatprep.subr.mxu0 0.0
        %3881 = vmatpush2.xpose.msra.mxu0 0.0
        %3882 = vmatprep.subr.mxu0 0.0
        %3883 = vmatpush2.xpose.msra.mxu0 0.0
        %3884 = vmatprep.subr.mxu0 0.0
        %3885 = vmatpush2.xpose.msra.mxu0 0.0
        %3886 = vmatprep.subr.mxu0 0.0
        %3887 = vmatpush2.xpose.msra.mxu0 0.0
        %3888 = vmatprep.subr.mxu0 0.0
        %3889 = vmatpush2.xpose.msra.mxu0 0.0
        %3890 = vmatprep.mubr.f32.mxu0 0.0
        %3891 = vmatmul.mubr.f32.gmra.mxu0 %v3821
        %v3892 = vpop.f32.mrf.mxu0
        %v3893 = vadd.f32 0.0, %v3892
        %v3894 = vpop.f32.mrf.mxu0
        %3895 = vdwg.mxu0
        %v3896 = vmul.f32 %v3893, 0.35355338
        %v3897 = vsel %vm1521, %v3896, -inf
        %3898 = vmax.xlane.f32.xlu0 %v3897
        %v3899 = vpop.xlane.xlu0 %3898
        %v3900 = vsub.f32 %v3896, %v3899
        %v3901 = vmul.f32 %v3900, 1.442695
        %v3902 = vpow.pop %v3901
        %v3903 = vsel %vm1521, %v3902, 0.0
        %3904 = vadd.xlane.f32.xlu0 %v3903
        %v3905 = vpop.xlane.xlu0 %3904
        %v3906 = vrcp.pop %v3905
        %v3907 = vmul.f32 %v3902, %v3906
        %v3909 = vsel %vm1521, %v3907, 0
        %3911 = vmatprep.subr.mxu0 0.0
        %3912 = vmatpush1.msra.mxu0 0.0
        %3913 = vmatprep.subr.mxu0 0.0
        %3914 = vmatpush1.msra.mxu0 0.0
        %3915 = vmatprep.subr.mxu0 0.0
        %3916 = vmatpush1.msra.mxu0 0.0
        %3917 = vmatprep.subr.mxu0 0.0
        %3918 = vmatpush1.msra.mxu0 0.0
        %3919 = vmatprep.subr.mxu0 0.0
        %3920 = vmatpush1.msra.mxu0 0.0
        %3921 = vmatprep.subr.mxu0 0.0
        %3922 = vmatpush1.msra.mxu0 0.0
        %3923 = vmatprep.subr.mxu0 0.0
        %3924 = vmatpush1.msra.mxu0 0.0
        %3925 = vmatprep.subr.mxu0 0.0
        %3926 = vmatpush1.msra.mxu0 0.0
        %3927 = vmatprep.subr.mxu0 0.0
        %3928 = vmatpush1.msra.mxu0 0.0
        %3929 = vmatprep.subr.mxu0 0.0
        %3930 = vmatpush1.msra.mxu0 0.0
        %3931 = vmatprep.subr.mxu0 0.0
        %3932 = vmatpush1.msra.mxu0 0.0
        %3933 = vmatprep.subr.mxu0 0.0
        %3934 = vmatpush1.msra.mxu0 0.0
        %3935 = vmatprep.subr.mxu0 0.0
        %3936 = vmatpush1.msra.mxu0 0.0
        %3937 = vmatprep.subr.mxu0 0.0
        %3938 = vmatpush1.msra.mxu0 0.0
        %3939 = vmatprep.subr.mxu0 0.0
        %3940 = vmatpush1.msra.mxu0 0.0
        %3941 = vmatprep.subr.mxu0 0.0
        %3942 = vmatpush1.msra.mxu0 %v3246
        %3943 = vmatprep.subr.mxu0 0.0
        %3944 = vmatpush2.msra.mxu0 0.0
        %3945 = vmatprep.subr.mxu0 0.0
        %3946 = vmatpush2.msra.mxu0 0.0
        %3947 = vmatprep.subr.mxu0 0.0
        %3948 = vmatpush2.msra.mxu0 0.0
        %3949 = vmatprep.subr.mxu0 0.0
        %3950 = vmatpush2.msra.mxu0 0.0
        %3951 = vmatprep.subr.mxu0 0.0
        %3952 = vmatpush2.msra.mxu0 0.0
        %3953 = vmatprep.subr.mxu0 0.0
        %3954 = vmatpush2.msra.mxu0 0.0
        %3955 = vmatprep.subr.mxu0 0.0
        %3956 = vmatpush2.msra.mxu0 0.0
        %3957 = vmatprep.subr.mxu0 0.0
        %3958 = vmatpush2.msra.mxu0 0.0
        %3959 = vmatprep.subr.mxu0 0.0
        %3960 = vmatpush2.msra.mxu0 0.0
        %3961 = vmatprep.subr.mxu0 0.0
        %3962 = vmatpush2.msra.mxu0 0.0
        %3963 = vmatprep.subr.mxu0 0.0
        %3964 = vmatpush2.msra.mxu0 0.0
        %3965 = vmatprep.subr.mxu0 0.0
        %3966 = vmatpush2.msra.mxu0 0.0
        %3967 = vmatprep.subr.mxu0 0.0
        %3968 = vmatpush2.msra.mxu0 0.0
        %3969 = vmatprep.subr.mxu0 0.0
        %3970 = vmatpush2.msra.mxu0 0.0
        %3971 = vmatprep.subr.mxu0 0.0
        %3972 = vmatpush2.msra.mxu0 0.0
        %3973 = vmatprep.subr.mxu0 0.0
        %3974 = vmatpush2.msra.mxu0 0.0
        %3975 = vmatprep.mubr.f32.mxu0 0.0
        %3976 = vmatmul.mubr.f32.gmra.mxu0 %v3909
        %v3977 = vpop.f32.mrf.mxu0
        %v3978 = vadd.f32 0.0, %v3977
        %v3979 = vpop.f32.mrf.mxu0
        %3980 = vdwg.mxu0
        %v3982 = vsel %vm1521, %v3329, 0
        %v3985 = vsel %vm1521, %v3412, 0
        %3987 = vmatprep.subr.mxu0 0.0
        %3988 = vmatpush1.xpose.msra.mxu0 0.0
        %3989 = vmatprep.subr.mxu0 0.0
        %3990 = vmatpush1.xpose.msra.mxu0 0.0
        %3991 = vmatprep.subr.mxu0 0.0
        %3992 = vmatpush1.xpose.msra.mxu0 0.0
        %3993 = vmatprep.subr.mxu0 0.0
        %3994 = vmatpush1.xpose.msra.mxu0 0.0
        %3995 = vmatprep.subr.mxu0 0.0
        %3996 = vmatpush1.xpose.msra.mxu0 0.0
        %3997 = vmatprep.subr.mxu0 0.0
        %3998 = vmatpush1.xpose.msra.mxu0 0.0
        %3999 = vmatprep.subr.mxu0 0.0
        %4000 = vmatpush1.xpose.msra.mxu0 0.0
        %4001 = vmatprep.subr.mxu0 0.0
        %4002 = vmatpush1.xpose.msra.mxu0 0.0
        %4003 = vmatprep.subr.mxu0 0.0
        %4004 = vmatpush1.xpose.msra.mxu0 0.0
        %4005 = vmatprep.subr.mxu0 0.0
        %4006 = vmatpush1.xpose.msra.mxu0 0.0
        %4007 = vmatprep.subr.mxu0 0.0
        %4008 = vmatpush1.xpose.msra.mxu0 0.0
        %4009 = vmatprep.subr.mxu0 0.0
        %4010 = vmatpush1.xpose.msra.mxu0 0.0
        %4011 = vmatprep.subr.mxu0 0.0
        %4012 = vmatpush1.xpose.msra.mxu0 0.0
        %4013 = vmatprep.subr.mxu0 0.0
        %4014 = vmatpush1.xpose.msra.mxu0 0.0
        %4015 = vmatprep.subr.mxu0 0.0
        %4016 = vmatpush1.xpose.msra.mxu0 0.0
        %4017 = vmatprep.subr.mxu0 0.0
        %4018 = vmatpush1.xpose.msra.mxu0 %v3985
        %4019 = vmatprep.subr.mxu0 0.0
        %4020 = vmatpush2.xpose.msra.mxu0 0.0
        %4021 = vmatprep.subr.mxu0 0.0
        %4022 = vmatpush2.xpose.msra.mxu0 0.0
        %4023 = vmatprep.subr.mxu0 0.0
        %4024 = vmatpush2.xpose.msra.mxu0 0.0
        %4025 = vmatprep.subr.mxu0 0.0
        %4026 = vmatpush2.xpose.msra.mxu0 0.0
        %4027 = vmatprep.subr.mxu0 0.0
        %4028 = vmatpush2.xpose.msra.mxu0 0.0
        %4029 = vmatprep.subr.mxu0 0.0
        %4030 = vmatpush2.xpose.msra.mxu0 0.0
        %4031 = vmatprep.subr.mxu0 0.0
        %4032 = vmatpush2.xpose.msra.mxu0 0.0
        %4033 = vmatprep.subr.mxu0 0.0
        %4034 = vmatpush2.xpose.msra.mxu0 0.0
        %4035 = vmatprep.subr.mxu0 0.0
        %4036 = vmatpush2.xpose.msra.mxu0 0.0
        %4037 = vmatprep.subr.mxu0 0.0
        %4038 = vmatpush2.xpose.msra.mxu0 0.0
        %4039 = vmatprep.subr.mxu0 0.0
        %4040 = vmatpush2.xpose.msra.mxu0 0.0
        %4041 = vmatprep.subr.mxu0 0.0
        %4042 = vmatpush2.xpose.msra.mxu0 0.0
        %4043 = vmatprep.subr.mxu0 0.0
        %4044 = vmatpush2.xpose.msra.mxu0 0.0
        %4045 = vmatprep.subr.mxu0 0.0
        %4046 = vmatpush2.xpose.msra.mxu0 0.0
        %4047 = vmatprep.subr.mxu0 0.0
        %4048 = vmatpush2.xpose.msra.mxu0 0.0
        %4049 = vmatprep.subr.mxu0 0.0
        %4050 = vmatpush2.xpose.msra.mxu0 0.0
        %4051 = vmatprep.mubr.f32.mxu0 0.0
        %4052 = vmatmul.mubr.f32.gmra.mxu0 %v3982
        %v4053 = vpop.f32.mrf.mxu0
        %v4054 = vadd.f32 0.0, %v4053
        %v4055 = vpop.f32.mrf.mxu0
        %4056 = vdwg.mxu0
        %v4057 = vmul.f32 %v4054, 0.35355338
        %v4058 = vsel %vm1521, %v4057, -inf
        %4059 = vmax.xlane.f32.xlu0 %v4058
        %v4060 = vpop.xlane.xlu0 %4059
        %v4061 = vsub.f32 %v4057, %v4060
        %v4062 = vmul.f32 %v4061, 1.442695
        %v4063 = vpow.pop %v4062
        %v4064 = vsel %vm1521, %v4063, 0.0
        %4065 = vadd.xlane.f32.xlu0 %v4064
        %v4066 = vpop.xlane.xlu0 %4065
        %v4067 = vrcp.pop %v4066
        %v4068 = vmul.f32 %v4063, %v4067
        %v4070 = vsel %vm1521, %v4068, 0
        %4072 = vmatprep.subr.mxu0 0.0
        %4073 = vmatpush1.msra.mxu0 0.0
        %4074 = vmatprep.subr.mxu0 0.0
        %4075 = vmatpush1.msra.mxu0 0.0
        %4076 = vmatprep.subr.mxu0 0.0
        %4077 = vmatpush1.msra.mxu0 0.0
        %4078 = vmatprep.subr.mxu0 0.0
        %4079 = vmatpush1.msra.mxu0 0.0
        %4080 = vmatprep.subr.mxu0 0.0
        %4081 = vmatpush1.msra.mxu0 0.0
        %4082 = vmatprep.subr.mxu0 0.0
        %4083 = vmatpush1.msra.mxu0 0.0
        %4084 = vmatprep.subr.mxu0 0.0
        %4085 = vmatpush1.msra.mxu0 0.0
        %4086 = vmatprep.subr.mxu0 0.0
        %4087 = vmatpush1.msra.mxu0 0.0
        %4088 = vmatprep.subr.mxu0 0.0
        %4089 = vmatpush1.msra.mxu0 0.0
        %4090 = vmatprep.subr.mxu0 0.0
        %4091 = vmatpush1.msra.mxu0 0.0
        %4092 = vmatprep.subr.mxu0 0.0
        %4093 = vmatpush1.msra.mxu0 0.0
        %4094 = vmatprep.subr.mxu0 0.0
        %4095 = vmatpush1.msra.mxu0 0.0
        %4096 = vmatprep.subr.mxu0 0.0
        %4097 = vmatpush1.msra.mxu0 0.0
        %4098 = vmatprep.subr.mxu0 0.0
        %4099 = vmatpush1.msra.mxu0 0.0
        %4100 = vmatprep.subr.mxu0 0.0
        %4101 = vmatpush1.msra.mxu0 0.0
        %4102 = vmatprep.subr.mxu0 0.0
        %4103 = vmatpush1.msra.mxu0 %v3495
        %4104 = vmatprep.subr.mxu0 0.0
        %4105 = vmatpush2.msra.mxu0 0.0
        %4106 = vmatprep.subr.mxu0 0.0
        %4107 = vmatpush2.msra.mxu0 0.0
        %4108 = vmatprep.subr.mxu0 0.0
        %4109 = vmatpush2.msra.mxu0 0.0
        %4110 = vmatprep.subr.mxu0 0.0
        %4111 = vmatpush2.msra.mxu0 0.0
        %4112 = vmatprep.subr.mxu0 0.0
        %4113 = vmatpush2.msra.mxu0 0.0
        %4114 = vmatprep.subr.mxu0 0.0
        %4115 = vmatpush2.msra.mxu0 0.0
        %4116 = vmatprep.subr.mxu0 0.0
        %4117 = vmatpush2.msra.mxu0 0.0
        %4118 = vmatprep.subr.mxu0 0.0
        %4119 = vmatpush2.msra.mxu0 0.0
        %4120 = vmatprep.subr.mxu0 0.0
        %4121 = vmatpush2.msra.mxu0 0.0
        %4122 = vmatprep.subr.mxu0 0.0
        %4123 = vmatpush2.msra.mxu0 0.0
        %4124 = vmatprep.subr.mxu0 0.0
        %4125 = vmatpush2.msra.mxu0 0.0
        %4126 = vmatprep.subr.mxu0 0.0
        %4127 = vmatpush2.msra.mxu0 0.0
        %4128 = vmatprep.subr.mxu0 0.0
        %4129 = vmatpush2.msra.mxu0 0.0
        %4130 = vmatprep.subr.mxu0 0.0
        %4131 = vmatpush2.msra.mxu0 0.0
        %4132 = vmatprep.subr.mxu0 0.0
        %4133 = vmatpush2.msra.mxu0 0.0
        %4134 = vmatprep.subr.mxu0 0.0
        %4135 = vmatpush2.msra.mxu0 0.0
        %4136 = vmatprep.mubr.f32.mxu0 0.0
        %4137 = vmatmul.mubr.f32.gmra.mxu0 %v4070
        %v4138 = vpop.f32.mrf.mxu0
        %v4139 = vadd.f32 0.0, %v4138
        %v4140 = vpop.f32.mrf.mxu0
        %4141 = vdwg.mxu0
        %4142 = vrot.lane.b32.xlu0 %v3746, 8
        %v4143 = vpop.permute.xlu0 %4142
        %4145 = vrot.lane.b32.xlu0 %v3907, 16
        %v4146 = vpop.permute.xlu0 %4145
        %4148 = vrot.lane.b32.xlu0 %v4068, 24
        %v4149 = vpop.permute.xlu0 %4148
        %v4151 = vsel %vm1521, %v3585, %v4143
        %v4152 = vsel %vm2176, %v4151, %v4146
        %v4153 = vsel %vm2178, %v4152, %v4149
        %s4154 = scalar_lea.vmem %s382, 8 [#allocation2]
        %4155 = vst.msk [vmem:[%s4154] sm:$0xff] %vm424, %v4153
        %4157 = vrot.lane.b32.xlu0 %v3817, 8
        %v4158 = vpop.permute.xlu0 %4157
        %4161 = vrot.lane.b32.xlu0 %v3978, 16
        %v4162 = vpop.permute.xlu0 %4161
        %4165 = vrot.lane.b32.xlu0 %v4139, 24
        %v4166 = vpop.permute.xlu0 %4165
        %v4168 = vsel %vm1521, %v3656, %v4158
        %v4169 = vsel %vm2176, %v4168, %v4162
        %v4170 = vsel %vm2178, %v4169, %v4166
        %s4171 = scalar_lea.vmem %s5, 32
        %v4172 = vld [vmem:[%s4171] sm:$0xff]
        %v4173 = vld [vmem:[%s4171 + $0x8] sm:$0xff]
        %v4174 = vld [vmem:[%s4171 + $0x10] sm:$0xff]
        %v4175 = vld [vmem:[%s4171 + $0x18] sm:$0xff]
        %v4176 = vlaneseq
        %v4177 = vshrl.u32 %v4176, 7
        %v4178 = vsub.s32 0, %v4177
        %v4179 = vrot.slane %v2498, %v4178
        %v4181 = vsel %vm424, %v4170, 0
        %4183 = vmatprep.subr.mxu0 0.0
        %4184 = vmatpush1.msra.mxu0 0.0
        %4185 = vmatprep.subr.mxu0 0.0
        %4186 = vmatpush1.msra.mxu0 0.0
        %4187 = vmatprep.subr.mxu0 0.0
        %4188 = vmatpush1.msra.mxu0 0.0
        %4189 = vmatprep.subr.mxu0 0.0
        %4190 = vmatpush1.msra.mxu0 0.0
        %4191 = vmatprep.subr.mxu0 0.0
        %4192 = vmatpush1.msra.mxu0 0.0
        %4193 = vmatprep.subr.mxu0 0.0
        %4194 = vmatpush1.msra.mxu0 0.0
        %4195 = vmatprep.subr.mxu0 0.0
        %4196 = vmatpush1.msra.mxu0 0.0
        %4197 = vmatprep.subr.mxu0 0.0
        %4198 = vmatpush1.msra.mxu0 0.0
        %4199 = vmatprep.subr.mxu0 0.0
        %4200 = vmatpush1.msra.mxu0 0.0
        %4201 = vmatprep.subr.mxu0 0.0
        %4202 = vmatpush1.msra.mxu0 0.0
        %4203 = vmatprep.subr.mxu0 0.0
        %4204 = vmatpush1.msra.mxu0 0.0
        %4205 = vmatprep.subr.mxu0 0.0
        %4206 = vmatpush1.msra.mxu0 0.0
        %4207 = vmatprep.subr.mxu0 0.0
        %4208 = vmatpush1.msra.mxu0 %v4175
        %4209 = vmatprep.subr.mxu0 0.0
        %4210 = vmatpush1.msra.mxu0 %v4174
        %4211 = vmatprep.subr.mxu0 0.0
        %4212 = vmatpush1.msra.mxu0 %v4173
        %4213 = vmatprep.subr.mxu0 0.0
        %4214 = vmatpush1.msra.mxu0 %v4172
        %4215 = vmatprep.subr.mxu0 0.0
        %4216 = vmatpush2.msra.mxu0 0.0
        %4217 = vmatprep.subr.mxu0 0.0
        %4218 = vmatpush2.msra.mxu0 0.0
        %4219 = vmatprep.subr.mxu0 0.0
        %4220 = vmatpush2.msra.mxu0 0.0
        %4221 = vmatprep.subr.mxu0 0.0
        %4222 = vmatpush2.msra.mxu0 0.0
        %4223 = vmatprep.subr.mxu0 0.0
        %4224 = vmatpush2.msra.mxu0 0.0
        %4225 = vmatprep.subr.mxu0 0.0
        %4226 = vmatpush2.msra.mxu0 0.0
        %4227 = vmatprep.subr.mxu0 0.0
        %4228 = vmatpush2.msra.mxu0 0.0
        %4229 = vmatprep.subr.mxu0 0.0
        %4230 = vmatpush2.msra.mxu0 0.0
        %4231 = vmatprep.subr.mxu0 0.0
        %4232 = vmatpush2.msra.mxu0 0.0
        %4233 = vmatprep.subr.mxu0 0.0
        %4234 = vmatpush2.msra.mxu0 0.0
        %4235 = vmatprep.subr.mxu0 0.0
        %4236 = vmatpush2.msra.mxu0 0.0
        %4237 = vmatprep.subr.mxu0 0.0
        %4238 = vmatpush2.msra.mxu0 0.0
        %4239 = vmatprep.subr.mxu0 0.0
        %4240 = vmatpush2.msra.mxu0 0.0
        %4241 = vmatprep.subr.mxu0 0.0
        %4242 = vmatpush2.msra.mxu0 0.0
        %4243 = vmatprep.subr.mxu0 0.0
        %4244 = vmatpush2.msra.mxu0 0.0
        %4245 = vmatprep.subr.mxu0 0.0
        %4246 = vmatpush2.msra.mxu0 0.0
        %4247 = vmatprep.mubr.f32.mxu0 0.0
        %4248 = vmatmul.mubr.f32.gmra.mxu0 %v4181
        %v4249 = vpop.f32.mrf.mxu0
        %v4250 = vadd.f32 %v4179, %v4249
        %v4251 = vpop.f32.mrf.mxu0
        %4252 = vdwg.mxu0
        %v4253 = vadd.f32 %v2496, %v4250
        %v4254 = vsel %vm424, %v4253, 0.0
        %4255 = vadd.xlane.f32.xlu0 %v4254
        %v4256 = vpop.xlane.xlu0 %4255
        %v4257 = vmul.f32 %v4256, %v502
        %v4258 = vsub.f32 %v4253, %v4257
        %v4259 = vmul.f32 %v4258, %v4258
        %v4260 = vsel %vm424, %v4259, 0.0
        %4261 = vadd.xlane.f32.xlu0 %v4260
        %v4262 = vpop.xlane.xlu0 %4261
        %v4263 = vmul.f32 %v4262, %v502
        %v4264 = vadd.f32 %v4263, 1e-05
        %v4265 = vrsqrt.pop %v4264
        %v4266 = vmul.f32 %v4258, %v4265
        %v4267 = vlaneseq
        %v4268 = vshrl.u32 %v4267, 7
        %v4269 = vsub.s32 1, %v4268
        %v4270 = vrot.slane %v2498, %v4269
        %v4271 = vmul.f32 %v4266, %v4270
        %v4272 = vlaneseq
        %v4273 = vshrl.u32 %v4272, 7
        %v4274 = vsub.s32 2, %v4273
        %v4275 = vrot.slane %v2498, %v4274
        %v4276 = vadd.f32 %v4271, %v4275
        %s4277 = scalar_lea.vmem %s6, 32
        %v4278 = vld [vmem:[%s4277] sm:$0xff]
        %v4279 = vld [vmem:[%s4277 + $0x8] sm:$0xff]
        %v4280 = vld [vmem:[%s4277 + $0x10] sm:$0xff]
        %v4281 = vld [vmem:[%s4277 + $0x18] sm:$0xff]
        %v4282 = vlaneseq
        %v4283 = vshrl.u32 %v4282, 7
        %v4284 = vsub.s32 3, %v4283
        %v4285 = vrot.slane %v2498, %v4284
        %v4287 = vsel %vm424, %v4276, 0
        %4289 = vmatprep.subr.mxu0 0.0
        %4290 = vmatpush1.msra.mxu0 0.0
        %4291 = vmatprep.subr.mxu0 0.0
        %4292 = vmatpush1.msra.mxu0 0.0
        %4293 = vmatprep.subr.mxu0 0.0
        %4294 = vmatpush1.msra.mxu0 0.0
        %4295 = vmatprep.subr.mxu0 0.0
        %4296 = vmatpush1.msra.mxu0 0.0
        %4297 = vmatprep.subr.mxu0 0.0
        %4298 = vmatpush1.msra.mxu0 0.0
        %4299 = vmatprep.subr.mxu0 0.0
        %4300 = vmatpush1.msra.mxu0 0.0
        %4301 = vmatprep.subr.mxu0 0.0
        %4302 = vmatpush1.msra.mxu0 0.0
        %4303 = vmatprep.subr.mxu0 0.0
        %4304 = vmatpush1.msra.mxu0 0.0
        %4305 = vmatprep.subr.mxu0 0.0
        %4306 = vmatpush1.msra.mxu0 0.0
        %4307 = vmatprep.subr.mxu0 0.0
        %4308 = vmatpush1.msra.mxu0 0.0
        %4309 = vmatprep.subr.mxu0 0.0
        %4310 = vmatpush1.msra.mxu0 0.0
        %4311 = vmatprep.subr.mxu0 0.0
        %4312 = vmatpush1.msra.mxu0 0.0
        %4313 = vmatprep.subr.mxu0 0.0
        %4314 = vmatpush1.msra.mxu0 %v4281
        %4315 = vmatprep.subr.mxu0 0.0
        %4316 = vmatpush1.msra.mxu0 %v4280
        %4317 = vmatprep.subr.mxu0 0.0
        %4318 = vmatpush1.msra.mxu0 %v4279
        %4319 = vmatprep.subr.mxu0 0.0
        %4320 = vmatpush1.msra.mxu0 %v4278
        %4321 = vmatprep.subr.mxu0 0.0
        %4322 = vmatpush2.msra.mxu0 0.0
        %4323 = vmatprep.subr.mxu0 0.0
        %4324 = vmatpush2.msra.mxu0 0.0
        %4325 = vmatprep.subr.mxu0 0.0
        %4326 = vmatpush2.msra.mxu0 0.0
        %4327 = vmatprep.subr.mxu0 0.0
        %4328 = vmatpush2.msra.mxu0 0.0
        %4329 = vmatprep.subr.mxu0 0.0
        %4330 = vmatpush2.msra.mxu0 0.0
        %4331 = vmatprep.subr.mxu0 0.0
        %4332 = vmatpush2.msra.mxu0 0.0
        %4333 = vmatprep.subr.mxu0 0.0
        %4334 = vmatpush2.msra.mxu0 0.0
        %4335 = vmatprep.subr.mxu0 0.0
        %4336 = vmatpush2.msra.mxu0 0.0
        %4337 = vmatprep.subr.mxu0 0.0
        %4338 = vmatpush2.msra.mxu0 0.0
        %4339 = vmatprep.subr.mxu0 0.0
        %4340 = vmatpush2.msra.mxu0 0.0
        %4341 = vmatprep.subr.mxu0 0.0
        %4342 = vmatpush2.msra.mxu0 0.0
        %4343 = vmatprep.subr.mxu0 0.0
        %4344 = vmatpush2.msra.mxu0 0.0
        %4345 = vmatprep.subr.mxu0 0.0
        %4346 = vmatpush2.msra.mxu0 0.0
        %4347 = vmatprep.subr.mxu0 0.0
        %4348 = vmatpush2.msra.mxu0 0.0
        %4349 = vmatprep.subr.mxu0 0.0
        %4350 = vmatpush2.msra.mxu0 0.0
        %4351 = vmatprep.subr.mxu0 0.0
        %4352 = vmatpush2.msra.mxu0 0.0
        %4353 = vmatprep.mubr.f32.mxu0 0.0
        %4354 = vmatmul.mubr.f32.gmra.mxu0 %v4287
        %v4355 = vpop.f32.mrf.mxu0
        %v4356 = vadd.f32 %v4285, %v4355
        %v4357 = vpop.f32.mrf.mxu0
        %4358 = vdwg.mxu0
        %v4359 = vmax.f32 %v4356, 0.0
        %s4360 = scalar_lea.vmem %s7, 128
        %v4361 = vld [vmem:[%s4360] sm:$0xff]
        %v4362 = vld [vmem:[%s4360 + $0x8] sm:$0xff]
        %v4363 = vld [vmem:[%s4360 + $0x10] sm:$0xff]
        %v4364 = vld [vmem:[%s4360 + $0x18] sm:$0xff]
        %v4365 = vld [vmem:[%s4360 + $0x20] sm:$0xff]
        %v4366 = vld [vmem:[%s4360 + $0x28] sm:$0xff]
        %v4367 = vld [vmem:[%s4360 + $0x30] sm:$0xff]
        %v4368 = vld [vmem:[%s4360 + $0x38] sm:$0xff]
        %v4369 = vld [vmem:[%s4360 + $0x40] sm:$0xff]
        %v4370 = vld [vmem:[%s4360 + $0x48] sm:$0xff]
        %v4371 = vld [vmem:[%s4360 + $0x50] sm:$0xff]
        %v4372 = vld [vmem:[%s4360 + $0x58] sm:$0xff]
        %v4373 = vld [vmem:[%s4360 + $0x60] sm:$0xff]
        %v4374 = vld [vmem:[%s4360 + $0x68] sm:$0xff]
        %v4375 = vld [vmem:[%s4360 + $0x70] sm:$0xff]
        %v4376 = vld [vmem:[%s4360 + $0x78] sm:$0xff]
        %v4377 = vlaneseq
        %v4378 = vshrl.u32 %v4377, 7
        %v4379 = vsub.s32 4, %v4378
        %v4380 = vrot.slane %v2498, %v4379
        %4381 = vmatprep.subr.mxu0 0.0
        %4382 = vmatpush1.msra.mxu0 %v4376
        %4383 = vmatprep.subr.mxu0 0.0
        %4384 = vmatpush1.msra.mxu0 %v4375
        %4385 = vmatprep.subr.mxu0 0.0
        %4386 = vmatpush1.msra.mxu0 %v4374
        %4387 = vmatprep.subr.mxu0 0.0
        %4388 = vmatpush1.msra.mxu0 %v4373
        %4389 = vmatprep.subr.mxu0 0.0
        %4390 = vmatpush1.msra.mxu0 %v4372
        %4391 = vmatprep.subr.mxu0 0.0
        %4392 = vmatpush1.msra.mxu0 %v4371
        %4393 = vmatprep.subr.mxu0 0.0
        %4394 = vmatpush1.msra.mxu0 %v4370
        %4395 = vmatprep.subr.mxu0 0.0
        %4396 = vmatpush1.msra.mxu0 %v4369
        %4397 = vmatprep.subr.mxu0 0.0
        %4398 = vmatpush1.msra.mxu0 %v4368
        %4399 = vmatprep.subr.mxu0 0.0
        %4400 = vmatpush1.msra.mxu0 %v4367
        %4401 = vmatprep.subr.mxu0 0.0
        %4402 = vmatpush1.msra.mxu0 %v4366
        %4403 = vmatprep.subr.mxu0 0.0
        %4404 = vmatpush1.msra.mxu0 %v4365
        %4405 = vmatprep.subr.mxu0 0.0
        %4406 = vmatpush1.msra.mxu0 %v4364
        %4407 = vmatprep.subr.mxu0 0.0
        %4408 = vmatpush1.msra.mxu0 %v4363
        %4409 = vmatprep.subr.mxu0 0.0
        %4410 = vmatpush1.msra.mxu0 %v4362
        %4411 = vmatprep.subr.mxu0 0.0
        %4412 = vmatpush1.msra.mxu0 %v4361
        %4413 = vmatprep.subr.mxu0 0.0
        %4414 = vmatpush2.msra.mxu0 0.0
        %4415 = vmatprep.subr.mxu0 0.0
        %4416 = vmatpush2.msra.mxu0 0.0
        %4417 = vmatprep.subr.mxu0 0.0
        %4418 = vmatpush2.msra.mxu0 0.0
        %4419 = vmatprep.subr.mxu0 0.0
        %4420 = vmatpush2.msra.mxu0 0.0
        %4421 = vmatprep.subr.mxu0 0.0
        %4422 = vmatpush2.msra.mxu0 0.0
        %4423 = vmatprep.subr.mxu0 0.0
        %4424 = vmatpush2.msra.mxu0 0.0
        %4425 = vmatprep.subr.mxu0 0.0
        %4426 = vmatpush2.msra.mxu0 0.0
        %4427 = vmatprep.subr.mxu0 0.0
        %4428 = vmatpush2.msra.mxu0 0.0
        %4429 = vmatprep.subr.mxu0 0.0
        %4430 = vmatpush2.msra.mxu0 0.0
        %4431 = vmatprep.subr.mxu0 0.0
        %4432 = vmatpush2.msra.mxu0 0.0
        %4433 = vmatprep.subr.mxu0 0.0
        %4434 = vmatpush2.msra.mxu0 0.0
        %4435 = vmatprep.subr.mxu0 0.0
        %4436 = vmatpush2.msra.mxu0 0.0
        %4437 = vmatprep.subr.mxu0 0.0
        %4438 = vmatpush2.msra.mxu0 0.0
        %4439 = vmatprep.subr.mxu0 0.0
        %4440 = vmatpush2.msra.mxu0 0.0
        %4441 = vmatprep.subr.mxu0 0.0
        %4442 = vmatpush2.msra.mxu0 0.0
        %4443 = vmatprep.subr.mxu0 0.0
        %4444 = vmatpush2.msra.mxu0 0.0
        %4445 = vmatprep.mubr.f32.mxu0 0.0
        %4446 = vmatmul.mubr.f32.gmra.mxu0 %v4359
        %v4447 = vpop.f32.mrf.mxu0
        %v4448 = vadd.f32 %v4380, %v4447
        %v4449 = vpop.f32.mrf.mxu0
        %4450 = vdwg.mxu0
        %v4451 = vadd.f32 %v4276, %v4448
        %v4452 = vsel %vm424, %v4451, 0.0
        %4453 = vadd.xlane.f32.xlu0 %v4452
        %v4454 = vpop.xlane.xlu0 %4453
        %v4455 = vmul.f32 %v4454, %v502
        %v4456 = vsub.f32 %v4451, %v4455
        %v4457 = vmul.f32 %v4456, %v4456
        %v4458 = vsel %vm424, %v4457, 0.0
        %4459 = vadd.xlane.f32.xlu0 %v4458
        %v4460 = vpop.xlane.xlu0 %4459
        %v4461 = vmul.f32 %v4460, %v502
        %v4462 = vadd.f32 %v4461, 1e-05
        %v4463 = vrsqrt.pop %v4462
        %v4464 = vmul.f32 %v4456, %v4463
        %v4465 = vlaneseq
        %v4466 = vshrl.u32 %v4465, 7
        %v4467 = vsub.s32 5, %v4466
        %v4468 = vrot.slane %v2498, %v4467
        %v4469 = vmul.f32 %v4464, %v4468
        %v4470 = vlaneseq
        %v4471 = vshrl.u32 %v4470, 7
        %v4472 = vsub.s32 6, %v4471
        %v4473 = vrot.slane %v2498, %v4472
        %v4474 = vadd.f32 %v4469, %v4473
        %v4475 = vsel %vm424, %v4474, 0.0
        %4476 = vadd.xlane.f32.xlu0 %v4475
        %v4477 = vpop.xlane.xlu0 %4476
        %v4478 = vmul.f32 %v4477, %v502
        %v4479 = vsub.f32 %v4474, %v4478
        %v4480 = vmul.f32 %v4479, %v4479
        %v4481 = vsel %vm424, %v4480, 0.0
        %4482 = vadd.xlane.f32.xlu0 %v4481
        %v4483 = vpop.xlane.xlu0 %4482
        %v4484 = vmul.f32 %v4483, %v502
        %v4485 = vadd.f32 %v4484, 1e-05
        %v4486 = vrsqrt.pop %v4485
        %v4487 = vmul.f32 %v4479, %v4486
        %v4488 = vlaneseq
        %v4489 = vshrl.u32 %v4488, 7
        %v4490 = vsub.s32 0, %v4489
        %v4491 = vrot.slane %v398, %v4490
        %v4492 = vmul.f32 %v4487, %v4491
        %v4493 = vlaneseq
        %v4494 = vshrl.u32 %v4493, 7
        %v4495 = vsub.s32 0, %v4494
        %v4496 = vrot.slane %v399, %v4495
        %v4497 = vadd.f32 %v4492, %v4496
        %v4498 = vld [vmem:[%s9] sm:$0xff]
        %v4499 = vld [vmem:[%s9 + $0x8] sm:$0xff]
        %v4500 = vld [vmem:[%s9 + $0x10] sm:$0xff]
        %v4501 = vld [vmem:[%s9 + $0x18] sm:$0xff]
        %v4502 = vld [vmem:[%s9 + $0x20] sm:$0xff]
        %v4503 = vld [vmem:[%s9 + $0x28] sm:$0xff]
        %v4504 = vld [vmem:[%s9 + $0x30] sm:$0xff]
        %v4505 = vld [vmem:[%s9 + $0x38] sm:$0xff]
        %v4506 = vld [vmem:[%s9 + $0x40] sm:$0x1]
        %v4507 = vld [vmem:[%s9 + $0x41] sm:$0x1]
        %v4508 = vlaneseq
        %v4509 = vshrl.u32 %v4508, 7
        %v4510 = vsub.s32 0, %v4509
        %v4511 = vrot.slane %v4506, %v4510
        %v4513 = vsel %vm424, %v4497, 0
        %4515 = vmatprep.subr.mxu0 0.0
        %4516 = vmatpush1.msra.mxu0 0.0
        %4517 = vmatprep.subr.mxu0 0.0
        %4518 = vmatpush1.msra.mxu0 0.0
        %4519 = vmatprep.subr.mxu0 0.0
        %4520 = vmatpush1.msra.mxu0 0.0
        %4521 = vmatprep.subr.mxu0 0.0
        %4522 = vmatpush1.msra.mxu0 0.0
        %4523 = vmatprep.subr.mxu0 0.0
        %4524 = vmatpush1.msra.mxu0 0.0
        %4525 = vmatprep.subr.mxu0 0.0
        %4526 = vmatpush1.msra.mxu0 0.0
        %4527 = vmatprep.subr.mxu0 0.0
        %4528 = vmatpush1.msra.mxu0 0.0
        %4529 = vmatprep.subr.mxu0 0.0
        %4530 = vmatpush1.msra.mxu0 0.0
        %4531 = vmatprep.subr.mxu0 0.0
        %4532 = vmatpush1.msra.mxu0 0.0
        %4533 = vmatprep.subr.mxu0 0.0
        %4534 = vmatpush1.msra.mxu0 0.0
        %4535 = vmatprep.subr.mxu0 0.0
        %4536 = vmatpush1.msra.mxu0 0.0
        %4537 = vmatprep.subr.mxu0 0.0
        %4538 = vmatpush1.msra.mxu0 0.0
        %4539 = vmatprep.subr.mxu0 0.0
        %4540 = vmatpush1.msra.mxu0 %v4501
        %4541 = vmatprep.subr.mxu0 0.0
        %4542 = vmatpush1.msra.mxu0 %v4500
        %4543 = vmatprep.subr.mxu0 0.0
        %4544 = vmatpush1.msra.mxu0 %v4499
        %4545 = vmatprep.subr.mxu0 0.0
        %4546 = vmatpush1.msra.mxu0 %v4498
        %4547 = vmatprep.subr.mxu0 0.0
        %4548 = vmatpush2.msra.mxu0 0.0
        %4549 = vmatprep.subr.mxu0 0.0
        %4550 = vmatpush2.msra.mxu0 0.0
        %4551 = vmatprep.subr.mxu0 0.0
        %4552 = vmatpush2.msra.mxu0 0.0
        %4553 = vmatprep.subr.mxu0 0.0
        %4554 = vmatpush2.msra.mxu0 0.0
        %4555 = vmatprep.subr.mxu0 0.0
        %4556 = vmatpush2.msra.mxu0 0.0
        %4557 = vmatprep.subr.mxu0 0.0
        %4558 = vmatpush2.msra.mxu0 0.0
        %4559 = vmatprep.subr.mxu0 0.0
        %4560 = vmatpush2.msra.mxu0 0.0
        %4561 = vmatprep.subr.mxu0 0.0
        %4562 = vmatpush2.msra.mxu0 0.0
        %4563 = vmatprep.subr.mxu0 0.0
        %4564 = vmatpush2.msra.mxu0 0.0
        %4565 = vmatprep.subr.mxu0 0.0
        %4566 = vmatpush2.msra.mxu0 0.0
        %4567 = vmatprep.subr.mxu0 0.0
        %4568 = vmatpush2.msra.mxu0 0.0
        %4569 = vmatprep.subr.mxu0 0.0
        %4570 = vmatpush2.msra.mxu0 0.0
        %4571 = vmatprep.subr.mxu0 0.0
        %4572 = vmatpush2.msra.mxu0 0.0
        %4573 = vmatprep.subr.mxu0 0.0
        %4574 = vmatpush2.msra.mxu0 0.0
        %4575 = vmatprep.subr.mxu0 0.0
        %4576 = vmatpush2.msra.mxu0 0.0
        %4577 = vmatprep.subr.mxu0 0.0
        %4578 = vmatpush2.msra.mxu0 0.0
        %4579 = vmatprep.mubr.f32.mxu0 0.0
        %4580 = vmatmul.mubr.f32.gmra.mxu0 %v4513
        %v4581 = vpop.f32.mrf.mxu0
        %v4582 = vadd.f32 %v4511, %v4581
        %v4583 = vpop.f32.mrf.mxu0
        %4584 = vdwg.mxu0
        %v4585 = vmax.f32 %v4582, 0.0
        %v4586 = vlaneseq
        %v4587 = vshrl.u32 %v4586, 7
        %v4588 = vsub.s32 0, %v4587
        %v4589 = vrot.slane %v4507, %v4588
        %v4591 = vsel %vm424, %v4585, 0
        %4593 = vmatprep.subr.mxu0 0.0
        %4594 = vmatpush1.msra.mxu0 0.0
        %4595 = vmatprep.subr.mxu0 0.0
        %4596 = vmatpush1.msra.mxu0 0.0
        %4597 = vmatprep.subr.mxu0 0.0
        %4598 = vmatpush1.msra.mxu0 0.0
        %4599 = vmatprep.subr.mxu0 0.0
        %4600 = vmatpush1.msra.mxu0 0.0
        %4601 = vmatprep.subr.mxu0 0.0
        %4602 = vmatpush1.msra.mxu0 0.0
        %4603 = vmatprep.subr.mxu0 0.0
        %4604 = vmatpush1.msra.mxu0 0.0
        %4605 = vmatprep.subr.mxu0 0.0
        %4606 = vmatpush1.msra.mxu0 0.0
        %4607 = vmatprep.subr.mxu0 0.0
        %4608 = vmatpush1.msra.mxu0 0.0
        %4609 = vmatprep.subr.mxu0 0.0
        %4610 = vmatpush1.msra.mxu0 0.0
        %4611 = vmatprep.subr.mxu0 0.0
        %4612 = vmatpush1.msra.mxu0 0.0
        %4613 = vmatprep.subr.mxu0 0.0
        %4614 = vmatpush1.msra.mxu0 0.0
        %4615 = vmatprep.subr.mxu0 0.0
        %4616 = vmatpush1.msra.mxu0 0.0
        %4617 = vmatprep.subr.mxu0 0.0
        %4618 = vmatpush1.msra.mxu0 %v4505
        %4619 = vmatprep.subr.mxu0 0.0
        %4620 = vmatpush1.msra.mxu0 %v4504
        %4621 = vmatprep.subr.mxu0 0.0
        %4622 = vmatpush1.msra.mxu0 %v4503
        %4623 = vmatprep.subr.mxu0 0.0
        %4624 = vmatpush1.msra.mxu0 %v4502
        %4625 = vmatprep.subr.mxu0 0.0
        %4626 = vmatpush2.msra.mxu0 0.0
        %4627 = vmatprep.subr.mxu0 0.0
        %4628 = vmatpush2.msra.mxu0 0.0
        %4629 = vmatprep.subr.mxu0 0.0
        %4630 = vmatpush2.msra.mxu0 0.0
        %4631 = vmatprep.subr.mxu0 0.0
        %4632 = vmatpush2.msra.mxu0 0.0
        %4633 = vmatprep.subr.mxu0 0.0
        %4634 = vmatpush2.msra.mxu0 0.0
        %4635 = vmatprep.subr.mxu0 0.0
        %4636 = vmatpush2.msra.mxu0 0.0
        %4637 = vmatprep.subr.mxu0 0.0
        %4638 = vmatpush2.msra.mxu0 0.0
        %4639 = vmatprep.subr.mxu0 0.0
        %4640 = vmatpush2.msra.mxu0 0.0
        %4641 = vmatprep.subr.mxu0 0.0
        %4642 = vmatpush2.msra.mxu0 0.0
        %4643 = vmatprep.subr.mxu0 0.0
        %4644 = vmatpush2.msra.mxu0 0.0
        %4645 = vmatprep.subr.mxu0 0.0
        %4646 = vmatpush2.msra.mxu0 0.0
        %4647 = vmatprep.subr.mxu0 0.0
        %4648 = vmatpush2.msra.mxu0 0.0
        %4649 = vmatprep.subr.mxu0 0.0
        %4650 = vmatpush2.msra.mxu0 0.0
        %4651 = vmatprep.subr.mxu0 0.0
        %4652 = vmatpush2.msra.mxu0 0.0
        %4653 = vmatprep.subr.mxu0 0.0
        %4654 = vmatpush2.msra.mxu0 0.0
        %4655 = vmatprep.subr.mxu0 0.0
        %4656 = vmatpush2.msra.mxu0 0.0
        %4657 = vmatprep.mubr.f32.mxu0 0.0
        %4658 = vmatmul.mubr.f32.gmra.mxu0 %v4591
        %v4659 = vpop.f32.mrf.mxu0
        %v4660 = vadd.f32 %v4589, %v4659
        %v4661 = vpop.f32.mrf.mxu0
        %4662 = vdwg.mxu0
        %v4663 = vlaneseq
        %v4664 = vand.u32 %v4663, 127
        %vm4665 = vcmp.eq.s32.totalorder %v4664, 0
        %v4666 = vxor.u32 %v4660, 2147483648
        %v4667 = vmul.f32 %v4666, 1.442695
        %v4668 = vpow.pop %v4667
        %v4669 = vadd.f32 %v4668, 1.0
        %v4670 = vrcp.pop %v4669
        %v4671 = vmul.f32 1.0, %v4670
        %v4672 = vsel %vm4665, %v4671, %v4660
        %4674 = vrot.lane.b32.xlu0 %v4672, 32
        %v4675 = vpop.permute.xlu0 %4674
        %v4677 = vsel %vm424, %v4497, %v4675
        %vm4678 = vcmask 523264
        %4679 = vst.msk [vmem:[%s391] sm:$0xff] %vm4678, %v4677
        %p4680 = scmp.lt.s32.totalorder %s23, 1
        %s4681 = scalar_select %p4680, %s23, 1
        %s4682 = smul.addr %s4681, 8
        %s4683 = scalar_lea.vmem %s10, %s4682
        %s4684 = sand.u32 %s272, 1
        %s4685 = sand.u32 %s272, 1
        %s4686 = smul.addr %s4685, 16
        %s4687 = scalar_lea.vmem [#allocation2], %s4686
        // Predicated region
        $region61: #{_lambda_.1} parent=59 // pred_check
          %p4688 = pneg %p256
        $region62: #{_lambda_.1} parent=59 // pred_check_branch
          %4690 = sbr.rel (%p4688) target = $region64
        $region63: #{_lambda_.1} parent=59 // pred_region
          _
        $region64: #{_lambda_.1} parent=59 // pred_fallthru
          _
        // Predicated region
        $region65: #{_lambda_.1} parent=59 // pred_check
          %p4691 = pneg %p282
        $region66: #{_lambda_.1} parent=59 // pred_check_branch
          %4693 = sbr.rel (%p4691) target = $region68
        $region67: #{_lambda_.1} parent=59 // pred_region
          %s4694 = smul.addr %s23, 8
          %s4695 = scalar_lea.vmem %s11, %s4694
          // Predicated region
          $region69: #{_lambda_.1} parent=67 // pred_check
            _
          $region70: #{_lambda_.1} parent=67 // pred_check_branch
            %4697 = sbr.rel (0) target = $region72
          $region71: #{_lambda_.1} parent=67 // pred_region
            // Predicated region
            $region73: #{_lambda_.1} parent=71 // pred_check
              _
            $region74: #{_lambda_.1} parent=71 // pred_check_branch
              %4699 = sbr.rel (0) target = $region76
            $region75: #{_lambda_.1} parent=71 // pred_region
              // Predicated region
              $region88: #{_lambda_.1} parent=75 // pred_check
                _
              $region89: #{_lambda_.1} parent=75 // pred_check_branch
                %4717 = sbr.rel (0) target = $region91
              $region90: #{_lambda_.1} parent=75 // pred_region
                loop: start=0, step=1, limit=1
                $region92: #{_lambda_.1} parent=90 // loop_pre_header
                  _
                $region93: #{_lambda_.1} parent=90 // loop_header
                  %s4719 = sphi 0, %s4723
                  %p4720 = scmp.ge.s32.totalorder %s4719, 1
                  %s4724 = sphi %s4687, %s4687
                  %s4725 = sphi %s4695, %s4695
                $region94: #{_lambda_.1} parent=90 // loop_header_branch
                  %4722 = sbr.rel (%p4720) target = $region98
                $region95: #{_lambda_.1} parent=90 // loop_body
                  %v4726 = vld [vmem:[%s4724] sm:$0xff]
                  %4727 = vst [vmem:[%s4725] sm:$0xff] %v4726
                  %v4728 = vld [vmem:[%s4724 + $0x8] sm:$0xff]
                  %4729 = vst [vmem:[%s4725 + $0x10] sm:$0xff] %v4728
                $region96: #{_lambda_.1} parent=90 // loop_footer
                  %s4723 = sadd.s32 1, %s4719
                $region97: #{_lambda_.1} parent=90 // loop_footer_branch
                  %4718 = sbr.rel target = $region93
                $region98: #{_lambda_.1} parent=90 // loop_exit
                  _
              $region91: #{_lambda_.1} parent=75 // pred_fallthru
                _
              // Predicated region
              $region99: #{_lambda_.1} parent=75 // pred_check
                _
              $region100: #{_lambda_.1} parent=75 // pred_check_branch
                %4731 = sbr.rel target = $region102
              $region101: #{_lambda_.1} parent=75 // pred_region
                _
              $region102: #{_lambda_.1} parent=75 // pred_fallthru
                _
            $region76: #{_lambda_.1} parent=71 // pred_fallthru
              _
            // Predicated region
            $region77: #{_lambda_.1} parent=71 // pred_check
              _
            $region78: #{_lambda_.1} parent=71 // pred_check_branch
              %4701 = sbr.rel target = $region80
            $region79: #{_lambda_.1} parent=71 // pred_region
              %s4703 = ssub.s32 256, 1
              loop: start=0, step=1, limit=1
              $region81: #{_lambda_.1} parent=79 // loop_pre_header
                _
              $region82: #{_lambda_.1} parent=79 // loop_header
                %s4705 = sphi 0, %s4709
                %p4706 = scmp.ge.s32.totalorder %s4705, 1
                %s4710 = sphi %s4687, %s4687
                %s4711 = sphi %s4695, %s4695
              $region83: #{_lambda_.1} parent=79 // loop_header_branch
                %4708 = sbr.rel (%p4706) target = $region87
              $region84: #{_lambda_.1} parent=79 // loop_body
                %v4712 = vld [vmem:[%s4710] sm:%s4703]
                %4713 = vst [vmem:[%s4711] sm:%s4703] %v4712
                %v4714 = vld [vmem:[%s4710 + $0x8] sm:%s4703]
                %4715 = vst [vmem:[%s4711 + $0x10] sm:%s4703] %v4714
              $region85: #{_lambda_.1} parent=79 // loop_footer
                %s4709 = sadd.s32 1, %s4705
              $region86: #{_lambda_.1} parent=79 // loop_footer_branch
                %4704 = sbr.rel target = $region82
              $region87: #{_lambda_.1} parent=79 // loop_exit
                _
            $region80: #{_lambda_.1} parent=71 // pred_fallthru
              _
          $region72: #{_lambda_.1} parent=67 // pred_fallthru
            _
          %4732 = vnop
        $region68: #{_lambda_.1} parent=59 // pred_fallthru
          _
      $region60: #{_lambda_.1} parent=5 // pred_fallthru
        _
      %p4733 = scmp.le.s32.totalorder 2, %s18
      // Predicated region
      $region103: #{_lambda_.1} parent=5 // pred_check
        %p4734 = pneg %p4733
      $region104: #{_lambda_.1} parent=5 // pred_check_branch
        %4736 = sbr.rel (%p4734) target = $region106
      $region105: #{_lambda_.1} parent=5 // pred_region
        %s4737 = ssub.s32 %s18, 2
        // Predicated region
        $region107: #{_lambda_.1} parent=105 // pred_check
          %p4738 = pneg %p262
        $region108: #{_lambda_.1} parent=105 // pred_check_branch
          %4740 = sbr.rel (%p4738) target = $region110
        $region109: #{_lambda_.1} parent=105 // pred_region
          %p4741 = scmp.lt.s32.totalorder %s24, 1
          %s4742 = scalar_select %p4741, %s24, 1
          %s4743 = smul.addr %s4742, 8
          %s4744 = scalar_lea.vmem %s10, %s4743
        $region110: #{_lambda_.1} parent=105 // pred_fallthru
          _
        // Predicated region
        $region111: #{_lambda_.1} parent=105 // pred_check
          %p4745 = pneg %p288
        $region112: #{_lambda_.1} parent=105 // pred_check_branch
          %4747 = sbr.rel (%p4745) target = $region114
        $region113: #{_lambda_.1} parent=105 // pred_region
          %s4748 = sand.u32 %s273, 1
          %s4749 = sand.u32 %s273, 1
          %s4750 = smul.addr %s4749, 16
          %s4751 = scalar_lea.vmem [#allocation2], %s4750
        $region114: #{_lambda_.1} parent=105 // pred_fallthru
          _
      $region106: #{_lambda_.1} parent=5 // pred_fallthru
        _
    $region6: #{_lambda_.1} parent=1 // loop_footer
      %s22 = sadd.s32 1, %s18
    $region7: #{_lambda_.1} parent=1 // loop_footer_branch
      %17 = sbr.rel target = $region3
    $region8: #{_lambda_.1} parent=1 // loop_exit
      _

</llo_original>
